<compile_context>
chip_gen: v7x
topology: tpu7x:2x2x1
jax: 0.10.0
libtpu: 0.0.40
codegen_flags: <defaults>
</compile_context>

<pallas_src>
import functools

import jax
import jax.numpy as jnp
from jax import lax
from jax.experimental import pallas as pl
from jax.experimental.pallas import tpu as pltpu

VMEM = pl.BlockSpec(memory_space=pltpu.MemorySpace.VMEM)
BN_EPS = 1e-5


# ---------------------------------------------------------------- kernel ----

def make_fused_kernel(T, B, H, num_layers):
    """Builds the fully fused forward kernel.

    Ref layout (positional):
      inputs : x_col (T*B, C*K), conv_w_fold (C*K, H), conv_b_fold (1, H),
               then per LSTM layer [w_ih^T (H,4H), w_hh^T (H,4H), b (1,4H)],
               then fc_w^T (H, n_cls), fc_b (1, n_cls)
      outputs: out (B, n_cls)
      scratch: seq_scr VMEM (T*B, H)   -- inter-layer hidden-state sequence
    """

    def kernel(*refs):
        xcol_ref, cw_ref, cb_ref = refs[0:3]
        lstm_refs = refs[3:3 + 3 * num_layers]
        fcw_ref, fcb_ref = refs[3 + 3 * num_layers:5 + 3 * num_layers]
        o_ref = refs[5 + 3 * num_layers]
        seq_scr = refs[6 + 3 * num_layers]

        # Conv1d with BatchNorm folded in: one MXU matmul + bias.
        # Rows are already time-major: row (t*B + b).
        seq = (jnp.dot(xcol_ref[...], cw_ref[...],
                       preferred_element_type=jnp.float32) + cb_ref[...])

        h = None
        for l in range(num_layers):
            wih = lstm_refs[3 * l][...]        # (H_in, 4H)
            whh = lstm_refs[3 * l + 1][...]    # (H,   4H)
            b = lstm_refs[3 * l + 2][...]      # (1,   4H)  (b_ih + b_hh)

            # Hoisted input projection for the whole sequence: one big matmul,
            # bias added once (not re-broadcast every step).
            xproj = (jnp.dot(seq, wih, preferred_element_type=jnp.float32)
                     + b)                                       # (T*B, 4H)

            h = jnp.zeros((B, H), jnp.float32)                  # h0 = c0 = 0
            c = jnp.zeros((B, H), jnp.float32)
            last = (l == num_layers - 1)

            # Fully unrolled recurrence (T is small & static).
            for t in range(T):
                gates = (xproj[t * B:(t + 1) * B, :]
                         + jnp.dot(h, whh,
                                   preferred_element_type=jnp.float32))
                i_g = jax.nn.sigmoid(gates[:, 0:H])             # PyTorch order
                f_g = jax.nn.sigmoid(gates[:, H:2 * H])         # i, f, g, o
                g_g = jnp.tanh(gates[:, 2 * H:3 * H])
                o_g = jax.nn.sigmoid(gates[:, 3 * H:4 * H])
                c = f_g * c + i_g * g_g
                h = o_g * jnp.tanh(c)
                if not last:
                    # VMEM-only store; the sequence never leaves the chip.
                    seq_scr[t * B:(t + 1) * B, :] = h
            if not last:
                seq = seq_scr[...]

        # Fused final Linear on the last hidden state.
        o_ref[...] = (jnp.dot(h, fcw_ref[...],
                              preferred_element_type=jnp.float32)
                      + fcb_ref[...])

    return kernel


# ------------------------------------------------------------ param setup ---

def _uniform(key, shape, bound):
    return jax.random.uniform(key, shape, jnp.float32, -bound, bound)


def init_params(key, input_size, hidden_size, num_layers, num_classes, kernel_size):
    C, H, K = input_size, hidden_size, kernel_size
    keys = iter(jax.random.split(key, 8 + 4 * num_layers))
    p = {}
    bc = 1.0 / (C * K) ** 0.5
    p["conv_w"] = _uniform(next(keys), (H, C, K), bc)
    p["conv_b"] = _uniform(next(keys), (H,), bc)
    # BatchNorm1d affine params + (non-trivial) running stats, eval mode.
    p["bn_gamma"] = 1.0 + _uniform(next(keys), (H,), 0.5)
    p["bn_beta"] = _uniform(next(keys), (H,), 0.1)
    p["bn_mean"] = _uniform(next(keys), (H,), 0.1)
    p["bn_var"] = 1.0 + jnp.abs(_uniform(next(keys), (H,), 0.2))
    bl = 1.0 / H ** 0.5
    p["lstm"] = []
    for _ in range(num_layers):
        p["lstm"].append(dict(
            w_ih=_uniform(next(keys), (4 * H, H), bl),
            w_hh=_uniform(next(keys), (4 * H, H), bl),
            b_ih=_uniform(next(keys), (4 * H,), bl),
            b_hh=_uniform(next(keys), (4 * H,), bl)))
    p["fc_w"] = _uniform(next(keys), (num_classes, H), bl)
    p["fc_b"] = _uniform(next(keys), (num_classes,), bl)
    return p


# ---------------------------------------------------------------- forward ---

def cnn_lstm_forward(params, x, kernel_size=3):
    B = x.shape[0]
    C, L = x.shape[2], x.shape[3]
    K = kernel_size
    H = params["conv_w"].shape[0]
    T = L - K + 1
    num_layers = len(params["lstm"])
    n_cls = params["fc_w"].shape[0]

    x3 = x.reshape(B, C, L).astype(jnp.float32)          # x.view(B, C, L)

    # im2col, TIME-MAJOR rows: x_col[t*B + b, c*K + k] = x3[b, c, t + k]
    patches = jnp.stack([x3[:, :, k:k + T] for k in range(K)], axis=-1)  # (B,C,T,K)
    x_col = jnp.transpose(patches, (2, 0, 1, 3)).reshape(T * B, C * K)

    # Fold eval-mode BatchNorm1d into the conv weight / bias.
    s = params["bn_gamma"] * lax.rsqrt(params["bn_var"] + BN_EPS)        # (H,)
    w_fold = params["conv_w"].reshape(H, C * K).T * s[None, :]           # (C*K, H)
    b_fold = ((params["conv_b"] - params["bn_mean"]) * s
              + params["bn_beta"]).reshape(1, H)

    # Pre-transpose / pre-combine LSTM + FC parameters (PyTorch gate order).
    lstm_args = []
    for layer in params["lstm"]:
        lstm_args += [layer["w_ih"].T, layer["w_hh"].T,
                      (layer["b_ih"] + layer["b_hh"]).reshape(1, -1)]
    fcw = params["fc_w"].T
    fcb = params["fc_b"].reshape(1, -1)

    # TODO(synk): nn.Dropout(0.5) and the LSTM inter-layer dropout are
    # stochastic training-time ops; eval-mode identity is used here.
    # TODO(synk): on v6e/v7x the matmul inputs could be cast to bf16 (f32
    # accumulate) for 2x MXU throughput; kept f32 here for bit-tight accuracy.
    n_in = 3 + 3 * num_layers + 2
    out = pl.pallas_call(
        make_fused_kernel(T, B, H, num_layers),
        out_shape=jax.ShapeDtypeStruct((B, n_cls), jnp.float32),
        in_specs=[VMEM] * n_in,
        out_specs=VMEM,
        scratch_shapes=[pltpu.VMEM((T * B, H), jnp.float32)],
    )(x_col, w_fold, b_fold, *lstm_args, fcw, fcb)
    return out


# -------------------------------------------------------- pure-JAX reference

def reference_forward(params, x, kernel_size=3):
    B = x.shape[0]
    C, L = x.shape[2], x.shape[3]
    K = kernel_size
    H = params["conv_w"].shape[0]
    T = L - K + 1
    x3 = x.reshape(B, C, L).astype(jnp.float32)

    y = jnp.zeros((B, H, T), jnp.float32)
    for k in range(K):
        y = y + jnp.einsum('bct,hc->bht', x3[:, :, k:k + T], params["conv_w"][:, :, k])
    y = y + params["conv_b"][None, :, None]
    inv = lax.rsqrt(params["bn_var"] + BN_EPS)
    y = (y - params["bn_mean"][None, :, None]) * (params["bn_gamma"] * inv)[None, :, None] \
        + params["bn_beta"][None, :, None]
    seq = jnp.transpose(y, (0, 2, 1))                     # (B, T, H)

    for layer in params["lstm"]:
        h = jnp.zeros((B, H), jnp.float32)
        c = jnp.zeros((B, H), jnp.float32)
        outs = []
        for t in range(T):
            gates = (jnp.dot(seq[:, t, :], layer["w_ih"].T)
                     + jnp.dot(h, layer["w_hh"].T)
                     + layer["b_ih"] + layer["b_hh"])
            i = jax.nn.sigmoid(gates[:, 0:H])
            f = jax.nn.sigmoid(gates[:, H:2 * H])
            g = jnp.tanh(gates[:, 2 * H:3 * H])
            o = jax.nn.sigmoid(gates[:, 3 * H:4 * H])
            c = f * c + i * g
            h = o * jnp.tanh(c)
            outs.append(h)
        seq = jnp.stack(outs, axis=1)

    return jnp.dot(seq[:, -1, :], params["fc_w"].T) + params["fc_b"]


# ------------------------------------------------------------------- main ---

if __name__ == "__main__":
    input_size, hidden_size, num_layers, num_classes, kernel_size = 16, 32, 2, 5, 3
    B, L = 2, 16

    key = jax.random.PRNGKey(0)
    kp, kx = jax.random.split(key)
    params = init_params(kp, input_size, hidden_size, num_layers, num_classes, kernel_size)
    # PyTorch forward implies input (B, 1, input_size, L) so that
    # x.view(B, x.size(2), x.size(3)) is valid.
    x = jax.random.normal(kx, (B, 1, input_size, L), jnp.float32)

    fwd = jax.jit(functools.partial(cnn_lstm_forward, kernel_size=kernel_size))
    out = jax.block_until_ready(fwd(params, x))
    ref = jax.block_until_ready(reference_forward(params, x, kernel_size))

    assert out.shape == (B, num_classes), out.shape
    max_err = float(jnp.max(jnp.abs(out - ref)))
    if max_err > 1e-2:
        raise AssertionError(f"Pallas output mismatch vs reference, max abs err={max_err}")

    print("KERNEL_OK")
</pallas_src>

<mosaic_0001>
module attributes {stable_mosaic.version = 11 : i64} {
  func.func @kernel(%arg0: memref<28x48xf32, #tpu.memory_space<vmem>>, %arg1: memref<48x32xf32, #tpu.memory_space<vmem>>, %arg2: memref<1x32xf32, #tpu.memory_space<vmem>>, %arg3: memref<32x128xf32, #tpu.memory_space<vmem>>, %arg4: memref<32x128xf32, #tpu.memory_space<vmem>>, %arg5: memref<1x128xf32, #tpu.memory_space<vmem>>, %arg6: memref<32x128xf32, #tpu.memory_space<vmem>>, %arg7: memref<32x128xf32, #tpu.memory_space<vmem>>, %arg8: memref<1x128xf32, #tpu.memory_space<vmem>>, %arg9: memref<32x5xf32, #tpu.memory_space<vmem>>, %arg10: memref<1x5xf32, #tpu.memory_space<vmem>>, %arg11: memref<2x5xf32, #tpu.memory_space<vmem>>, %arg12: memref<28x32xf32, #tpu.memory_space<vmem>>) attributes {dimension_semantics = [], scalar_prefetch = 0 : i64, scratch_operands = 1 : i64, tpu.core_type = #tpu.core_type<tc>} {
    %c0 = arith.constant 0 : index
    %c0_0 = arith.constant 0 : index
    %0 = vector.load %arg0[%c0, %c0_0] : memref<28x48xf32, #tpu.memory_space<vmem>>, vector<28x48xf32>
    %c0_1 = arith.constant 0 : index
    %c0_2 = arith.constant 0 : index
    %1 = vector.load %arg1[%c0_1, %c0_2] : memref<48x32xf32, #tpu.memory_space<vmem>>, vector<48x32xf32>
    %cst = arith.constant dense<0.000000e+00> : vector<28x32xf32>
    %2 = tpu.matmul %0, %1, %cst {dimension_numbers = #tpu.dot_dimension_numbers<[1], [0], [0], [1], [0, 0, 1, 1], [], []>} : vector<28x48xf32>, vector<48x32xf32>, vector<28x32xf32> -> vector<28x32xf32>
    %c0_3 = arith.constant 0 : index
    %c0_4 = arith.constant 0 : index
    %3 = vector.load %arg2[%c0_3, %c0_4] : memref<1x32xf32, #tpu.memory_space<vmem>>, vector<1x32xf32>
    %4 = vector.broadcast %3 : vector<1x32xf32> to vector<28x32xf32>
    %5 = arith.addf %2, %4 : vector<28x32xf32>
    %c0_5 = arith.constant 0 : index
    %c0_6 = arith.constant 0 : index
    %6 = vector.load %arg3[%c0_5, %c0_6] : memref<32x128xf32, #tpu.memory_space<vmem>>, vector<32x128xf32>
    %c0_7 = arith.constant 0 : index
    %c0_8 = arith.constant 0 : index
    %7 = vector.load %arg4[%c0_7, %c0_8] : memref<32x128xf32, #tpu.memory_space<vmem>>, vector<32x128xf32>
    %c0_9 = arith.constant 0 : index
    %c0_10 = arith.constant 0 : index
    %8 = vector.load %arg5[%c0_9, %c0_10] : memref<1x128xf32, #tpu.memory_space<vmem>>, vector<1x128xf32>
    %cst_11 = arith.constant dense<0.000000e+00> : vector<28x128xf32>
    %9 = tpu.matmul %5, %6, %cst_11 {dimension_numbers = #tpu.dot_dimension_numbers<[1], [0], [0], [1], [0, 0, 1, 1], [], []>} : vector<28x32xf32>, vector<32x128xf32>, vector<28x128xf32> -> vector<28x128xf32>
    %10 = vector.broadcast %8 : vector<1x128xf32> to vector<28x128xf32>
    %11 = arith.addf %9, %10 : vector<28x128xf32>
    %cst_12 = arith.constant 0.000000e+00 : f32
    %12 = vector.broadcast %cst_12 : f32 to vector<2x32xf32>
    %cst_13 = arith.constant 0.000000e+00 : f32
    %13 = vector.broadcast %cst_13 : f32 to vector<2x32xf32>
    %14 = vector.extract_strided_slice %11 {offsets = [0, 0], sizes = [2, 128], strides = [1, 1]} : vector<28x128xf32> to vector<2x128xf32>
    %cst_14 = arith.constant dense<0.000000e+00> : vector<2x128xf32>
    %15 = tpu.matmul %12, %7, %cst_14 {dimension_numbers = #tpu.dot_dimension_numbers<[1], [0], [0], [1], [0, 0, 1, 1], [], []>} : vector<2x32xf32>, vector<32x128xf32>, vector<2x128xf32> -> vector<2x128xf32>
    %16 = arith.addf %14, %15 : vector<2x128xf32>
    %17 = vector.extract_strided_slice %16 {offsets = [0, 0], sizes = [2, 32], strides = [1, 1]} : vector<2x128xf32> to vector<2x32xf32>
    %18 = arith.negf %17 : vector<2x32xf32>
    %19 = math.exp %18 : vector<2x32xf32>
    %cst_15 = arith.constant 1.000000e+00 : f32
    %20 = vector.broadcast %cst_15 : f32 to vector<2x32xf32>
    %21 = arith.addf %20, %19 : vector<2x32xf32>
    %22 = arith.divf %20, %21 : vector<2x32xf32>
    %23 = vector.extract_strided_slice %16 {offsets = [0, 32], sizes = [2, 32], strides = [1, 1]} : vector<2x128xf32> to vector<2x32xf32>
    %24 = arith.negf %23 : vector<2x32xf32>
    %25 = math.exp %24 : vector<2x32xf32>
    %cst_16 = arith.constant 1.000000e+00 : f32
    %26 = vector.broadcast %cst_16 : f32 to vector<2x32xf32>
    %27 = arith.addf %26, %25 : vector<2x32xf32>
    %28 = arith.divf %26, %27 : vector<2x32xf32>
    %29 = vector.extract_strided_slice %16 {offsets = [0, 64], sizes = [2, 32], strides = [1, 1]} : vector<2x128xf32> to vector<2x32xf32>
    %30 = math.tanh %29 : vector<2x32xf32>
    %31 = vector.extract_strided_slice %16 {offsets = [0, 96], sizes = [2, 32], strides = [1, 1]} : vector<2x128xf32> to vector<2x32xf32>
    %32 = arith.negf %31 : vector<2x32xf32>
    %33 = math.exp %32 : vector<2x32xf32>
    %cst_17 = arith.constant 1.000000e+00 : f32
    %34 = vector.broadcast %cst_17 : f32 to vector<2x32xf32>
    %35 = arith.addf %34, %33 : vector<2x32xf32>
    %36 = arith.divf %34, %35 : vector<2x32xf32>
    %37 = arith.mulf %28, %13 : vector<2x32xf32>
    %38 = arith.mulf %22, %30 : vector<2x32xf32>
    %39 = arith.addf %37, %38 : vector<2x32xf32>
    %40 = math.tanh %39 : vector<2x32xf32>
    %41 = arith.mulf %36, %40 : vector<2x32xf32>
    %c0_18 = arith.constant 0 : index
    %c0_19 = arith.constant 0 : index
    %42 = vector.load %arg12[%c0_18, %c0_19] : memref<28x32xf32, #tpu.memory_space<vmem>>, vector<2x32xf32>
    tpu.vector_store %arg12[%c0_18, %c0_19], %41 {strides = array<i32>} : memref<28x32xf32, #tpu.memory_space<vmem>>, vector<2x32xf32>,
    %43 = vector.extract_strided_slice %11 {offsets = [2, 0], sizes = [2, 128], strides = [1, 1]} : vector<28x128xf32> to vector<2x128xf32>
    %cst_20 = arith.constant dense<0.000000e+00> : vector<2x128xf32>
    %44 = tpu.matmul %41, %7, %cst_20 {dimension_numbers = #tpu.dot_dimension_numbers<[1], [0], [0], [1], [0, 0, 1, 1], [], []>} : vector<2x32xf32>, vector<32x128xf32>, vector<2x128xf32> -> vector<2x128xf32>
    %45 = arith.addf %43, %44 : vector<2x128xf32>
    %46 = vector.extract_strided_slice %45 {offsets = [0, 0], sizes = [2, 32], strides = [1, 1]} : vector<2x128xf32> to vector<2x32xf32>
    %47 = arith.negf %46 : vector<2x32xf32>
    %48 = math.exp %47 : vector<2x32xf32>
    %cst_21 = arith.constant 1.000000e+00 : f32
    %49 = vector.broadcast %cst_21 : f32 to vector<2x32xf32>
    %50 = arith.addf %49, %48 : vector<2x32xf32>
    %51 = arith.divf %49, %50 : vector<2x32xf32>
    %52 = vector.extract_strided_slice %45 {offsets = [0, 32], sizes = [2, 32], strides = [1, 1]} : vector<2x128xf32> to vector<2x32xf32>
    %53 = arith.negf %52 : vector<2x32xf32>
    %54 = math.exp %53 : vector<2x32xf32>
    %cst_22 = arith.constant 1.000000e+00 : f32
    %55 = vector.broadcast %cst_22 : f32 to vector<2x32xf32>
    %56 = arith.addf %55, %54 : vector<2x32xf32>
    %57 = arith.divf %55, %56 : vector<2x32xf32>
    %58 = vector.extract_strided_slice %45 {offsets = [0, 64], sizes = [2, 32], strides = [1, 1]} : vector<2x128xf32> to vector<2x32xf32>
    %59 = math.tanh %58 : vector<2x32xf32>
    %60 = vector.extract_strided_slice %45 {offsets = [0, 96], sizes = [2, 32], strides = [1, 1]} : vector<2x128xf32> to vector<2x32xf32>
    %61 = arith.negf %60 : vector<2x32xf32>
    %62 = math.exp %61 : vector<2x32xf32>
    %cst_23 = arith.constant 1.000000e+00 : f32
    %63 = vector.broadcast %cst_23 : f32 to vector<2x32xf32>
    %64 = arith.addf %63, %62 : vector<2x32xf32>
    %65 = arith.divf %63, %64 : vector<2x32xf32>
    %66 = arith.mulf %57, %39 : vector<2x32xf32>
    %67 = arith.mulf %51, %59 : vector<2x32xf32>
    %68 = arith.addf %66, %67 : vector<2x32xf32>
    %69 = math.tanh %68 : vector<2x32xf32>
    %70 = arith.mulf %65, %69 : vector<2x32xf32>
    %c2 = arith.constant 2 : index
    %c0_24 = arith.constant 0 : index
    %71 = vector.load %arg12[%c2, %c0_24] : memref<28x32xf32, #tpu.memory_space<vmem>>, vector<2x32xf32>
    tpu.vector_store %arg12[%c2, %c0_24], %70 {strides = array<i32>} : memref<28x32xf32, #tpu.memory_space<vmem>>, vector<2x32xf32>,
    %72 = vector.extract_strided_slice %11 {offsets = [4, 0], sizes = [2, 128], strides = [1, 1]} : vector<28x128xf32> to vector<2x128xf32>
    %cst_25 = arith.constant dense<0.000000e+00> : vector<2x128xf32>
    %73 = tpu.matmul %70, %7, %cst_25 {dimension_numbers = #tpu.dot_dimension_numbers<[1], [0], [0], [1], [0, 0, 1, 1], [], []>} : vector<2x32xf32>, vector<32x128xf32>, vector<2x128xf32> -> vector<2x128xf32>
    %74 = arith.addf %72, %73 : vector<2x128xf32>
    %75 = vector.extract_strided_slice %74 {offsets = [0, 0], sizes = [2, 32], strides = [1, 1]} : vector<2x128xf32> to vector<2x32xf32>
    %76 = arith.negf %75 : vector<2x32xf32>
    %77 = math.exp %76 : vector<2x32xf32>
    %cst_26 = arith.constant 1.000000e+00 : f32
    %78 = vector.broadcast %cst_26 : f32 to vector<2x32xf32>
    %79 = arith.addf %78, %77 : vector<2x32xf32>
    %80 = arith.divf %78, %79 : vector<2x32xf32>
    %81 = vector.extract_strided_slice %74 {offsets = [0, 32], sizes = [2, 32], strides = [1, 1]} : vector<2x128xf32> to vector<2x32xf32>
    %82 = arith.negf %81 : vector<2x32xf32>
    %83 = math.exp %82 : vector<2x32xf32>
    %cst_27 = arith.constant 1.000000e+00 : f32
    %84 = vector.broadcast %cst_27 : f32 to vector<2x32xf32>
    %85 = arith.addf %84, %83 : vector<2x32xf32>
    %86 = arith.divf %84, %85 : vector<2x32xf32>
    %87 = vector.extract_strided_slice %74 {offsets = [0, 64], sizes = [2, 32], strides = [1, 1]} : vector<2x128xf32> to vector<2x32xf32>
    %88 = math.tanh %87 : vector<2x32xf32>
    %89 = vector.extract_strided_slice %74 {offsets = [0, 96], sizes = [2, 32], strides = [1, 1]} : vector<2x128xf32> to vector<2x32xf32>
    %90 = arith.negf %89 : vector<2x32xf32>
    %91 = math.exp %90 : vector<2x32xf32>
    %cst_28 = arith.constant 1.000000e+00 : f32
    %92 = vector.broadcast %cst_28 : f32 to vector<2x32xf32>
    %93 = arith.addf %92, %91 : vector<2x32xf32>
    %94 = arith.divf %92, %93 : vector<2x32xf32>
    %95 = arith.mulf %86, %68 : vector<2x32xf32>
    %96 = arith.mulf %80, %88 : vector<2x32xf32>
    %97 = arith.addf %95, %96 : vector<2x32xf32>
    %98 = math.tanh %97 : vector<2x32xf32>
    %99 = arith.mulf %94, %98 : vector<2x32xf32>
    %c4 = arith.constant 4 : index
    %c0_29 = arith.constant 0 : index
    %100 = vector.load %arg12[%c4, %c0_29] : memref<28x32xf32, #tpu.memory_space<vmem>>, vector<2x32xf32>
    tpu.vector_store %arg12[%c4, %c0_29], %99 {strides = array<i32>} : memref<28x32xf32, #tpu.memory_space<vmem>>, vector<2x32xf32>,
    %101 = vector.extract_strided_slice %11 {offsets = [6, 0], sizes = [2, 128], strides = [1, 1]} : vector<28x128xf32> to vector<2x128xf32>
    %cst_30 = arith.constant dense<0.000000e+00> : vector<2x128xf32>
    %102 = tpu.matmul %99, %7, %cst_30 {dimension_numbers = #tpu.dot_dimension_numbers<[1], [0], [0], [1], [0, 0, 1, 1], [], []>} : vector<2x32xf32>, vector<32x128xf32>, vector<2x128xf32> -> vector<2x128xf32>
    %103 = arith.addf %101, %102 : vector<2x128xf32>
    %104 = vector.extract_strided_slice %103 {offsets = [0, 0], sizes = [2, 32], strides = [1, 1]} : vector<2x128xf32> to vector<2x32xf32>
    %105 = arith.negf %104 : vector<2x32xf32>
    %106 = math.exp %105 : vector<2x32xf32>
    %cst_31 = arith.constant 1.000000e+00 : f32
    %107 = vector.broadcast %cst_31 : f32 to vector<2x32xf32>
    %108 = arith.addf %107, %106 : vector<2x32xf32>
    %109 = arith.divf %107, %108 : vector<2x32xf32>
    %110 = vector.extract_strided_slice %103 {offsets = [0, 32], sizes = [2, 32], strides = [1, 1]} : vector<2x128xf32> to vector<2x32xf32>
    %111 = arith.negf %110 : vector<2x32xf32>
    %112 = math.exp %111 : vector<2x32xf32>
    %cst_32 = arith.constant 1.000000e+00 : f32
    %113 = vector.broadcast %cst_32 : f32 to vector<2x32xf32>
    %114 = arith.addf %113, %112 : vector<2x32xf32>
    %115 = arith.divf %113, %114 : vector<2x32xf32>
    %116 = vector.extract_strided_slice %103 {offsets = [0, 64], sizes = [2, 32], strides = [1, 1]} : vector<2x128xf32> to vector<2x32xf32>
    %117 = math.tanh %116 : vector<2x32xf32>
    %118 = vector.extract_strided_slice %103 {offsets = [0, 96], sizes = [2, 32], strides = [1, 1]} : vector<2x128xf32> to vector<2x32xf32>
    %119 = arith.negf %118 : vector<2x32xf32>
    %120 = math.exp %119 : vector<2x32xf32>
    %cst_33 = arith.constant 1.000000e+00 : f32
    %121 = vector.broadcast %cst_33 : f32 to vector<2x32xf32>
    %122 = arith.addf %121, %120 : vector<2x32xf32>
    %123 = arith.divf %121, %122 : vector<2x32xf32>
    %124 = arith.mulf %115, %97 : vector<2x32xf32>
    %125 = arith.mulf %109, %117 : vector<2x32xf32>
    %126 = arith.addf %124, %125 : vector<2x32xf32>
    %127 = math.tanh %126 : vector<2x32xf32>
    %128 = arith.mulf %123, %127 : vector<2x32xf32>
    %c6 = arith.constant 6 : index
    %c0_34 = arith.constant 0 : index
    %129 = vector.load %arg12[%c6, %c0_34] : memref<28x32xf32, #tpu.memory_space<vmem>>, vector<2x32xf32>
    tpu.vector_store %arg12[%c6, %c0_34], %128 {strides = array<i32>} : memref<28x32xf32, #tpu.memory_space<vmem>>, vector<2x32xf32>,
    %130 = vector.extract_strided_slice %11 {offsets = [8, 0], sizes = [2, 128], strides = [1, 1]} : vector<28x128xf32> to vector<2x128xf32>
    %cst_35 = arith.constant dense<0.000000e+00> : vector<2x128xf32>
    %131 = tpu.matmul %128, %7, %cst_35 {dimension_numbers = #tpu.dot_dimension_numbers<[1], [0], [0], [1], [0, 0, 1, 1], [], []>} : vector<2x32xf32>, vector<32x128xf32>, vector<2x128xf32> -> vector<2x128xf32>
    %132 = arith.addf %130, %131 : vector<2x128xf32>
    %133 = vector.extract_strided_slice %132 {offsets = [0, 0], sizes = [2, 32], strides = [1, 1]} : vector<2x128xf32> to vector<2x32xf32>
    %134 = arith.negf %133 : vector<2x32xf32>
    %135 = math.exp %134 : vector<2x32xf32>
    %cst_36 = arith.constant 1.000000e+00 : f32
    %136 = vector.broadcast %cst_36 : f32 to vector<2x32xf32>
    %137 = arith.addf %136, %135 : vector<2x32xf32>
    %138 = arith.divf %136, %137 : vector<2x32xf32>
    %139 = vector.extract_strided_slice %132 {offsets = [0, 32], sizes = [2, 32], strides = [1, 1]} : vector<2x128xf32> to vector<2x32xf32>
    %140 = arith.negf %139 : vector<2x32xf32>
    %141 = math.exp %140 : vector<2x32xf32>
    %cst_37 = arith.constant 1.000000e+00 : f32
    %142 = vector.broadcast %cst_37 : f32 to vector<2x32xf32>
    %143 = arith.addf %142, %141 : vector<2x32xf32>
    %144 = arith.divf %142, %143 : vector<2x32xf32>
    %145 = vector.extract_strided_slice %132 {offsets = [0, 64], sizes = [2, 32], strides = [1, 1]} : vector<2x128xf32> to vector<2x32xf32>
    %146 = math.tanh %145 : vector<2x32xf32>
    %147 = vector.extract_strided_slice %132 {offsets = [0, 96], sizes = [2, 32], strides = [1, 1]} : vector<2x128xf32> to vector<2x32xf32>
    %148 = arith.negf %147 : vector<2x32xf32>
    %149 = math.exp %148 : vector<2x32xf32>
    %cst_38 = arith.constant 1.000000e+00 : f32
    %150 = vector.broadcast %cst_38 : f32 to vector<2x32xf32>
    %151 = arith.addf %150, %149 : vector<2x32xf32>
    %152 = arith.divf %150, %151 : vector<2x32xf32>
    %153 = arith.mulf %144, %126 : vector<2x32xf32>
    %154 = arith.mulf %138, %146 : vector<2x32xf32>
    %155 = arith.addf %153, %154 : vector<2x32xf32>
    %156 = math.tanh %155 : vector<2x32xf32>
    %157 = arith.mulf %152, %156 : vector<2x32xf32>
    %c8 = arith.constant 8 : index
    %c0_39 = arith.constant 0 : index
    %158 = vector.load %arg12[%c8, %c0_39] : memref<28x32xf32, #tpu.memory_space<vmem>>, vector<2x32xf32>
    tpu.vector_store %arg12[%c8, %c0_39], %157 {strides = array<i32>} : memref<28x32xf32, #tpu.memory_space<vmem>>, vector<2x32xf32>,
    %159 = vector.extract_strided_slice %11 {offsets = [10, 0], sizes = [2, 128], strides = [1, 1]} : vector<28x128xf32> to vector<2x128xf32>
    %cst_40 = arith.constant dense<0.000000e+00> : vector<2x128xf32>
    %160 = tpu.matmul %157, %7, %cst_40 {dimension_numbers = #tpu.dot_dimension_numbers<[1], [0], [0], [1], [0, 0, 1, 1], [], []>} : vector<2x32xf32>, vector<32x128xf32>, vector<2x128xf32> -> vector<2x128xf32>
    %161 = arith.addf %159, %160 : vector<2x128xf32>
    %162 = vector.extract_strided_slice %161 {offsets = [0, 0], sizes = [2, 32], strides = [1, 1]} : vector<2x128xf32> to vector<2x32xf32>
    %163 = arith.negf %162 : vector<2x32xf32>
    %164 = math.exp %163 : vector<2x32xf32>
    %cst_41 = arith.constant 1.000000e+00 : f32
    %165 = vector.broadcast %cst_41 : f32 to vector<2x32xf32>
    %166 = arith.addf %165, %164 : vector<2x32xf32>
    %167 = arith.divf %165, %166 : vector<2x32xf32>
    %168 = vector.extract_strided_slice %161 {offsets = [0, 32], sizes = [2, 32], strides = [1, 1]} : vector<2x128xf32> to vector<2x32xf32>
    %169 = arith.negf %168 : vector<2x32xf32>
    %170 = math.exp %169 : vector<2x32xf32>
    %cst_42 = arith.constant 1.000000e+00 : f32
    %171 = vector.broadcast %cst_42 : f32 to vector<2x32xf32>
    %172 = arith.addf %171, %170 : vector<2x32xf32>
    %173 = arith.divf %171, %172 : vector<2x32xf32>
    %174 = vector.extract_strided_slice %161 {offsets = [0, 64], sizes = [2, 32], strides = [1, 1]} : vector<2x128xf32> to vector<2x32xf32>
    %175 = math.tanh %174 : vector<2x32xf32>
    %176 = vector.extract_strided_slice %161 {offsets = [0, 96], sizes = [2, 32], strides = [1, 1]} : vector<2x128xf32> to vector<2x32xf32>
    %177 = arith.negf %176 : vector<2x32xf32>
    %178 = math.exp %177 : vector<2x32xf32>
    %cst_43 = arith.constant 1.000000e+00 : f32
    %179 = vector.broadcast %cst_43 : f32 to vector<2x32xf32>
    %180 = arith.addf %179, %178 : vector<2x32xf32>
    %181 = arith.divf %179, %180 : vector<2x32xf32>
    %182 = arith.mulf %173, %155 : vector<2x32xf32>
    %183 = arith.mulf %167, %175 : vector<2x32xf32>
    %184 = arith.addf %182, %183 : vector<2x32xf32>
    %185 = math.tanh %184 : vector<2x32xf32>
    %186 = arith.mulf %181, %185 : vector<2x32xf32>
    %c10 = arith.constant 10 : index
    %c0_44 = arith.constant 0 : index
    %187 = vector.load %arg12[%c10, %c0_44] : memref<28x32xf32, #tpu.memory_space<vmem>>, vector<2x32xf32>
    tpu.vector_store %arg12[%c10, %c0_44], %186 {strides = array<i32>} : memref<28x32xf32, #tpu.memory_space<vmem>>, vector<2x32xf32>,
    %188 = vector.extract_strided_slice %11 {offsets = [12, 0], sizes = [2, 128], strides = [1, 1]} : vector<28x128xf32> to vector<2x128xf32>
    %cst_45 = arith.constant dense<0.000000e+00> : vector<2x128xf32>
    %189 = tpu.matmul %186, %7, %cst_45 {dimension_numbers = #tpu.dot_dimension_numbers<[1], [0], [0], [1], [0, 0, 1, 1], [], []>} : vector<2x32xf32>, vector<32x128xf32>, vector<2x128xf32> -> vector<2x128xf32>
    %190 = arith.addf %188, %189 : vector<2x128xf32>
    %191 = vector.extract_strided_slice %190 {offsets = [0, 0], sizes = [2, 32], strides = [1, 1]} : vector<2x128xf32> to vector<2x32xf32>
    %192 = arith.negf %191 : vector<2x32xf32>
    %193 = math.exp %192 : vector<2x32xf32>
    %cst_46 = arith.constant 1.000000e+00 : f32
    %194 = vector.broadcast %cst_46 : f32 to vector<2x32xf32>
    %195 = arith.addf %194, %193 : vector<2x32xf32>
    %196 = arith.divf %194, %195 : vector<2x32xf32>
    %197 = vector.extract_strided_slice %190 {offsets = [0, 32], sizes = [2, 32], strides = [1, 1]} : vector<2x128xf32> to vector<2x32xf32>
    %198 = arith.negf %197 : vector<2x32xf32>
    %199 = math.exp %198 : vector<2x32xf32>
    %cst_47 = arith.constant 1.000000e+00 : f32
    %200 = vector.broadcast %cst_47 : f32 to vector<2x32xf32>
    %201 = arith.addf %200, %199 : vector<2x32xf32>
    %202 = arith.divf %200, %201 : vector<2x32xf32>
    %203 = vector.extract_strided_slice %190 {offsets = [0, 64], sizes = [2, 32], strides = [1, 1]} : vector<2x128xf32> to vector<2x32xf32>
    %204 = math.tanh %203 : vector<2x32xf32>
    %205 = vector.extract_strided_slice %190 {offsets = [0, 96], sizes = [2, 32], strides = [1, 1]} : vector<2x128xf32> to vector<2x32xf32>
    %206 = arith.negf %205 : vector<2x32xf32>
    %207 = math.exp %206 : vector<2x32xf32>
    %cst_48 = arith.constant 1.000000e+00 : f32
    %208 = vector.broadcast %cst_48 : f32 to vector<2x32xf32>
    %209 = arith.addf %208, %207 : vector<2x32xf32>
    %210 = arith.divf %208, %209 : vector<2x32xf32>
    %211 = arith.mulf %202, %184 : vector<2x32xf32>
    %212 = arith.mulf %196, %204 : vector<2x32xf32>
    %213 = arith.addf %211, %212 : vector<2x32xf32>
    %214 = math.tanh %213 : vector<2x32xf32>
    %215 = arith.mulf %210, %214 : vector<2x32xf32>
    %c12 = arith.constant 12 : index
    %c0_49 = arith.constant 0 : index
    %216 = vector.load %arg12[%c12, %c0_49] : memref<28x32xf32, #tpu.memory_space<vmem>>, vector<2x32xf32>
    tpu.vector_store %arg12[%c12, %c0_49], %215 {strides = array<i32>} : memref<28x32xf32, #tpu.memory_space<vmem>>, vector<2x32xf32>,
    %217 = vector.extract_strided_slice %11 {offsets = [14, 0], sizes = [2, 128], strides = [1, 1]} : vector<28x128xf32> to vector<2x128xf32>
    %cst_50 = arith.constant dense<0.000000e+00> : vector<2x128xf32>
    %218 = tpu.matmul %215, %7, %cst_50 {dimension_numbers = #tpu.dot_dimension_numbers<[1], [0], [0], [1], [0, 0, 1, 1], [], []>} : vector<2x32xf32>, vector<32x128xf32>, vector<2x128xf32> -> vector<2x128xf32>
    %219 = arith.addf %217, %218 : vector<2x128xf32>
    %220 = vector.extract_strided_slice %219 {offsets = [0, 0], sizes = [2, 32], strides = [1, 1]} : vector<2x128xf32> to vector<2x32xf32>
    %221 = arith.negf %220 : vector<2x32xf32>
    %222 = math.exp %221 : vector<2x32xf32>
    %cst_51 = arith.constant 1.000000e+00 : f32
    %223 = vector.broadcast %cst_51 : f32 to vector<2x32xf32>
    %224 = arith.addf %223, %222 : vector<2x32xf32>
    %225 = arith.divf %223, %224 : vector<2x32xf32>
    %226 = vector.extract_strided_slice %219 {offsets = [0, 32], sizes = [2, 32], strides = [1, 1]} : vector<2x128xf32> to vector<2x32xf32>
    %227 = arith.negf %226 : vector<2x32xf32>
    %228 = math.exp %227 : vector<2x32xf32>
    %cst_52 = arith.constant 1.000000e+00 : f32
    %229 = vector.broadcast %cst_52 : f32 to vector<2x32xf32>
    %230 = arith.addf %229, %228 : vector<2x32xf32>
    %231 = arith.divf %229, %230 : vector<2x32xf32>
    %232 = vector.extract_strided_slice %219 {offsets = [0, 64], sizes = [2, 32], strides = [1, 1]} : vector<2x128xf32> to vector<2x32xf32>
    %233 = math.tanh %232 : vector<2x32xf32>
    %234 = vector.extract_strided_slice %219 {offsets = [0, 96], sizes = [2, 32], strides = [1, 1]} : vector<2x128xf32> to vector<2x32xf32>
    %235 = arith.negf %234 : vector<2x32xf32>
    %236 = math.exp %235 : vector<2x32xf32>
    %cst_53 = arith.constant 1.000000e+00 : f32
    %237 = vector.broadcast %cst_53 : f32 to vector<2x32xf32>
    %238 = arith.addf %237, %236 : vector<2x32xf32>
    %239 = arith.divf %237, %238 : vector<2x32xf32>
    %240 = arith.mulf %231, %213 : vector<2x32xf32>
    %241 = arith.mulf %225, %233 : vector<2x32xf32>
    %242 = arith.addf %240, %241 : vector<2x32xf32>
    %243 = math.tanh %242 : vector<2x32xf32>
    %244 = arith.mulf %239, %243 : vector<2x32xf32>
    %c14 = arith.constant 14 : index
    %c0_54 = arith.constant 0 : index
    %245 = vector.load %arg12[%c14, %c0_54] : memref<28x32xf32, #tpu.memory_space<vmem>>, vector<2x32xf32>
    tpu.vector_store %arg12[%c14, %c0_54], %244 {strides = array<i32>} : memref<28x32xf32, #tpu.memory_space<vmem>>, vector<2x32xf32>,
    %246 = vector.extract_strided_slice %11 {offsets = [16, 0], sizes = [2, 128], strides = [1, 1]} : vector<28x128xf32> to vector<2x128xf32>
    %cst_55 = arith.constant dense<0.000000e+00> : vector<2x128xf32>
    %247 = tpu.matmul %244, %7, %cst_55 {dimension_numbers = #tpu.dot_dimension_numbers<[1], [0], [0], [1], [0, 0, 1, 1], [], []>} : vector<2x32xf32>, vector<32x128xf32>, vector<2x128xf32> -> vector<2x128xf32>
    %248 = arith.addf %246, %247 : vector<2x128xf32>
    %249 = vector.extract_strided_slice %248 {offsets = [0, 0], sizes = [2, 32], strides = [1, 1]} : vector<2x128xf32> to vector<2x32xf32>
    %250 = arith.negf %249 : vector<2x32xf32>
    %251 = math.exp %250 : vector<2x32xf32>
    %cst_56 = arith.constant 1.000000e+00 : f32
    %252 = vector.broadcast %cst_56 : f32 to vector<2x32xf32>
    %253 = arith.addf %252, %251 : vector<2x32xf32>
    %254 = arith.divf %252, %253 : vector<2x32xf32>
    %255 = vector.extract_strided_slice %248 {offsets = [0, 32], sizes = [2, 32], strides = [1, 1]} : vector<2x128xf32> to vector<2x32xf32>
    %256 = arith.negf %255 : vector<2x32xf32>
    %257 = math.exp %256 : vector<2x32xf32>
    %cst_57 = arith.constant 1.000000e+00 : f32
    %258 = vector.broadcast %cst_57 : f32 to vector<2x32xf32>
    %259 = arith.addf %258, %257 : vector<2x32xf32>
    %260 = arith.divf %258, %259 : vector<2x32xf32>
    %261 = vector.extract_strided_slice %248 {offsets = [0, 64], sizes = [2, 32], strides = [1, 1]} : vector<2x128xf32> to vector<2x32xf32>
    %262 = math.tanh %261 : vector<2x32xf32>
    %263 = vector.extract_strided_slice %248 {offsets = [0, 96], sizes = [2, 32], strides = [1, 1]} : vector<2x128xf32> to vector<2x32xf32>
    %264 = arith.negf %263 : vector<2x32xf32>
    %265 = math.exp %264 : vector<2x32xf32>
    %cst_58 = arith.constant 1.000000e+00 : f32
    %266 = vector.broadcast %cst_58 : f32 to vector<2x32xf32>
    %267 = arith.addf %266, %265 : vector<2x32xf32>
    %268 = arith.divf %266, %267 : vector<2x32xf32>
    %269 = arith.mulf %260, %242 : vector<2x32xf32>
    %270 = arith.mulf %254, %262 : vector<2x32xf32>
    %271 = arith.addf %269, %270 : vector<2x32xf32>
    %272 = math.tanh %271 : vector<2x32xf32>
    %273 = arith.mulf %268, %272 : vector<2x32xf32>
    %c16 = arith.constant 16 : index
    %c0_59 = arith.constant 0 : index
    %274 = vector.load %arg12[%c16, %c0_59] : memref<28x32xf32, #tpu.memory_space<vmem>>, vector<2x32xf32>
    tpu.vector_store %arg12[%c16, %c0_59], %273 {strides = array<i32>} : memref<28x32xf32, #tpu.memory_space<vmem>>, vector<2x32xf32>,
    %275 = vector.extract_strided_slice %11 {offsets = [18, 0], sizes = [2, 128], strides = [1, 1]} : vector<28x128xf32> to vector<2x128xf32>
    %cst_60 = arith.constant dense<0.000000e+00> : vector<2x128xf32>
    %276 = tpu.matmul %273, %7, %cst_60 {dimension_numbers = #tpu.dot_dimension_numbers<[1], [0], [0], [1], [0, 0, 1, 1], [], []>} : vector<2x32xf32>, vector<32x128xf32>, vector<2x128xf32> -> vector<2x128xf32>
    %277 = arith.addf %275, %276 : vector<2x128xf32>
    %278 = vector.extract_strided_slice %277 {offsets = [0, 0], sizes = [2, 32], strides = [1, 1]} : vector<2x128xf32> to vector<2x32xf32>
    %279 = arith.negf %278 : vector<2x32xf32>
    %280 = math.exp %279 : vector<2x32xf32>
    %cst_61 = arith.constant 1.000000e+00 : f32
    %281 = vector.broadcast %cst_61 : f32 to vector<2x32xf32>
    %282 = arith.addf %281, %280 : vector<2x32xf32>
    %283 = arith.divf %281, %282 : vector<2x32xf32>
    %284 = vector.extract_strided_slice %277 {offsets = [0, 32], sizes = [2, 32], strides = [1, 1]} : vector<2x128xf32> to vector<2x32xf32>
    %285 = arith.negf %284 : vector<2x32xf32>
    %286 = math.exp %285 : vector<2x32xf32>
    %cst_62 = arith.constant 1.000000e+00 : f32
    %287 = vector.broadcast %cst_62 : f32 to vector<2x32xf32>
    %288 = arith.addf %287, %286 : vector<2x32xf32>
    %289 = arith.divf %287, %288 : vector<2x32xf32>
    %290 = vector.extract_strided_slice %277 {offsets = [0, 64], sizes = [2, 32], strides = [1, 1]} : vector<2x128xf32> to vector<2x32xf32>
    %291 = math.tanh %290 : vector<2x32xf32>
    %292 = vector.extract_strided_slice %277 {offsets = [0, 96], sizes = [2, 32], strides = [1, 1]} : vector<2x128xf32> to vector<2x32xf32>
    %293 = arith.negf %292 : vector<2x32xf32>
    %294 = math.exp %293 : vector<2x32xf32>
    %cst_63 = arith.constant 1.000000e+00 : f32
    %295 = vector.broadcast %cst_63 : f32 to vector<2x32xf32>
    %296 = arith.addf %295, %294 : vector<2x32xf32>
    %297 = arith.divf %295, %296 : vector<2x32xf32>
    %298 = arith.mulf %289, %271 : vector<2x32xf32>
    %299 = arith.mulf %283, %291 : vector<2x32xf32>
    %300 = arith.addf %298, %299 : vector<2x32xf32>
    %301 = math.tanh %300 : vector<2x32xf32>
    %302 = arith.mulf %297, %301 : vector<2x32xf32>
    %c18 = arith.constant 18 : index
    %c0_64 = arith.constant 0 : index
    %303 = vector.load %arg12[%c18, %c0_64] : memref<28x32xf32, #tpu.memory_space<vmem>>, vector<2x32xf32>
    tpu.vector_store %arg12[%c18, %c0_64], %302 {strides = array<i32>} : memref<28x32xf32, #tpu.memory_space<vmem>>, vector<2x32xf32>,
    %304 = vector.extract_strided_slice %11 {offsets = [20, 0], sizes = [2, 128], strides = [1, 1]} : vector<28x128xf32> to vector<2x128xf32>
    %cst_65 = arith.constant dense<0.000000e+00> : vector<2x128xf32>
    %305 = tpu.matmul %302, %7, %cst_65 {dimension_numbers = #tpu.dot_dimension_numbers<[1], [0], [0], [1], [0, 0, 1, 1], [], []>} : vector<2x32xf32>, vector<32x128xf32>, vector<2x128xf32> -> vector<2x128xf32>
    %306 = arith.addf %304, %305 : vector<2x128xf32>
    %307 = vector.extract_strided_slice %306 {offsets = [0, 0], sizes = [2, 32], strides = [1, 1]} : vector<2x128xf32> to vector<2x32xf32>
    %308 = arith.negf %307 : vector<2x32xf32>
    %309 = math.exp %308 : vector<2x32xf32>
    %cst_66 = arith.constant 1.000000e+00 : f32
    %310 = vector.broadcast %cst_66 : f32 to vector<2x32xf32>
    %311 = arith.addf %310, %309 : vector<2x32xf32>
    %312 = arith.divf %310, %311 : vector<2x32xf32>
    %313 = vector.extract_strided_slice %306 {offsets = [0, 32], sizes = [2, 32], strides = [1, 1]} : vector<2x128xf32> to vector<2x32xf32>
    %314 = arith.negf %313 : vector<2x32xf32>
    %315 = math.exp %314 : vector<2x32xf32>
    %cst_67 = arith.constant 1.000000e+00 : f32
    %316 = vector.broadcast %cst_67 : f32 to vector<2x32xf32>
    %317 = arith.addf %316, %315 : vector<2x32xf32>
    %318 = arith.divf %316, %317 : vector<2x32xf32>
    %319 = vector.extract_strided_slice %306 {offsets = [0, 64], sizes = [2, 32], strides = [1, 1]} : vector<2x128xf32> to vector<2x32xf32>
    %320 = math.tanh %319 : vector<2x32xf32>
    %321 = vector.extract_strided_slice %306 {offsets = [0, 96], sizes = [2, 32], strides = [1, 1]} : vector<2x128xf32> to vector<2x32xf32>
    %322 = arith.negf %321 : vector<2x32xf32>
    %323 = math.exp %322 : vector<2x32xf32>
    %cst_68 = arith.constant 1.000000e+00 : f32
    %324 = vector.broadcast %cst_68 : f32 to vector<2x32xf32>
    %325 = arith.addf %324, %323 : vector<2x32xf32>
    %326 = arith.divf %324, %325 : vector<2x32xf32>
    %327 = arith.mulf %318, %300 : vector<2x32xf32>
    %328 = arith.mulf %312, %320 : vector<2x32xf32>
    %329 = arith.addf %327, %328 : vector<2x32xf32>
    %330 = math.tanh %329 : vector<2x32xf32>
    %331 = arith.mulf %326, %330 : vector<2x32xf32>
    %c20 = arith.constant 20 : index
    %c0_69 = arith.constant 0 : index
    %332 = vector.load %arg12[%c20, %c0_69] : memref<28x32xf32, #tpu.memory_space<vmem>>, vector<2x32xf32>
    tpu.vector_store %arg12[%c20, %c0_69], %331 {strides = array<i32>} : memref<28x32xf32, #tpu.memory_space<vmem>>, vector<2x32xf32>,
    %333 = vector.extract_strided_slice %11 {offsets = [22, 0], sizes = [2, 128], strides = [1, 1]} : vector<28x128xf32> to vector<2x128xf32>
    %cst_70 = arith.constant dense<0.000000e+00> : vector<2x128xf32>
    %334 = tpu.matmul %331, %7, %cst_70 {dimension_numbers = #tpu.dot_dimension_numbers<[1], [0], [0], [1], [0, 0, 1, 1], [], []>} : vector<2x32xf32>, vector<32x128xf32>, vector<2x128xf32> -> vector<2x128xf32>
    %335 = arith.addf %333, %334 : vector<2x128xf32>
    %336 = vector.extract_strided_slice %335 {offsets = [0, 0], sizes = [2, 32], strides = [1, 1]} : vector<2x128xf32> to vector<2x32xf32>
    %337 = arith.negf %336 : vector<2x32xf32>
    %338 = math.exp %337 : vector<2x32xf32>
    %cst_71 = arith.constant 1.000000e+00 : f32
    %339 = vector.broadcast %cst_71 : f32 to vector<2x32xf32>
    %340 = arith.addf %339, %338 : vector<2x32xf32>
    %341 = arith.divf %339, %340 : vector<2x32xf32>
    %342 = vector.extract_strided_slice %335 {offsets = [0, 32], sizes = [2, 32], strides = [1, 1]} : vector<2x128xf32> to vector<2x32xf32>
    %343 = arith.negf %342 : vector<2x32xf32>
    %344 = math.exp %343 : vector<2x32xf32>
    %cst_72 = arith.constant 1.000000e+00 : f32
    %345 = vector.broadcast %cst_72 : f32 to vector<2x32xf32>
    %346 = arith.addf %345, %344 : vector<2x32xf32>
    %347 = arith.divf %345, %346 : vector<2x32xf32>
    %348 = vector.extract_strided_slice %335 {offsets = [0, 64], sizes = [2, 32], strides = [1, 1]} : vector<2x128xf32> to vector<2x32xf32>
    %349 = math.tanh %348 : vector<2x32xf32>
    %350 = vector.extract_strided_slice %335 {offsets = [0, 96], sizes = [2, 32], strides = [1, 1]} : vector<2x128xf32> to vector<2x32xf32>
    %351 = arith.negf %350 : vector<2x32xf32>
    %352 = math.exp %351 : vector<2x32xf32>
    %cst_73 = arith.constant 1.000000e+00 : f32
    %353 = vector.broadcast %cst_73 : f32 to vector<2x32xf32>
    %354 = arith.addf %353, %352 : vector<2x32xf32>
    %355 = arith.divf %353, %354 : vector<2x32xf32>
    %356 = arith.mulf %347, %329 : vector<2x32xf32>
    %357 = arith.mulf %341, %349 : vector<2x32xf32>
    %358 = arith.addf %356, %357 : vector<2x32xf32>
    %359 = math.tanh %358 : vector<2x32xf32>
    %360 = arith.mulf %355, %359 : vector<2x32xf32>
    %c22 = arith.constant 22 : index
    %c0_74 = arith.constant 0 : index
    %361 = vector.load %arg12[%c22, %c0_74] : memref<28x32xf32, #tpu.memory_space<vmem>>, vector<2x32xf32>
    tpu.vector_store %arg12[%c22, %c0_74], %360 {strides = array<i32>} : memref<28x32xf32, #tpu.memory_space<vmem>>, vector<2x32xf32>,
    %362 = vector.extract_strided_slice %11 {offsets = [24, 0], sizes = [2, 128], strides = [1, 1]} : vector<28x128xf32> to vector<2x128xf32>
    %cst_75 = arith.constant dense<0.000000e+00> : vector<2x128xf32>
    %363 = tpu.matmul %360, %7, %cst_75 {dimension_numbers = #tpu.dot_dimension_numbers<[1], [0], [0], [1], [0, 0, 1, 1], [], []>} : vector<2x32xf32>, vector<32x128xf32>, vector<2x128xf32> -> vector<2x128xf32>
    %364 = arith.addf %362, %363 : vector<2x128xf32>
    %365 = vector.extract_strided_slice %364 {offsets = [0, 0], sizes = [2, 32], strides = [1, 1]} : vector<2x128xf32> to vector<2x32xf32>
    %366 = arith.negf %365 : vector<2x32xf32>
    %367 = math.exp %366 : vector<2x32xf32>
    %cst_76 = arith.constant 1.000000e+00 : f32
    %368 = vector.broadcast %cst_76 : f32 to vector<2x32xf32>
    %369 = arith.addf %368, %367 : vector<2x32xf32>
    %370 = arith.divf %368, %369 : vector<2x32xf32>
    %371 = vector.extract_strided_slice %364 {offsets = [0, 32], sizes = [2, 32], strides = [1, 1]} : vector<2x128xf32> to vector<2x32xf32>
    %372 = arith.negf %371 : vector<2x32xf32>
    %373 = math.exp %372 : vector<2x32xf32>
    %cst_77 = arith.constant 1.000000e+00 : f32
    %374 = vector.broadcast %cst_77 : f32 to vector<2x32xf32>
    %375 = arith.addf %374, %373 : vector<2x32xf32>
    %376 = arith.divf %374, %375 : vector<2x32xf32>
    %377 = vector.extract_strided_slice %364 {offsets = [0, 64], sizes = [2, 32], strides = [1, 1]} : vector<2x128xf32> to vector<2x32xf32>
    %378 = math.tanh %377 : vector<2x32xf32>
    %379 = vector.extract_strided_slice %364 {offsets = [0, 96], sizes = [2, 32], strides = [1, 1]} : vector<2x128xf32> to vector<2x32xf32>
    %380 = arith.negf %379 : vector<2x32xf32>
    %381 = math.exp %380 : vector<2x32xf32>
    %cst_78 = arith.constant 1.000000e+00 : f32
    %382 = vector.broadcast %cst_78 : f32 to vector<2x32xf32>
    %383 = arith.addf %382, %381 : vector<2x32xf32>
    %384 = arith.divf %382, %383 : vector<2x32xf32>
    %385 = arith.mulf %376, %358 : vector<2x32xf32>
    %386 = arith.mulf %370, %378 : vector<2x32xf32>
    %387 = arith.addf %385, %386 : vector<2x32xf32>
    %388 = math.tanh %387 : vector<2x32xf32>
    %389 = arith.mulf %384, %388 : vector<2x32xf32>
    %c24 = arith.constant 24 : index
    %c0_79 = arith.constant 0 : index
    %390 = vector.load %arg12[%c24, %c0_79] : memref<28x32xf32, #tpu.memory_space<vmem>>, vector<2x32xf32>
    tpu.vector_store %arg12[%c24, %c0_79], %389 {strides = array<i32>} : memref<28x32xf32, #tpu.memory_space<vmem>>, vector<2x32xf32>,
    %391 = vector.extract_strided_slice %11 {offsets = [26, 0], sizes = [2, 128], strides = [1, 1]} : vector<28x128xf32> to vector<2x128xf32>
    %cst_80 = arith.constant dense<0.000000e+00> : vector<2x128xf32>
    %392 = tpu.matmul %389, %7, %cst_80 {dimension_numbers = #tpu.dot_dimension_numbers<[1], [0], [0], [1], [0, 0, 1, 1], [], []>} : vector<2x32xf32>, vector<32x128xf32>, vector<2x128xf32> -> vector<2x128xf32>
    %393 = arith.addf %391, %392 : vector<2x128xf32>
    %394 = vector.extract_strided_slice %393 {offsets = [0, 0], sizes = [2, 32], strides = [1, 1]} : vector<2x128xf32> to vector<2x32xf32>
    %395 = arith.negf %394 : vector<2x32xf32>
    %396 = math.exp %395 : vector<2x32xf32>
    %cst_81 = arith.constant 1.000000e+00 : f32
    %397 = vector.broadcast %cst_81 : f32 to vector<2x32xf32>
    %398 = arith.addf %397, %396 : vector<2x32xf32>
    %399 = arith.divf %397, %398 : vector<2x32xf32>
    %400 = vector.extract_strided_slice %393 {offsets = [0, 32], sizes = [2, 32], strides = [1, 1]} : vector<2x128xf32> to vector<2x32xf32>
    %401 = arith.negf %400 : vector<2x32xf32>
    %402 = math.exp %401 : vector<2x32xf32>
    %cst_82 = arith.constant 1.000000e+00 : f32
    %403 = vector.broadcast %cst_82 : f32 to vector<2x32xf32>
    %404 = arith.addf %403, %402 : vector<2x32xf32>
    %405 = arith.divf %403, %404 : vector<2x32xf32>
    %406 = vector.extract_strided_slice %393 {offsets = [0, 64], sizes = [2, 32], strides = [1, 1]} : vector<2x128xf32> to vector<2x32xf32>
    %407 = math.tanh %406 : vector<2x32xf32>
    %408 = vector.extract_strided_slice %393 {offsets = [0, 96], sizes = [2, 32], strides = [1, 1]} : vector<2x128xf32> to vector<2x32xf32>
    %409 = arith.negf %408 : vector<2x32xf32>
    %410 = math.exp %409 : vector<2x32xf32>
    %cst_83 = arith.constant 1.000000e+00 : f32
    %411 = vector.broadcast %cst_83 : f32 to vector<2x32xf32>
    %412 = arith.addf %411, %410 : vector<2x32xf32>
    %413 = arith.divf %411, %412 : vector<2x32xf32>
    %414 = arith.mulf %405, %387 : vector<2x32xf32>
    %415 = arith.mulf %399, %407 : vector<2x32xf32>
    %416 = arith.addf %414, %415 : vector<2x32xf32>
    %417 = math.tanh %416 : vector<2x32xf32>
    %418 = arith.mulf %413, %417 : vector<2x32xf32>
    %c26 = arith.constant 26 : index
    %c0_84 = arith.constant 0 : index
    %419 = vector.load %arg12[%c26, %c0_84] : memref<28x32xf32, #tpu.memory_space<vmem>>, vector<2x32xf32>
    tpu.vector_store %arg12[%c26, %c0_84], %418 {strides = array<i32>} : memref<28x32xf32, #tpu.memory_space<vmem>>, vector<2x32xf32>,
    %c0_85 = arith.constant 0 : index
    %c0_86 = arith.constant 0 : index
    %420 = vector.load %arg12[%c0_85, %c0_86] : memref<28x32xf32, #tpu.memory_space<vmem>>, vector<28x32xf32>
    %c0_87 = arith.constant 0 : index
    %c0_88 = arith.constant 0 : index
    %421 = vector.load %arg6[%c0_87, %c0_88] : memref<32x128xf32, #tpu.memory_space<vmem>>, vector<32x128xf32>
    %c0_89 = arith.constant 0 : index
    %c0_90 = arith.constant 0 : index
    %422 = vector.load %arg7[%c0_89, %c0_90] : memref<32x128xf32, #tpu.memory_space<vmem>>, vector<32x128xf32>
    %c0_91 = arith.constant 0 : index
    %c0_92 = arith.constant 0 : index
    %423 = vector.load %arg8[%c0_91, %c0_92] : memref<1x128xf32, #tpu.memory_space<vmem>>, vector<1x128xf32>
    %cst_93 = arith.constant dense<0.000000e+00> : vector<28x128xf32>
    %424 = tpu.matmul %420, %421, %cst_93 {dimension_numbers = #tpu.dot_dimension_numbers<[1], [0], [0], [1], [0, 0, 1, 1], [], []>} : vector<28x32xf32>, vector<32x128xf32>, vector<28x128xf32> -> vector<28x128xf32>
    %425 = vector.broadcast %423 : vector<1x128xf32> to vector<28x128xf32>
    %426 = arith.addf %424, %425 : vector<28x128xf32>
    %cst_94 = arith.constant 0.000000e+00 : f32
    %427 = vector.broadcast %cst_94 : f32 to vector<2x32xf32>
    %cst_95 = arith.constant 0.000000e+00 : f32
    %428 = vector.broadcast %cst_95 : f32 to vector<2x32xf32>
    %429 = vector.extract_strided_slice %426 {offsets = [0, 0], sizes = [2, 128], strides = [1, 1]} : vector<28x128xf32> to vector<2x128xf32>
    %cst_96 = arith.constant dense<0.000000e+00> : vector<2x128xf32>
    %430 = tpu.matmul %427, %422, %cst_96 {dimension_numbers = #tpu.dot_dimension_numbers<[1], [0], [0], [1], [0, 0, 1, 1], [], []>} : vector<2x32xf32>, vector<32x128xf32>, vector<2x128xf32> -> vector<2x128xf32>
    %431 = arith.addf %429, %430 : vector<2x128xf32>
    %432 = vector.extract_strided_slice %431 {offsets = [0, 0], sizes = [2, 32], strides = [1, 1]} : vector<2x128xf32> to vector<2x32xf32>
    %433 = arith.negf %432 : vector<2x32xf32>
    %434 = math.exp %433 : vector<2x32xf32>
    %cst_97 = arith.constant 1.000000e+00 : f32
    %435 = vector.broadcast %cst_97 : f32 to vector<2x32xf32>
    %436 = arith.addf %435, %434 : vector<2x32xf32>
    %437 = arith.divf %435, %436 : vector<2x32xf32>
    %438 = vector.extract_strided_slice %431 {offsets = [0, 32], sizes = [2, 32], strides = [1, 1]} : vector<2x128xf32> to vector<2x32xf32>
    %439 = arith.negf %438 : vector<2x32xf32>
    %440 = math.exp %439 : vector<2x32xf32>
    %cst_98 = arith.constant 1.000000e+00 : f32
    %441 = vector.broadcast %cst_98 : f32 to vector<2x32xf32>
    %442 = arith.addf %441, %440 : vector<2x32xf32>
    %443 = arith.divf %441, %442 : vector<2x32xf32>
    %444 = vector.extract_strided_slice %431 {offsets = [0, 64], sizes = [2, 32], strides = [1, 1]} : vector<2x128xf32> to vector<2x32xf32>
    %445 = math.tanh %444 : vector<2x32xf32>
    %446 = vector.extract_strided_slice %431 {offsets = [0, 96], sizes = [2, 32], strides = [1, 1]} : vector<2x128xf32> to vector<2x32xf32>
    %447 = arith.negf %446 : vector<2x32xf32>
    %448 = math.exp %447 : vector<2x32xf32>
    %cst_99 = arith.constant 1.000000e+00 : f32
    %449 = vector.broadcast %cst_99 : f32 to vector<2x32xf32>
    %450 = arith.addf %449, %448 : vector<2x32xf32>
    %451 = arith.divf %449, %450 : vector<2x32xf32>
    %452 = arith.mulf %443, %428 : vector<2x32xf32>
    %453 = arith.mulf %437, %445 : vector<2x32xf32>
    %454 = arith.addf %452, %453 : vector<2x32xf32>
    %455 = math.tanh %454 : vector<2x32xf32>
    %456 = arith.mulf %451, %455 : vector<2x32xf32>
    %457 = vector.extract_strided_slice %426 {offsets = [2, 0], sizes = [2, 128], strides = [1, 1]} : vector<28x128xf32> to vector<2x128xf32>
    %cst_100 = arith.constant dense<0.000000e+00> : vector<2x128xf32>
    %458 = tpu.matmul %456, %422, %cst_100 {dimension_numbers = #tpu.dot_dimension_numbers<[1], [0], [0], [1], [0, 0, 1, 1], [], []>} : vector<2x32xf32>, vector<32x128xf32>, vector<2x128xf32> -> vector<2x128xf32>
    %459 = arith.addf %457, %458 : vector<2x128xf32>
    %460 = vector.extract_strided_slice %459 {offsets = [0, 0], sizes = [2, 32], strides = [1, 1]} : vector<2x128xf32> to vector<2x32xf32>
    %461 = arith.negf %460 : vector<2x32xf32>
    %462 = math.exp %461 : vector<2x32xf32>
    %cst_101 = arith.constant 1.000000e+00 : f32
    %463 = vector.broadcast %cst_101 : f32 to vector<2x32xf32>
    %464 = arith.addf %463, %462 : vector<2x32xf32>
    %465 = arith.divf %463, %464 : vector<2x32xf32>
    %466 = vector.extract_strided_slice %459 {offsets = [0, 32], sizes = [2, 32], strides = [1, 1]} : vector<2x128xf32> to vector<2x32xf32>
    %467 = arith.negf %466 : vector<2x32xf32>
    %468 = math.exp %467 : vector<2x32xf32>
    %cst_102 = arith.constant 1.000000e+00 : f32
    %469 = vector.broadcast %cst_102 : f32 to vector<2x32xf32>
    %470 = arith.addf %469, %468 : vector<2x32xf32>
    %471 = arith.divf %469, %470 : vector<2x32xf32>
    %472 = vector.extract_strided_slice %459 {offsets = [0, 64], sizes = [2, 32], strides = [1, 1]} : vector<2x128xf32> to vector<2x32xf32>
    %473 = math.tanh %472 : vector<2x32xf32>
    %474 = vector.extract_strided_slice %459 {offsets = [0, 96], sizes = [2, 32], strides = [1, 1]} : vector<2x128xf32> to vector<2x32xf32>
    %475 = arith.negf %474 : vector<2x32xf32>
    %476 = math.exp %475 : vector<2x32xf32>
    %cst_103 = arith.constant 1.000000e+00 : f32
    %477 = vector.broadcast %cst_103 : f32 to vector<2x32xf32>
    %478 = arith.addf %477, %476 : vector<2x32xf32>
    %479 = arith.divf %477, %478 : vector<2x32xf32>
    %480 = arith.mulf %471, %454 : vector<2x32xf32>
    %481 = arith.mulf %465, %473 : vector<2x32xf32>
    %482 = arith.addf %480, %481 : vector<2x32xf32>
    %483 = math.tanh %482 : vector<2x32xf32>
    %484 = arith.mulf %479, %483 : vector<2x32xf32>
    %485 = vector.extract_strided_slice %426 {offsets = [4, 0], sizes = [2, 128], strides = [1, 1]} : vector<28x128xf32> to vector<2x128xf32>
    %cst_104 = arith.constant dense<0.000000e+00> : vector<2x128xf32>
    %486 = tpu.matmul %484, %422, %cst_104 {dimension_numbers = #tpu.dot_dimension_numbers<[1], [0], [0], [1], [0, 0, 1, 1], [], []>} : vector<2x32xf32>, vector<32x128xf32>, vector<2x128xf32> -> vector<2x128xf32>
    %487 = arith.addf %485, %486 : vector<2x128xf32>
    %488 = vector.extract_strided_slice %487 {offsets = [0, 0], sizes = [2, 32], strides = [1, 1]} : vector<2x128xf32> to vector<2x32xf32>
    %489 = arith.negf %488 : vector<2x32xf32>
    %490 = math.exp %489 : vector<2x32xf32>
    %cst_105 = arith.constant 1.000000e+00 : f32
    %491 = vector.broadcast %cst_105 : f32 to vector<2x32xf32>
    %492 = arith.addf %491, %490 : vector<2x32xf32>
    %493 = arith.divf %491, %492 : vector<2x32xf32>
    %494 = vector.extract_strided_slice %487 {offsets = [0, 32], sizes = [2, 32], strides = [1, 1]} : vector<2x128xf32> to vector<2x32xf32>
    %495 = arith.negf %494 : vector<2x32xf32>
    %496 = math.exp %495 : vector<2x32xf32>
    %cst_106 = arith.constant 1.000000e+00 : f32
    %497 = vector.broadcast %cst_106 : f32 to vector<2x32xf32>
    %498 = arith.addf %497, %496 : vector<2x32xf32>
    %499 = arith.divf %497, %498 : vector<2x32xf32>
    %500 = vector.extract_strided_slice %487 {offsets = [0, 64], sizes = [2, 32], strides = [1, 1]} : vector<2x128xf32> to vector<2x32xf32>
    %501 = math.tanh %500 : vector<2x32xf32>
    %502 = vector.extract_strided_slice %487 {offsets = [0, 96], sizes = [2, 32], strides = [1, 1]} : vector<2x128xf32> to vector<2x32xf32>
    %503 = arith.negf %502 : vector<2x32xf32>
    %504 = math.exp %503 : vector<2x32xf32>
    %cst_107 = arith.constant 1.000000e+00 : f32
    %505 = vector.broadcast %cst_107 : f32 to vector<2x32xf32>
    %506 = arith.addf %505, %504 : vector<2x32xf32>
    %507 = arith.divf %505, %506 : vector<2x32xf32>
    %508 = arith.mulf %499, %482 : vector<2x32xf32>
    %509 = arith.mulf %493, %501 : vector<2x32xf32>
    %510 = arith.addf %508, %509 : vector<2x32xf32>
    %511 = math.tanh %510 : vector<2x32xf32>
    %512 = arith.mulf %507, %511 : vector<2x32xf32>
    %513 = vector.extract_strided_slice %426 {offsets = [6, 0], sizes = [2, 128], strides = [1, 1]} : vector<28x128xf32> to vector<2x128xf32>
    %cst_108 = arith.constant dense<0.000000e+00> : vector<2x128xf32>
    %514 = tpu.matmul %512, %422, %cst_108 {dimension_numbers = #tpu.dot_dimension_numbers<[1], [0], [0], [1], [0, 0, 1, 1], [], []>} : vector<2x32xf32>, vector<32x128xf32>, vector<2x128xf32> -> vector<2x128xf32>
    %515 = arith.addf %513, %514 : vector<2x128xf32>
    %516 = vector.extract_strided_slice %515 {offsets = [0, 0], sizes = [2, 32], strides = [1, 1]} : vector<2x128xf32> to vector<2x32xf32>
    %517 = arith.negf %516 : vector<2x32xf32>
    %518 = math.exp %517 : vector<2x32xf32>
    %cst_109 = arith.constant 1.000000e+00 : f32
    %519 = vector.broadcast %cst_109 : f32 to vector<2x32xf32>
    %520 = arith.addf %519, %518 : vector<2x32xf32>
    %521 = arith.divf %519, %520 : vector<2x32xf32>
    %522 = vector.extract_strided_slice %515 {offsets = [0, 32], sizes = [2, 32], strides = [1, 1]} : vector<2x128xf32> to vector<2x32xf32>
    %523 = arith.negf %522 : vector<2x32xf32>
    %524 = math.exp %523 : vector<2x32xf32>
    %cst_110 = arith.constant 1.000000e+00 : f32
    %525 = vector.broadcast %cst_110 : f32 to vector<2x32xf32>
    %526 = arith.addf %525, %524 : vector<2x32xf32>
    %527 = arith.divf %525, %526 : vector<2x32xf32>
    %528 = vector.extract_strided_slice %515 {offsets = [0, 64], sizes = [2, 32], strides = [1, 1]} : vector<2x128xf32> to vector<2x32xf32>
    %529 = math.tanh %528 : vector<2x32xf32>
    %530 = vector.extract_strided_slice %515 {offsets = [0, 96], sizes = [2, 32], strides = [1, 1]} : vector<2x128xf32> to vector<2x32xf32>
    %531 = arith.negf %530 : vector<2x32xf32>
    %532 = math.exp %531 : vector<2x32xf32>
    %cst_111 = arith.constant 1.000000e+00 : f32
    %533 = vector.broadcast %cst_111 : f32 to vector<2x32xf32>
    %534 = arith.addf %533, %532 : vector<2x32xf32>
    %535 = arith.divf %533, %534 : vector<2x32xf32>
    %536 = arith.mulf %527, %510 : vector<2x32xf32>
    %537 = arith.mulf %521, %529 : vector<2x32xf32>
    %538 = arith.addf %536, %537 : vector<2x32xf32>
    %539 = math.tanh %538 : vector<2x32xf32>
    %540 = arith.mulf %535, %539 : vector<2x32xf32>
    %541 = vector.extract_strided_slice %426 {offsets = [8, 0], sizes = [2, 128], strides = [1, 1]} : vector<28x128xf32> to vector<2x128xf32>
    %cst_112 = arith.constant dense<0.000000e+00> : vector<2x128xf32>
    %542 = tpu.matmul %540, %422, %cst_112 {dimension_numbers = #tpu.dot_dimension_numbers<[1], [0], [0], [1], [0, 0, 1, 1], [], []>} : vector<2x32xf32>, vector<32x128xf32>, vector<2x128xf32> -> vector<2x128xf32>
    %543 = arith.addf %541, %542 : vector<2x128xf32>
    %544 = vector.extract_strided_slice %543 {offsets = [0, 0], sizes = [2, 32], strides = [1, 1]} : vector<2x128xf32> to vector<2x32xf32>
    %545 = arith.negf %544 : vector<2x32xf32>
    %546 = math.exp %545 : vector<2x32xf32>
    %cst_113 = arith.constant 1.000000e+00 : f32
    %547 = vector.broadcast %cst_113 : f32 to vector<2x32xf32>
    %548 = arith.addf %547, %546 : vector<2x32xf32>
    %549 = arith.divf %547, %548 : vector<2x32xf32>
    %550 = vector.extract_strided_slice %543 {offsets = [0, 32], sizes = [2, 32], strides = [1, 1]} : vector<2x128xf32> to vector<2x32xf32>
    %551 = arith.negf %550 : vector<2x32xf32>
    %552 = math.exp %551 : vector<2x32xf32>
    %cst_114 = arith.constant 1.000000e+00 : f32
    %553 = vector.broadcast %cst_114 : f32 to vector<2x32xf32>
    %554 = arith.addf %553, %552 : vector<2x32xf32>
    %555 = arith.divf %553, %554 : vector<2x32xf32>
    %556 = vector.extract_strided_slice %543 {offsets = [0, 64], sizes = [2, 32], strides = [1, 1]} : vector<2x128xf32> to vector<2x32xf32>
    %557 = math.tanh %556 : vector<2x32xf32>
    %558 = vector.extract_strided_slice %543 {offsets = [0, 96], sizes = [2, 32], strides = [1, 1]} : vector<2x128xf32> to vector<2x32xf32>
    %559 = arith.negf %558 : vector<2x32xf32>
    %560 = math.exp %559 : vector<2x32xf32>
    %cst_115 = arith.constant 1.000000e+00 : f32
    %561 = vector.broadcast %cst_115 : f32 to vector<2x32xf32>
    %562 = arith.addf %561, %560 : vector<2x32xf32>
    %563 = arith.divf %561, %562 : vector<2x32xf32>
    %564 = arith.mulf %555, %538 : vector<2x32xf32>
    %565 = arith.mulf %549, %557 : vector<2x32xf32>
    %566 = arith.addf %564, %565 : vector<2x32xf32>
    %567 = math.tanh %566 : vector<2x32xf32>
    %568 = arith.mulf %563, %567 : vector<2x32xf32>
    %569 = vector.extract_strided_slice %426 {offsets = [10, 0], sizes = [2, 128], strides = [1, 1]} : vector<28x128xf32> to vector<2x128xf32>
    %cst_116 = arith.constant dense<0.000000e+00> : vector<2x128xf32>
    %570 = tpu.matmul %568, %422, %cst_116 {dimension_numbers = #tpu.dot_dimension_numbers<[1], [0], [0], [1], [0, 0, 1, 1], [], []>} : vector<2x32xf32>, vector<32x128xf32>, vector<2x128xf32> -> vector<2x128xf32>
    %571 = arith.addf %569, %570 : vector<2x128xf32>
    %572 = vector.extract_strided_slice %571 {offsets = [0, 0], sizes = [2, 32], strides = [1, 1]} : vector<2x128xf32> to vector<2x32xf32>
    %573 = arith.negf %572 : vector<2x32xf32>
    %574 = math.exp %573 : vector<2x32xf32>
    %cst_117 = arith.constant 1.000000e+00 : f32
    %575 = vector.broadcast %cst_117 : f32 to vector<2x32xf32>
    %576 = arith.addf %575, %574 : vector<2x32xf32>
    %577 = arith.divf %575, %576 : vector<2x32xf32>
    %578 = vector.extract_strided_slice %571 {offsets = [0, 32], sizes = [2, 32], strides = [1, 1]} : vector<2x128xf32> to vector<2x32xf32>
    %579 = arith.negf %578 : vector<2x32xf32>
    %580 = math.exp %579 : vector<2x32xf32>
    %cst_118 = arith.constant 1.000000e+00 : f32
    %581 = vector.broadcast %cst_118 : f32 to vector<2x32xf32>
    %582 = arith.addf %581, %580 : vector<2x32xf32>
    %583 = arith.divf %581, %582 : vector<2x32xf32>
    %584 = vector.extract_strided_slice %571 {offsets = [0, 64], sizes = [2, 32], strides = [1, 1]} : vector<2x128xf32> to vector<2x32xf32>
    %585 = math.tanh %584 : vector<2x32xf32>
    %586 = vector.extract_strided_slice %571 {offsets = [0, 96], sizes = [2, 32], strides = [1, 1]} : vector<2x128xf32> to vector<2x32xf32>
    %587 = arith.negf %586 : vector<2x32xf32>
    %588 = math.exp %587 : vector<2x32xf32>
    %cst_119 = arith.constant 1.000000e+00 : f32
    %589 = vector.broadcast %cst_119 : f32 to vector<2x32xf32>
    %590 = arith.addf %589, %588 : vector<2x32xf32>
    %591 = arith.divf %589, %590 : vector<2x32xf32>
    %592 = arith.mulf %583, %566 : vector<2x32xf32>
    %593 = arith.mulf %577, %585 : vector<2x32xf32>
    %594 = arith.addf %592, %593 : vector<2x32xf32>
    %595 = math.tanh %594 : vector<2x32xf32>
    %596 = arith.mulf %591, %595 : vector<2x32xf32>
    %597 = vector.extract_strided_slice %426 {offsets = [12, 0], sizes = [2, 128], strides = [1, 1]} : vector<28x128xf32> to vector<2x128xf32>
    %cst_120 = arith.constant dense<0.000000e+00> : vector<2x128xf32>
    %598 = tpu.matmul %596, %422, %cst_120 {dimension_numbers = #tpu.dot_dimension_numbers<[1], [0], [0], [1], [0, 0, 1, 1], [], []>} : vector<2x32xf32>, vector<32x128xf32>, vector<2x128xf32> -> vector<2x128xf32>
    %599 = arith.addf %597, %598 : vector<2x128xf32>
    %600 = vector.extract_strided_slice %599 {offsets = [0, 0], sizes = [2, 32], strides = [1, 1]} : vector<2x128xf32> to vector<2x32xf32>
    %601 = arith.negf %600 : vector<2x32xf32>
    %602 = math.exp %601 : vector<2x32xf32>
    %cst_121 = arith.constant 1.000000e+00 : f32
    %603 = vector.broadcast %cst_121 : f32 to vector<2x32xf32>
    %604 = arith.addf %603, %602 : vector<2x32xf32>
    %605 = arith.divf %603, %604 : vector<2x32xf32>
    %606 = vector.extract_strided_slice %599 {offsets = [0, 32], sizes = [2, 32], strides = [1, 1]} : vector<2x128xf32> to vector<2x32xf32>
    %607 = arith.negf %606 : vector<2x32xf32>
    %608 = math.exp %607 : vector<2x32xf32>
    %cst_122 = arith.constant 1.000000e+00 : f32
    %609 = vector.broadcast %cst_122 : f32 to vector<2x32xf32>
    %610 = arith.addf %609, %608 : vector<2x32xf32>
    %611 = arith.divf %609, %610 : vector<2x32xf32>
    %612 = vector.extract_strided_slice %599 {offsets = [0, 64], sizes = [2, 32], strides = [1, 1]} : vector<2x128xf32> to vector<2x32xf32>
    %613 = math.tanh %612 : vector<2x32xf32>
    %614 = vector.extract_strided_slice %599 {offsets = [0, 96], sizes = [2, 32], strides = [1, 1]} : vector<2x128xf32> to vector<2x32xf32>
    %615 = arith.negf %614 : vector<2x32xf32>
    %616 = math.exp %615 : vector<2x32xf32>
    %cst_123 = arith.constant 1.000000e+00 : f32
    %617 = vector.broadcast %cst_123 : f32 to vector<2x32xf32>
    %618 = arith.addf %617, %616 : vector<2x32xf32>
    %619 = arith.divf %617, %618 : vector<2x32xf32>
    %620 = arith.mulf %611, %594 : vector<2x32xf32>
    %621 = arith.mulf %605, %613 : vector<2x32xf32>
    %622 = arith.addf %620, %621 : vector<2x32xf32>
    %623 = math.tanh %622 : vector<2x32xf32>
    %624 = arith.mulf %619, %623 : vector<2x32xf32>
    %625 = vector.extract_strided_slice %426 {offsets = [14, 0], sizes = [2, 128], strides = [1, 1]} : vector<28x128xf32> to vector<2x128xf32>
    %cst_124 = arith.constant dense<0.000000e+00> : vector<2x128xf32>
    %626 = tpu.matmul %624, %422, %cst_124 {dimension_numbers = #tpu.dot_dimension_numbers<[1], [0], [0], [1], [0, 0, 1, 1], [], []>} : vector<2x32xf32>, vector<32x128xf32>, vector<2x128xf32> -> vector<2x128xf32>
    %627 = arith.addf %625, %626 : vector<2x128xf32>
    %628 = vector.extract_strided_slice %627 {offsets = [0, 0], sizes = [2, 32], strides = [1, 1]} : vector<2x128xf32> to vector<2x32xf32>
    %629 = arith.negf %628 : vector<2x32xf32>
    %630 = math.exp %629 : vector<2x32xf32>
    %cst_125 = arith.constant 1.000000e+00 : f32
    %631 = vector.broadcast %cst_125 : f32 to vector<2x32xf32>
    %632 = arith.addf %631, %630 : vector<2x32xf32>
    %633 = arith.divf %631, %632 : vector<2x32xf32>
    %634 = vector.extract_strided_slice %627 {offsets = [0, 32], sizes = [2, 32], strides = [1, 1]} : vector<2x128xf32> to vector<2x32xf32>
    %635 = arith.negf %634 : vector<2x32xf32>
    %636 = math.exp %635 : vector<2x32xf32>
    %cst_126 = arith.constant 1.000000e+00 : f32
    %637 = vector.broadcast %cst_126 : f32 to vector<2x32xf32>
    %638 = arith.addf %637, %636 : vector<2x32xf32>
    %639 = arith.divf %637, %638 : vector<2x32xf32>
    %640 = vector.extract_strided_slice %627 {offsets = [0, 64], sizes = [2, 32], strides = [1, 1]} : vector<2x128xf32> to vector<2x32xf32>
    %641 = math.tanh %640 : vector<2x32xf32>
    %642 = vector.extract_strided_slice %627 {offsets = [0, 96], sizes = [2, 32], strides = [1, 1]} : vector<2x128xf32> to vector<2x32xf32>
    %643 = arith.negf %642 : vector<2x32xf32>
    %644 = math.exp %643 : vector<2x32xf32>
    %cst_127 = arith.constant 1.000000e+00 : f32
    %645 = vector.broadcast %cst_127 : f32 to vector<2x32xf32>
    %646 = arith.addf %645, %644 : vector<2x32xf32>
    %647 = arith.divf %645, %646 : vector<2x32xf32>
    %648 = arith.mulf %639, %622 : vector<2x32xf32>
    %649 = arith.mulf %633, %641 : vector<2x32xf32>
    %650 = arith.addf %648, %649 : vector<2x32xf32>
    %651 = math.tanh %650 : vector<2x32xf32>
    %652 = arith.mulf %647, %651 : vector<2x32xf32>
    %653 = vector.extract_strided_slice %426 {offsets = [16, 0], sizes = [2, 128], strides = [1, 1]} : vector<28x128xf32> to vector<2x128xf32>
    %cst_128 = arith.constant dense<0.000000e+00> : vector<2x128xf32>
    %654 = tpu.matmul %652, %422, %cst_128 {dimension_numbers = #tpu.dot_dimension_numbers<[1], [0], [0], [1], [0, 0, 1, 1], [], []>} : vector<2x32xf32>, vector<32x128xf32>, vector<2x128xf32> -> vector<2x128xf32>
    %655 = arith.addf %653, %654 : vector<2x128xf32>
    %656 = vector.extract_strided_slice %655 {offsets = [0, 0], sizes = [2, 32], strides = [1, 1]} : vector<2x128xf32> to vector<2x32xf32>
    %657 = arith.negf %656 : vector<2x32xf32>
    %658 = math.exp %657 : vector<2x32xf32>
    %cst_129 = arith.constant 1.000000e+00 : f32
    %659 = vector.broadcast %cst_129 : f32 to vector<2x32xf32>
    %660 = arith.addf %659, %658 : vector<2x32xf32>
    %661 = arith.divf %659, %660 : vector<2x32xf32>
    %662 = vector.extract_strided_slice %655 {offsets = [0, 32], sizes = [2, 32], strides = [1, 1]} : vector<2x128xf32> to vector<2x32xf32>
    %663 = arith.negf %662 : vector<2x32xf32>
    %664 = math.exp %663 : vector<2x32xf32>
    %cst_130 = arith.constant 1.000000e+00 : f32
    %665 = vector.broadcast %cst_130 : f32 to vector<2x32xf32>
    %666 = arith.addf %665, %664 : vector<2x32xf32>
    %667 = arith.divf %665, %666 : vector<2x32xf32>
    %668 = vector.extract_strided_slice %655 {offsets = [0, 64], sizes = [2, 32], strides = [1, 1]} : vector<2x128xf32> to vector<2x32xf32>
    %669 = math.tanh %668 : vector<2x32xf32>
    %670 = vector.extract_strided_slice %655 {offsets = [0, 96], sizes = [2, 32], strides = [1, 1]} : vector<2x128xf32> to vector<2x32xf32>
    %671 = arith.negf %670 : vector<2x32xf32>
    %672 = math.exp %671 : vector<2x32xf32>
    %cst_131 = arith.constant 1.000000e+00 : f32
    %673 = vector.broadcast %cst_131 : f32 to vector<2x32xf32>
    %674 = arith.addf %673, %672 : vector<2x32xf32>
    %675 = arith.divf %673, %674 : vector<2x32xf32>
    %676 = arith.mulf %667, %650 : vector<2x32xf32>
    %677 = arith.mulf %661, %669 : vector<2x32xf32>
    %678 = arith.addf %676, %677 : vector<2x32xf32>
    %679 = math.tanh %678 : vector<2x32xf32>
    %680 = arith.mulf %675, %679 : vector<2x32xf32>
    %681 = vector.extract_strided_slice %426 {offsets = [18, 0], sizes = [2, 128], strides = [1, 1]} : vector<28x128xf32> to vector<2x128xf32>
    %cst_132 = arith.constant dense<0.000000e+00> : vector<2x128xf32>
    %682 = tpu.matmul %680, %422, %cst_132 {dimension_numbers = #tpu.dot_dimension_numbers<[1], [0], [0], [1], [0, 0, 1, 1], [], []>} : vector<2x32xf32>, vector<32x128xf32>, vector<2x128xf32> -> vector<2x128xf32>
    %683 = arith.addf %681, %682 : vector<2x128xf32>
    %684 = vector.extract_strided_slice %683 {offsets = [0, 0], sizes = [2, 32], strides = [1, 1]} : vector<2x128xf32> to vector<2x32xf32>
    %685 = arith.negf %684 : vector<2x32xf32>
    %686 = math.exp %685 : vector<2x32xf32>
    %cst_133 = arith.constant 1.000000e+00 : f32
    %687 = vector.broadcast %cst_133 : f32 to vector<2x32xf32>
    %688 = arith.addf %687, %686 : vector<2x32xf32>
    %689 = arith.divf %687, %688 : vector<2x32xf32>
    %690 = vector.extract_strided_slice %683 {offsets = [0, 32], sizes = [2, 32], strides = [1, 1]} : vector<2x128xf32> to vector<2x32xf32>
    %691 = arith.negf %690 : vector<2x32xf32>
    %692 = math.exp %691 : vector<2x32xf32>
    %cst_134 = arith.constant 1.000000e+00 : f32
    %693 = vector.broadcast %cst_134 : f32 to vector<2x32xf32>
    %694 = arith.addf %693, %692 : vector<2x32xf32>
    %695 = arith.divf %693, %694 : vector<2x32xf32>
    %696 = vector.extract_strided_slice %683 {offsets = [0, 64], sizes = [2, 32], strides = [1, 1]} : vector<2x128xf32> to vector<2x32xf32>
    %697 = math.tanh %696 : vector<2x32xf32>
    %698 = vector.extract_strided_slice %683 {offsets = [0, 96], sizes = [2, 32], strides = [1, 1]} : vector<2x128xf32> to vector<2x32xf32>
    %699 = arith.negf %698 : vector<2x32xf32>
    %700 = math.exp %699 : vector<2x32xf32>
    %cst_135 = arith.constant 1.000000e+00 : f32
    %701 = vector.broadcast %cst_135 : f32 to vector<2x32xf32>
    %702 = arith.addf %701, %700 : vector<2x32xf32>
    %703 = arith.divf %701, %702 : vector<2x32xf32>
    %704 = arith.mulf %695, %678 : vector<2x32xf32>
    %705 = arith.mulf %689, %697 : vector<2x32xf32>
    %706 = arith.addf %704, %705 : vector<2x32xf32>
    %707 = math.tanh %706 : vector<2x32xf32>
    %708 = arith.mulf %703, %707 : vector<2x32xf32>
    %709 = vector.extract_strided_slice %426 {offsets = [20, 0], sizes = [2, 128], strides = [1, 1]} : vector<28x128xf32> to vector<2x128xf32>
    %cst_136 = arith.constant dense<0.000000e+00> : vector<2x128xf32>
    %710 = tpu.matmul %708, %422, %cst_136 {dimension_numbers = #tpu.dot_dimension_numbers<[1], [0], [0], [1], [0, 0, 1, 1], [], []>} : vector<2x32xf32>, vector<32x128xf32>, vector<2x128xf32> -> vector<2x128xf32>
    %711 = arith.addf %709, %710 : vector<2x128xf32>
    %712 = vector.extract_strided_slice %711 {offsets = [0, 0], sizes = [2, 32], strides = [1, 1]} : vector<2x128xf32> to vector<2x32xf32>
    %713 = arith.negf %712 : vector<2x32xf32>
    %714 = math.exp %713 : vector<2x32xf32>
    %cst_137 = arith.constant 1.000000e+00 : f32
    %715 = vector.broadcast %cst_137 : f32 to vector<2x32xf32>
    %716 = arith.addf %715, %714 : vector<2x32xf32>
    %717 = arith.divf %715, %716 : vector<2x32xf32>
    %718 = vector.extract_strided_slice %711 {offsets = [0, 32], sizes = [2, 32], strides = [1, 1]} : vector<2x128xf32> to vector<2x32xf32>
    %719 = arith.negf %718 : vector<2x32xf32>
    %720 = math.exp %719 : vector<2x32xf32>
    %cst_138 = arith.constant 1.000000e+00 : f32
    %721 = vector.broadcast %cst_138 : f32 to vector<2x32xf32>
    %722 = arith.addf %721, %720 : vector<2x32xf32>
    %723 = arith.divf %721, %722 : vector<2x32xf32>
    %724 = vector.extract_strided_slice %711 {offsets = [0, 64], sizes = [2, 32], strides = [1, 1]} : vector<2x128xf32> to vector<2x32xf32>
    %725 = math.tanh %724 : vector<2x32xf32>
    %726 = vector.extract_strided_slice %711 {offsets = [0, 96], sizes = [2, 32], strides = [1, 1]} : vector<2x128xf32> to vector<2x32xf32>
    %727 = arith.negf %726 : vector<2x32xf32>
    %728 = math.exp %727 : vector<2x32xf32>
    %cst_139 = arith.constant 1.000000e+00 : f32
    %729 = vector.broadcast %cst_139 : f32 to vector<2x32xf32>
    %730 = arith.addf %729, %728 : vector<2x32xf32>
    %731 = arith.divf %729, %730 : vector<2x32xf32>
    %732 = arith.mulf %723, %706 : vector<2x32xf32>
    %733 = arith.mulf %717, %725 : vector<2x32xf32>
    %734 = arith.addf %732, %733 : vector<2x32xf32>
    %735 = math.tanh %734 : vector<2x32xf32>
    %736 = arith.mulf %731, %735 : vector<2x32xf32>
    %737 = vector.extract_strided_slice %426 {offsets = [22, 0], sizes = [2, 128], strides = [1, 1]} : vector<28x128xf32> to vector<2x128xf32>
    %cst_140 = arith.constant dense<0.000000e+00> : vector<2x128xf32>
    %738 = tpu.matmul %736, %422, %cst_140 {dimension_numbers = #tpu.dot_dimension_numbers<[1], [0], [0], [1], [0, 0, 1, 1], [], []>} : vector<2x32xf32>, vector<32x128xf32>, vector<2x128xf32> -> vector<2x128xf32>
    %739 = arith.addf %737, %738 : vector<2x128xf32>
    %740 = vector.extract_strided_slice %739 {offsets = [0, 0], sizes = [2, 32], strides = [1, 1]} : vector<2x128xf32> to vector<2x32xf32>
    %741 = arith.negf %740 : vector<2x32xf32>
    %742 = math.exp %741 : vector<2x32xf32>
    %cst_141 = arith.constant 1.000000e+00 : f32
    %743 = vector.broadcast %cst_141 : f32 to vector<2x32xf32>
    %744 = arith.addf %743, %742 : vector<2x32xf32>
    %745 = arith.divf %743, %744 : vector<2x32xf32>
    %746 = vector.extract_strided_slice %739 {offsets = [0, 32], sizes = [2, 32], strides = [1, 1]} : vector<2x128xf32> to vector<2x32xf32>
    %747 = arith.negf %746 : vector<2x32xf32>
    %748 = math.exp %747 : vector<2x32xf32>
    %cst_142 = arith.constant 1.000000e+00 : f32
    %749 = vector.broadcast %cst_142 : f32 to vector<2x32xf32>
    %750 = arith.addf %749, %748 : vector<2x32xf32>
    %751 = arith.divf %749, %750 : vector<2x32xf32>
    %752 = vector.extract_strided_slice %739 {offsets = [0, 64], sizes = [2, 32], strides = [1, 1]} : vector<2x128xf32> to vector<2x32xf32>
    %753 = math.tanh %752 : vector<2x32xf32>
    %754 = vector.extract_strided_slice %739 {offsets = [0, 96], sizes = [2, 32], strides = [1, 1]} : vector<2x128xf32> to vector<2x32xf32>
    %755 = arith.negf %754 : vector<2x32xf32>
    %756 = math.exp %755 : vector<2x32xf32>
    %cst_143 = arith.constant 1.000000e+00 : f32
    %757 = vector.broadcast %cst_143 : f32 to vector<2x32xf32>
    %758 = arith.addf %757, %756 : vector<2x32xf32>
    %759 = arith.divf %757, %758 : vector<2x32xf32>
    %760 = arith.mulf %751, %734 : vector<2x32xf32>
    %761 = arith.mulf %745, %753 : vector<2x32xf32>
    %762 = arith.addf %760, %761 : vector<2x32xf32>
    %763 = math.tanh %762 : vector<2x32xf32>
    %764 = arith.mulf %759, %763 : vector<2x32xf32>
    %765 = vector.extract_strided_slice %426 {offsets = [24, 0], sizes = [2, 128], strides = [1, 1]} : vector<28x128xf32> to vector<2x128xf32>
    %cst_144 = arith.constant dense<0.000000e+00> : vector<2x128xf32>
    %766 = tpu.matmul %764, %422, %cst_144 {dimension_numbers = #tpu.dot_dimension_numbers<[1], [0], [0], [1], [0, 0, 1, 1], [], []>} : vector<2x32xf32>, vector<32x128xf32>, vector<2x128xf32> -> vector<2x128xf32>
    %767 = arith.addf %765, %766 : vector<2x128xf32>
    %768 = vector.extract_strided_slice %767 {offsets = [0, 0], sizes = [2, 32], strides = [1, 1]} : vector<2x128xf32> to vector<2x32xf32>
    %769 = arith.negf %768 : vector<2x32xf32>
    %770 = math.exp %769 : vector<2x32xf32>
    %cst_145 = arith.constant 1.000000e+00 : f32
    %771 = vector.broadcast %cst_145 : f32 to vector<2x32xf32>
    %772 = arith.addf %771, %770 : vector<2x32xf32>
    %773 = arith.divf %771, %772 : vector<2x32xf32>
    %774 = vector.extract_strided_slice %767 {offsets = [0, 32], sizes = [2, 32], strides = [1, 1]} : vector<2x128xf32> to vector<2x32xf32>
    %775 = arith.negf %774 : vector<2x32xf32>
    %776 = math.exp %775 : vector<2x32xf32>
    %cst_146 = arith.constant 1.000000e+00 : f32
    %777 = vector.broadcast %cst_146 : f32 to vector<2x32xf32>
    %778 = arith.addf %777, %776 : vector<2x32xf32>
    %779 = arith.divf %777, %778 : vector<2x32xf32>
    %780 = vector.extract_strided_slice %767 {offsets = [0, 64], sizes = [2, 32], strides = [1, 1]} : vector<2x128xf32> to vector<2x32xf32>
    %781 = math.tanh %780 : vector<2x32xf32>
    %782 = vector.extract_strided_slice %767 {offsets = [0, 96], sizes = [2, 32], strides = [1, 1]} : vector<2x128xf32> to vector<2x32xf32>
    %783 = arith.negf %782 : vector<2x32xf32>
    %784 = math.exp %783 : vector<2x32xf32>
    %cst_147 = arith.constant 1.000000e+00 : f32
    %785 = vector.broadcast %cst_147 : f32 to vector<2x32xf32>
    %786 = arith.addf %785, %784 : vector<2x32xf32>
    %787 = arith.divf %785, %786 : vector<2x32xf32>
    %788 = arith.mulf %779, %762 : vector<2x32xf32>
    %789 = arith.mulf %773, %781 : vector<2x32xf32>
    %790 = arith.addf %788, %789 : vector<2x32xf32>
    %791 = math.tanh %790 : vector<2x32xf32>
    %792 = arith.mulf %787, %791 : vector<2x32xf32>
    %793 = vector.extract_strided_slice %426 {offsets = [26, 0], sizes = [2, 128], strides = [1, 1]} : vector<28x128xf32> to vector<2x128xf32>
    %cst_148 = arith.constant dense<0.000000e+00> : vector<2x128xf32>
    %794 = tpu.matmul %792, %422, %cst_148 {dimension_numbers = #tpu.dot_dimension_numbers<[1], [0], [0], [1], [0, 0, 1, 1], [], []>} : vector<2x32xf32>, vector<32x128xf32>, vector<2x128xf32> -> vector<2x128xf32>
    %795 = arith.addf %793, %794 : vector<2x128xf32>
    %796 = vector.extract_strided_slice %795 {offsets = [0, 0], sizes = [2, 32], strides = [1, 1]} : vector<2x128xf32> to vector<2x32xf32>
    %797 = arith.negf %796 : vector<2x32xf32>
    %798 = math.exp %797 : vector<2x32xf32>
    %cst_149 = arith.constant 1.000000e+00 : f32
    %799 = vector.broadcast %cst_149 : f32 to vector<2x32xf32>
    %800 = arith.addf %799, %798 : vector<2x32xf32>
    %801 = arith.divf %799, %800 : vector<2x32xf32>
    %802 = vector.extract_strided_slice %795 {offsets = [0, 32], sizes = [2, 32], strides = [1, 1]} : vector<2x128xf32> to vector<2x32xf32>
    %803 = arith.negf %802 : vector<2x32xf32>
    %804 = math.exp %803 : vector<2x32xf32>
    %cst_150 = arith.constant 1.000000e+00 : f32
    %805 = vector.broadcast %cst_150 : f32 to vector<2x32xf32>
    %806 = arith.addf %805, %804 : vector<2x32xf32>
    %807 = arith.divf %805, %806 : vector<2x32xf32>
    %808 = vector.extract_strided_slice %795 {offsets = [0, 64], sizes = [2, 32], strides = [1, 1]} : vector<2x128xf32> to vector<2x32xf32>
    %809 = math.tanh %808 : vector<2x32xf32>
    %810 = vector.extract_strided_slice %795 {offsets = [0, 96], sizes = [2, 32], strides = [1, 1]} : vector<2x128xf32> to vector<2x32xf32>
    %811 = arith.negf %810 : vector<2x32xf32>
    %812 = math.exp %811 : vector<2x32xf32>
    %cst_151 = arith.constant 1.000000e+00 : f32
    %813 = vector.broadcast %cst_151 : f32 to vector<2x32xf32>
    %814 = arith.addf %813, %812 : vector<2x32xf32>
    %815 = arith.divf %813, %814 : vector<2x32xf32>
    %816 = arith.mulf %807, %790 : vector<2x32xf32>
    %817 = arith.mulf %801, %809 : vector<2x32xf32>
    %818 = arith.addf %816, %817 : vector<2x32xf32>
    %819 = math.tanh %818 : vector<2x32xf32>
    %820 = arith.mulf %815, %819 : vector<2x32xf32>
    %c0_152 = arith.constant 0 : index
    %c0_153 = arith.constant 0 : index
    %821 = vector.load %arg9[%c0_152, %c0_153] : memref<32x5xf32, #tpu.memory_space<vmem>>, vector<32x5xf32>
    %cst_154 = arith.constant dense<0.000000e+00> : vector<2x5xf32>
    %822 = tpu.matmul %820, %821, %cst_154 {dimension_numbers = #tpu.dot_dimension_numbers<[1], [0], [0], [1], [0, 0, 1, 1], [], []>} : vector<2x32xf32>, vector<32x5xf32>, vector<2x5xf32> -> vector<2x5xf32>
    %c0_155 = arith.constant 0 : index
    %c0_156 = arith.constant 0 : index
    %823 = vector.load %arg10[%c0_155, %c0_156] : memref<1x5xf32, #tpu.memory_space<vmem>>, vector<1x5xf32>
    %824 = vector.broadcast %823 : vector<1x5xf32> to vector<2x5xf32>
    %825 = arith.addf %822, %824 : vector<2x5xf32>
    %c0_157 = arith.constant 0 : index
    %c0_158 = arith.constant 0 : index
    %826 = vector.load %arg11[%c0_157, %c0_158] : memref<2x5xf32, #tpu.memory_space<vmem>>, vector<2x5xf32>
    tpu.vector_store %arg11[%c0_157, %c0_158], %825 {strides = array<i32>} : memref<2x5xf32, #tpu.memory_space<vmem>>, vector<2x5xf32>,
    return
  }
}

</mosaic_0001>

<llo_original>
// kernel: cnn_lstm_forward.1
$region0: #{cnn_lstm_forward.1}
  #allocation0 [shape = 'u32[]', space=smem, size = 0x4, offset = 0x4, fixed_abs, tag = 'smem constant byte address 0x4 - core index']
  #allocation1 [shape = 'u32[144,128]{1,0:T(1,128)}', space=vmem, size = 0x12000, scoped, tag = 'internal scratch']
  #allocation2 [shape = 'f32[28,32]{1,0:T(8,128)}', space=vmem, size = 0x4000, scoped, tag = 'scratch operand']
  %s0 = inlined_call_operand.vmem [shape: f32[28,48], index: 0, kind: input, shape index: {}]
  %s1 = inlined_call_operand.vmem [shape: f32[48,32], index: 1, kind: input, shape index: {}]
  %s2 = inlined_call_operand.vmem [shape: f32[1,32], index: 2, kind: input, shape index: {}]
  %s3 = inlined_call_operand.vmem [shape: f32[32,128], index: 3, kind: input, shape index: {}]
  %s4 = inlined_call_operand.vmem [shape: f32[32,128], index: 4, kind: input, shape index: {}]
  %s5 = inlined_call_operand.vmem [shape: f32[1,128], index: 5, kind: input, shape index: {}]
  %s6 = inlined_call_operand.vmem [shape: f32[32,128], index: 6, kind: input, shape index: {}]
  %s7 = inlined_call_operand.vmem [shape: f32[32,128], index: 7, kind: input, shape index: {}]
  %s8 = inlined_call_operand.vmem [shape: f32[1,128], index: 8, kind: input, shape index: {}]
  %s9 = inlined_call_operand.vmem [shape: f32[32,5], index: 9, kind: input, shape index: {}]
  %s10 = inlined_call_operand.vmem [shape: f32[1,5], index: 10, kind: input, shape index: {}]
  %s11 = inlined_call_operand.hbm [shape: f32[2,5], index: 11, kind: output, shape index: {}]
  %s12 = sld [smem:[#allocation0]]
  $region54: #{cnn_lstm_forward.1} parent=0
    _
  %s14 = ssub.s32 1, %s12
  %s15 = scalar_select 0, %s14, %s12
  $region1: #{cnn_lstm_forward.1} parent=0
    #allocation3 [shape = 'u8[1024]{0}', space=vmem, size = 0x400, scoped, tag = 'output window, operand 0, single buffered']
    #allocation4 [shape = 's32[1]{0}', space=sflag, size = 0x4, scoped, tag = 'scoped memory for cnn_lstm_forward.1']
    %16 = vsyncpa [#allocation4], 0
    // Predicated region
    $region2: #{cnn_lstm_forward.1} parent=1 // pred_check
      _
    $region3: #{cnn_lstm_forward.1} parent=1 // pred_check_branch
      %18 = sbr.rel (0) target = $region5
    $region4: #{cnn_lstm_forward.1} parent=1 // pred_region
      _
    $region5: #{cnn_lstm_forward.1} parent=1 // pred_fallthru
      _
    // Predicated region
    $region6: #{cnn_lstm_forward.1} parent=1 // pred_check
      _
    $region7: #{cnn_lstm_forward.1} parent=1 // pred_check_branch
      %20 = sbr.rel (0) target = $region9
    $region8: #{cnn_lstm_forward.1} parent=1 // pred_region
      _
    $region9: #{cnn_lstm_forward.1} parent=1 // pred_fallthru
      _
    // Predicated region
    $region10: #{cnn_lstm_forward.1} parent=1 // pred_check
      _
    $region11: #{cnn_lstm_forward.1} parent=1 // pred_check_branch
      %22 = sbr.rel (0) target = $region13
    $region12: #{cnn_lstm_forward.1} parent=1 // pred_region
      _
    $region13: #{cnn_lstm_forward.1} parent=1 // pred_fallthru
      _
    // Predicated region
    $region14: #{cnn_lstm_forward.1} parent=1 // pred_check
      _
    $region15: #{cnn_lstm_forward.1} parent=1 // pred_check_branch
      %24 = sbr.rel (0) target = $region17
    $region16: #{cnn_lstm_forward.1} parent=1 // pred_region
      _
    $region17: #{cnn_lstm_forward.1} parent=1 // pred_fallthru
      _
    // Predicated region
    $region18: #{cnn_lstm_forward.1} parent=1 // pred_check
      _
    $region19: #{cnn_lstm_forward.1} parent=1 // pred_check_branch
      %26 = sbr.rel (0) target = $region21
    $region20: #{cnn_lstm_forward.1} parent=1 // pred_region
      _
    $region21: #{cnn_lstm_forward.1} parent=1 // pred_fallthru
      _
    // Predicated region
    $region22: #{cnn_lstm_forward.1} parent=1 // pred_check
      _
    $region23: #{cnn_lstm_forward.1} parent=1 // pred_check_branch
      %28 = sbr.rel (0) target = $region25
    $region24: #{cnn_lstm_forward.1} parent=1 // pred_region
      _
    $region25: #{cnn_lstm_forward.1} parent=1 // pred_fallthru
      _
    // Predicated region
    $region26: #{cnn_lstm_forward.1} parent=1 // pred_check
      _
    $region27: #{cnn_lstm_forward.1} parent=1 // pred_check_branch
      %30 = sbr.rel (0) target = $region29
    $region28: #{cnn_lstm_forward.1} parent=1 // pred_region
      _
    $region29: #{cnn_lstm_forward.1} parent=1 // pred_fallthru
      _
    // Predicated region
    $region30: #{cnn_lstm_forward.1} parent=1 // pred_check
      _
    $region31: #{cnn_lstm_forward.1} parent=1 // pred_check_branch
      %32 = sbr.rel (0) target = $region33
    $region32: #{cnn_lstm_forward.1} parent=1 // pred_region
      _
    $region33: #{cnn_lstm_forward.1} parent=1 // pred_fallthru
      _
    // Predicated region
    $region34: #{cnn_lstm_forward.1} parent=1 // pred_check
      _
    $region35: #{cnn_lstm_forward.1} parent=1 // pred_check_branch
      %34 = sbr.rel (0) target = $region37
    $region36: #{cnn_lstm_forward.1} parent=1 // pred_region
      _
    $region37: #{cnn_lstm_forward.1} parent=1 // pred_fallthru
      _
    // Predicated region
    $region38: #{cnn_lstm_forward.1} parent=1 // pred_check
      _
    $region39: #{cnn_lstm_forward.1} parent=1 // pred_check_branch
      %36 = sbr.rel (0) target = $region41
    $region40: #{cnn_lstm_forward.1} parent=1 // pred_region
      _
    $region41: #{cnn_lstm_forward.1} parent=1 // pred_fallthru
      _
    // Predicated region
    $region42: #{cnn_lstm_forward.1} parent=1 // pred_check
      _
    $region43: #{cnn_lstm_forward.1} parent=1 // pred_check_branch
      %38 = sbr.rel (0) target = $region45
    $region44: #{cnn_lstm_forward.1} parent=1 // pred_region
      _
    $region45: #{cnn_lstm_forward.1} parent=1 // pred_fallthru
      _
    %v39 = vld [vmem:[%s0] sm:$0xff]
    %v40 = vld [vmem:[%s0 + $0x8] sm:$0xff]
    %v41 = vld [vmem:[%s0 + $0x10] sm:$0xff]
    %v42 = vld [vmem:[%s0 + $0x18] sm:$0xf]
    %v43 = vld [vmem:[%s1] sm:$0xff]
    %v44 = vld [vmem:[%s1 + $0x8] sm:$0xff]
    %v45 = vld [vmem:[%s1 + $0x10] sm:$0xff]
    %v46 = vld [vmem:[%s1 + $0x18] sm:$0xff]
    %v47 = vld [vmem:[%s1 + $0x20] sm:$0xff]
    %v48 = vld [vmem:[%s1 + $0x28] sm:$0xff]
    %v49 = vld [vmem:[%s2] sm:$0x1]
    %v51 = vlaneseq
    %v52 = vshrl.u32 %v51, 7
    %v53 = vsub.s32 0, %v52
    %v54 = vrot.slane %v49, %v53
    %vm56 = vcmask 392192
    %v58 = vsel %vm56, %v39, 0
    %v61 = vsel %vm56, %v40, 0
    %v64 = vsel %vm56, %v41, 0
    %v67 = vsel %vm56, %v42, 0
    %69 = vmatprep.subr.mxu0 0.0
    %70 = vmatpush1.msra.mxu0 %v43
    %71 = vmatprep.subr.mxu0 0.0
    %72 = vmatpush1.msra.mxu0 %v44
    %73 = vmatprep.subr.mxu0 0.0
    %74 = vmatpush1.msra.mxu0 %v45
    %75 = vmatprep.subr.mxu0 0.0
    %76 = vmatpush1.msra.mxu0 %v46
    %77 = vmatprep.subr.mxu0 0.0
    %78 = vmatpush1.msra.mxu0 %v47
    %79 = vmatprep.subr.mxu0 0.0
    %80 = vmatpush1.msra.mxu0 %v48
    %81 = vmatprep.subr.mxu0 0.0
    %82 = vmatpush1.msra.mxu0 0.0
    %83 = vmatprep.subr.mxu0 0.0
    %84 = vmatpush1.msra.mxu0 0.0
    %85 = vmatprep.subr.mxu0 0.0
    %86 = vmatpush1.msra.mxu0 0.0
    %87 = vmatprep.subr.mxu0 0.0
    %88 = vmatpush1.msra.mxu0 0.0
    %89 = vmatprep.subr.mxu0 0.0
    %90 = vmatpush1.msra.mxu0 0.0
    %91 = vmatprep.subr.mxu0 0.0
    %92 = vmatpush1.msra.mxu0 0.0
    %93 = vmatprep.subr.mxu0 0.0
    %94 = vmatpush1.msra.mxu0 0.0
    %95 = vmatprep.subr.mxu0 0.0
    %96 = vmatpush1.msra.mxu0 0.0
    %97 = vmatprep.subr.mxu0 0.0
    %98 = vmatpush1.msra.mxu0 0.0
    %99 = vmatprep.subr.mxu0 0.0
    %100 = vmatpush1.msra.mxu0 0.0
    %101 = vmatprep.subr.mxu0 0.0
    %102 = vmatpush1.msra.mxu0 0.0
    %103 = vmatprep.subr.mxu0 0.0
    %104 = vmatpush1.msra.mxu0 0.0
    %105 = vmatprep.subr.mxu0 0.0
    %106 = vmatpush1.msra.mxu0 0.0
    %107 = vmatprep.subr.mxu0 0.0
    %108 = vmatpush1.msra.mxu0 0.0
    %109 = vmatprep.subr.mxu0 0.0
    %110 = vmatpush1.msra.mxu0 0.0
    %111 = vmatprep.subr.mxu0 0.0
    %112 = vmatpush1.msra.mxu0 0.0
    %113 = vmatprep.subr.mxu0 0.0
    %114 = vmatpush1.msra.mxu0 0.0
    %115 = vmatprep.subr.mxu0 0.0
    %116 = vmatpush1.msra.mxu0 0.0
    %117 = vmatprep.subr.mxu0 0.0
    %118 = vmatpush1.msra.mxu0 0.0
    %119 = vmatprep.subr.mxu0 0.0
    %120 = vmatpush1.msra.mxu0 0.0
    %121 = vmatprep.subr.mxu0 0.0
    %122 = vmatpush1.msra.mxu0 0.0
    %123 = vmatprep.subr.mxu0 0.0
    %124 = vmatpush1.msra.mxu0 0.0
    %125 = vmatprep.subr.mxu0 0.0
    %126 = vmatpush1.msra.mxu0 0.0
    %127 = vmatprep.subr.mxu0 0.0
    %128 = vmatpush1.msra.mxu0 0.0
    %129 = vmatprep.subr.mxu0 0.0
    %130 = vmatpush1.msra.mxu0 0.0
    %131 = vmatprep.subr.mxu0 0.0
    %132 = vmatpush1.msra.mxu0 0.0
    %133 = vmatprep.mubr.f32.mxu0 0.0
    %134 = vmatmul.mubr.f32.gmra.mrb[0].mxu0 %v58
    %v135 = vpop.f32.mrb[0].mxu0
    %v136 = vadd.f32 %v54, %v135
    %v137 = vpop.f32.mrb[0].mxu0
    %138 = vmatprep.mubr.f32.mxu0 0.0
    %139 = vmatmul.mubr.f32.gmra.mrb[0].mxu0 %v61
    %v140 = vpop.f32.mrb[0].mxu0
    %v141 = vadd.f32 %v54, %v140
    %v142 = vpop.f32.mrb[0].mxu0
    %143 = vmatprep.mubr.f32.mxu0 0.0
    %144 = vmatmul.mubr.f32.gmra.mrb[0].mxu0 %v64
    %v145 = vpop.f32.mrb[0].mxu0
    %v146 = vadd.f32 %v54, %v145
    %v147 = vpop.f32.mrb[0].mxu0
    %148 = vmatprep.mubr.f32.mxu0 0.0
    %149 = vmatmul.mubr.f32.gmra.mrb[0].mxu0 %v67
    %v150 = vpop.f32.mrb[0].mxu0
    %v151 = vadd.f32 %v54, %v150
    %v152 = vpop.f32.mrb[0].mxu0
    %153 = vdwg.mxu0
    %v154 = vld [vmem:[%s3] sm:$0xff]
    %v155 = vld [vmem:[%s3 + $0x8] sm:$0xff]
    %v156 = vld [vmem:[%s3 + $0x10] sm:$0xff]
    %v157 = vld [vmem:[%s3 + $0x18] sm:$0xff]
    %v158 = vld [vmem:[%s4] sm:$0xff]
    %v159 = vld [vmem:[%s4 + $0x8] sm:$0xff]
    %v160 = vld [vmem:[%s4 + $0x10] sm:$0xff]
    %v161 = vld [vmem:[%s4 + $0x18] sm:$0xff]
    %v162 = vld [vmem:[%s5] sm:$0x1]
    %v164 = vlaneseq
    %v165 = vshrl.u32 %v164, 7
    %v166 = vsub.s32 0, %v165
    %v167 = vrot.slane %v162, %v166
    %vm169 = vcmask 261120
    %v171 = vsel %vm169, %v136, 0
    %v174 = vsel %vm169, %v141, 0
    %v177 = vsel %vm169, %v146, 0
    %v180 = vsel %vm169, %v151, 0
    %182 = vmatprep.subr.mxu0 0.0
    %183 = vmatpush1.msra.mxu0 %v154
    %184 = vmatprep.subr.mxu0 0.0
    %185 = vmatpush1.msra.mxu0 %v155
    %186 = vmatprep.subr.mxu0 0.0
    %187 = vmatpush1.msra.mxu0 %v156
    %188 = vmatprep.subr.mxu0 0.0
    %189 = vmatpush1.msra.mxu0 %v157
    %190 = vmatprep.subr.mxu0 0.0
    %191 = vmatpush1.msra.mxu0 0.0
    %192 = vmatprep.subr.mxu0 0.0
    %193 = vmatpush1.msra.mxu0 0.0
    %194 = vmatprep.subr.mxu0 0.0
    %195 = vmatpush1.msra.mxu0 0.0
    %196 = vmatprep.subr.mxu0 0.0
    %197 = vmatpush1.msra.mxu0 0.0
    %198 = vmatprep.subr.mxu0 0.0
    %199 = vmatpush1.msra.mxu0 0.0
    %200 = vmatprep.subr.mxu0 0.0
    %201 = vmatpush1.msra.mxu0 0.0
    %202 = vmatprep.subr.mxu0 0.0
    %203 = vmatpush1.msra.mxu0 0.0
    %204 = vmatprep.subr.mxu0 0.0
    %205 = vmatpush1.msra.mxu0 0.0
    %206 = vmatprep.subr.mxu0 0.0
    %207 = vmatpush1.msra.mxu0 0.0
    %208 = vmatprep.subr.mxu0 0.0
    %209 = vmatpush1.msra.mxu0 0.0
    %210 = vmatprep.subr.mxu0 0.0
    %211 = vmatpush1.msra.mxu0 0.0
    %212 = vmatprep.subr.mxu0 0.0
    %213 = vmatpush1.msra.mxu0 0.0
    %214 = vmatprep.subr.mxu0 0.0
    %215 = vmatpush1.msra.mxu0 0.0
    %216 = vmatprep.subr.mxu0 0.0
    %217 = vmatpush1.msra.mxu0 0.0
    %218 = vmatprep.subr.mxu0 0.0
    %219 = vmatpush1.msra.mxu0 0.0
    %220 = vmatprep.subr.mxu0 0.0
    %221 = vmatpush1.msra.mxu0 0.0
    %222 = vmatprep.subr.mxu0 0.0
    %223 = vmatpush1.msra.mxu0 0.0
    %224 = vmatprep.subr.mxu0 0.0
    %225 = vmatpush1.msra.mxu0 0.0
    %226 = vmatprep.subr.mxu0 0.0
    %227 = vmatpush1.msra.mxu0 0.0
    %228 = vmatprep.subr.mxu0 0.0
    %229 = vmatpush1.msra.mxu0 0.0
    %230 = vmatprep.subr.mxu0 0.0
    %231 = vmatpush1.msra.mxu0 0.0
    %232 = vmatprep.subr.mxu0 0.0
    %233 = vmatpush1.msra.mxu0 0.0
    %234 = vmatprep.subr.mxu0 0.0
    %235 = vmatpush1.msra.mxu0 0.0
    %236 = vmatprep.subr.mxu0 0.0
    %237 = vmatpush1.msra.mxu0 0.0
    %238 = vmatprep.subr.mxu0 0.0
    %239 = vmatpush1.msra.mxu0 0.0
    %240 = vmatprep.subr.mxu0 0.0
    %241 = vmatpush1.msra.mxu0 0.0
    %242 = vmatprep.subr.mxu0 0.0
    %243 = vmatpush1.msra.mxu0 0.0
    %244 = vmatprep.subr.mxu0 0.0
    %245 = vmatpush1.msra.mxu0 0.0
    %246 = vmatprep.mubr.f32.mxu0 0.0
    %247 = vmatmul.mubr.f32.gmra.mrb[0].mxu0 %v171
    %v248 = vpop.f32.mrb[0].mxu0
    %v249 = vadd.f32 %v167, %v248
    %v250 = vpop.f32.mrb[0].mxu0
    %251 = vmatprep.mubr.f32.mxu0 0.0
    %252 = vmatmul.mubr.f32.gmra.mrb[0].mxu0 %v174
    %v253 = vpop.f32.mrb[0].mxu0
    %v254 = vadd.f32 %v167, %v253
    %v255 = vpop.f32.mrb[0].mxu0
    %256 = vmatprep.mubr.f32.mxu0 0.0
    %257 = vmatmul.mubr.f32.gmra.mrb[0].mxu0 %v177
    %v258 = vpop.f32.mrb[0].mxu0
    %v259 = vadd.f32 %v167, %v258
    %v260 = vpop.f32.mrb[0].mxu0
    %261 = vmatprep.mubr.f32.mxu0 0.0
    %262 = vmatmul.mubr.f32.gmra.mrb[0].mxu0 %v180
    %v263 = vpop.f32.mrb[0].mxu0
    %v264 = vadd.f32 %v167, %v263
    %v265 = vpop.f32.mrb[0].mxu0
    %266 = vdwg.mxu0
    %v268 = vsel %vm169, 0.0, 0
    %270 = vmatprep.subr.mxu0 0.0
    %271 = vmatpush1.msra.mxu0 %v158
    %272 = vmatprep.subr.mxu0 0.0
    %273 = vmatpush1.msra.mxu0 %v159
    %274 = vmatprep.subr.mxu0 0.0
    %275 = vmatpush1.msra.mxu0 %v160
    %276 = vmatprep.subr.mxu0 0.0
    %277 = vmatpush1.msra.mxu0 %v161
    %278 = vmatprep.subr.mxu0 0.0
    %279 = vmatpush1.msra.mxu0 0.0
    %280 = vmatprep.subr.mxu0 0.0
    %281 = vmatpush1.msra.mxu0 0.0
    %282 = vmatprep.subr.mxu0 0.0
    %283 = vmatpush1.msra.mxu0 0.0
    %284 = vmatprep.subr.mxu0 0.0
    %285 = vmatpush1.msra.mxu0 0.0
    %286 = vmatprep.subr.mxu0 0.0
    %287 = vmatpush1.msra.mxu0 0.0
    %288 = vmatprep.subr.mxu0 0.0
    %289 = vmatpush1.msra.mxu0 0.0
    %290 = vmatprep.subr.mxu0 0.0
    %291 = vmatpush1.msra.mxu0 0.0
    %292 = vmatprep.subr.mxu0 0.0
    %293 = vmatpush1.msra.mxu0 0.0
    %294 = vmatprep.subr.mxu0 0.0
    %295 = vmatpush1.msra.mxu0 0.0
    %296 = vmatprep.subr.mxu0 0.0
    %297 = vmatpush1.msra.mxu0 0.0
    %298 = vmatprep.subr.mxu0 0.0
    %299 = vmatpush1.msra.mxu0 0.0
    %300 = vmatprep.subr.mxu0 0.0
    %301 = vmatpush1.msra.mxu0 0.0
    %302 = vmatprep.subr.mxu0 0.0
    %303 = vmatpush1.msra.mxu0 0.0
    %304 = vmatprep.subr.mxu0 0.0
    %305 = vmatpush1.msra.mxu0 0.0
    %306 = vmatprep.subr.mxu0 0.0
    %307 = vmatpush1.msra.mxu0 0.0
    %308 = vmatprep.subr.mxu0 0.0
    %309 = vmatpush1.msra.mxu0 0.0
    %310 = vmatprep.subr.mxu0 0.0
    %311 = vmatpush1.msra.mxu0 0.0
    %312 = vmatprep.subr.mxu0 0.0
    %313 = vmatpush1.msra.mxu0 0.0
    %314 = vmatprep.subr.mxu0 0.0
    %315 = vmatpush1.msra.mxu0 0.0
    %316 = vmatprep.subr.mxu0 0.0
    %317 = vmatpush1.msra.mxu0 0.0
    %318 = vmatprep.subr.mxu0 0.0
    %319 = vmatpush1.msra.mxu0 0.0
    %320 = vmatprep.subr.mxu0 0.0
    %321 = vmatpush1.msra.mxu0 0.0
    %322 = vmatprep.subr.mxu0 0.0
    %323 = vmatpush1.msra.mxu0 0.0
    %324 = vmatprep.subr.mxu0 0.0
    %325 = vmatpush1.msra.mxu0 0.0
    %326 = vmatprep.subr.mxu0 0.0
    %327 = vmatpush1.msra.mxu0 0.0
    %328 = vmatprep.subr.mxu0 0.0
    %329 = vmatpush1.msra.mxu0 0.0
    %330 = vmatprep.subr.mxu0 0.0
    %331 = vmatpush1.msra.mxu0 0.0
    %332 = vmatprep.subr.mxu0 0.0
    %333 = vmatpush1.msra.mxu0 0.0
    %334 = vmatprep.mubr.f32.mxu0 0.0
    %335 = vmatmul.mubr.f32.gmra.mrb[0].mxu0 %v268
    %v336 = vpop.f32.mrb[0].mxu0
    %v337 = vadd.f32 0.0, %v336
    %v338 = vpop.f32.mrb[0].mxu0
    %339 = vdwg.mxu0
    %v340 = vadd.f32 %v249, %v337
    %v341 = vxor.u32 %v340, 2147483648
    %v342 = vmul.f32 %v341, 1.442695
    %v343 = vpow.pop %v342
    %v344 = vadd.f32 %v343, 1.0
    %v345 = vrcp.pop %v344
    %v346 = vmul.f32 1.0, %v345
    %v347 = vtanh.pop %v340
    %v348 = vmul.f32 %v346, 0.0
    %350 = vrot.lane.b32.xlu0 %v347, 64
    %v351 = vpop.permute.xlu0 %350
    %v353 = vmul.f32 %v346, %v351
    %355 = vrot.lane.b32.xlu0 %v353, 32
    %v356 = vpop.permute.xlu0 %355
    %v358 = vadd.f32 %v348, %v356
    %v359 = vtanh.pop %v358
    %361 = vrot.lane.b32.xlu0 %v359, 64
    %v362 = vpop.permute.xlu0 %361
    %v364 = vmul.f32 %v346, %v362
    %366 = vrot.lane.b32.xlu0 %v364, 32
    %v367 = vpop.permute.xlu0 %366
    %vm369 = vcmask 254976
    %370 = vst.msk [vmem:[#allocation2] sm:$0x3] %vm369, %v367
    %v371 = vsel %vm169, %v367, 0
    %373 = vmatprep.subr.mxu0 0.0
    %374 = vmatpush1.msra.mxu0 %v158
    %375 = vmatprep.subr.mxu0 0.0
    %376 = vmatpush1.msra.mxu0 %v159
    %377 = vmatprep.subr.mxu0 0.0
    %378 = vmatpush1.msra.mxu0 %v160
    %379 = vmatprep.subr.mxu0 0.0
    %380 = vmatpush1.msra.mxu0 %v161
    %381 = vmatprep.subr.mxu0 0.0
    %382 = vmatpush1.msra.mxu0 0.0
    %383 = vmatprep.subr.mxu0 0.0
    %384 = vmatpush1.msra.mxu0 0.0
    %385 = vmatprep.subr.mxu0 0.0
    %386 = vmatpush1.msra.mxu0 0.0
    %387 = vmatprep.subr.mxu0 0.0
    %388 = vmatpush1.msra.mxu0 0.0
    %389 = vmatprep.subr.mxu0 0.0
    %390 = vmatpush1.msra.mxu0 0.0
    %391 = vmatprep.subr.mxu0 0.0
    %392 = vmatpush1.msra.mxu0 0.0
    %393 = vmatprep.subr.mxu0 0.0
    %394 = vmatpush1.msra.mxu0 0.0
    %395 = vmatprep.subr.mxu0 0.0
    %396 = vmatpush1.msra.mxu0 0.0
    %397 = vmatprep.subr.mxu0 0.0
    %398 = vmatpush1.msra.mxu0 0.0
    %399 = vmatprep.subr.mxu0 0.0
    %400 = vmatpush1.msra.mxu0 0.0
    %401 = vmatprep.subr.mxu0 0.0
    %402 = vmatpush1.msra.mxu0 0.0
    %403 = vmatprep.subr.mxu0 0.0
    %404 = vmatpush1.msra.mxu0 0.0
    %405 = vmatprep.subr.mxu0 0.0
    %406 = vmatpush1.msra.mxu0 0.0
    %407 = vmatprep.subr.mxu0 0.0
    %408 = vmatpush1.msra.mxu0 0.0
    %409 = vmatprep.subr.mxu0 0.0
    %410 = vmatpush1.msra.mxu0 0.0
    %411 = vmatprep.subr.mxu0 0.0
    %412 = vmatpush1.msra.mxu0 0.0
    %413 = vmatprep.subr.mxu0 0.0
    %414 = vmatpush1.msra.mxu0 0.0
    %415 = vmatprep.subr.mxu0 0.0
    %416 = vmatpush1.msra.mxu0 0.0
    %417 = vmatprep.subr.mxu0 0.0
    %418 = vmatpush1.msra.mxu0 0.0
    %419 = vmatprep.subr.mxu0 0.0
    %420 = vmatpush1.msra.mxu0 0.0
    %421 = vmatprep.subr.mxu0 0.0
    %422 = vmatpush1.msra.mxu0 0.0
    %423 = vmatprep.subr.mxu0 0.0
    %424 = vmatpush1.msra.mxu0 0.0
    %425 = vmatprep.subr.mxu0 0.0
    %426 = vmatpush1.msra.mxu0 0.0
    %427 = vmatprep.subr.mxu0 0.0
    %428 = vmatpush1.msra.mxu0 0.0
    %429 = vmatprep.subr.mxu0 0.0
    %430 = vmatpush1.msra.mxu0 0.0
    %431 = vmatprep.subr.mxu0 0.0
    %432 = vmatpush1.msra.mxu0 0.0
    %433 = vmatprep.subr.mxu0 0.0
    %434 = vmatpush1.msra.mxu0 0.0
    %435 = vmatprep.subr.mxu0 0.0
    %436 = vmatpush1.msra.mxu0 0.0
    %437 = vmatprep.mubr.f32.mxu0 0.0
    %438 = vmatmul.mubr.f32.gmra.mrb[0].mxu0 %v371
    %v439 = vpop.f32.mrb[0].mxu0
    %v440 = vadd.f32 0.0, %v439
    %v441 = vpop.f32.mrb[0].mxu0
    %442 = vdwg.mxu0
    %v444 = vrot.slane %v440, 6
    %v446 = vadd.f32 %v249, %v444
    %v447 = vxor.u32 %v446, 2147483648
    %v448 = vmul.f32 %v447, 1.442695
    %v449 = vpow.pop %v448
    %v450 = vadd.f32 %v449, 1.0
    %v451 = vrcp.pop %v450
    %v452 = vmul.f32 1.0, %v451
    %v453 = vtanh.pop %v446
    %v455 = vrot.slane %v358, 6
    %v457 = vmul.f32 %v452, %v455
    %459 = vrot.lane.b32.xlu0 %v453, 64
    %v460 = vpop.permute.xlu0 %459
    %v462 = vmul.f32 %v452, %v460
    %464 = vrot.lane.b32.xlu0 %v462, 32
    %v465 = vpop.permute.xlu0 %464
    %v467 = vadd.f32 %v457, %v465
    %v468 = vtanh.pop %v467
    %470 = vrot.lane.b32.xlu0 %v468, 64
    %v471 = vpop.permute.xlu0 %470
    %v473 = vmul.f32 %v452, %v471
    %475 = vrot.lane.b32.xlu0 %v473, 32
    %v476 = vpop.permute.xlu0 %475
    %vm478 = vcmask 257026
    %479 = vst.msk [vmem:[#allocation2] sm:$0xc] %vm478, %v476
    %v480 = vrot.slane %v473, 2
    %481 = vrot.lane.b32.xlu0 %v480, 32
    %v482 = vpop.permute.xlu0 %481
    %v483 = vsel %vm169, %v482, 0
    %485 = vmatprep.subr.mxu0 0.0
    %486 = vmatpush1.msra.mxu0 %v158
    %487 = vmatprep.subr.mxu0 0.0
    %488 = vmatpush1.msra.mxu0 %v159
    %489 = vmatprep.subr.mxu0 0.0
    %490 = vmatpush1.msra.mxu0 %v160
    %491 = vmatprep.subr.mxu0 0.0
    %492 = vmatpush1.msra.mxu0 %v161
    %493 = vmatprep.subr.mxu0 0.0
    %494 = vmatpush1.msra.mxu0 0.0
    %495 = vmatprep.subr.mxu0 0.0
    %496 = vmatpush1.msra.mxu0 0.0
    %497 = vmatprep.subr.mxu0 0.0
    %498 = vmatpush1.msra.mxu0 0.0
    %499 = vmatprep.subr.mxu0 0.0
    %500 = vmatpush1.msra.mxu0 0.0
    %501 = vmatprep.subr.mxu0 0.0
    %502 = vmatpush1.msra.mxu0 0.0
    %503 = vmatprep.subr.mxu0 0.0
    %504 = vmatpush1.msra.mxu0 0.0
    %505 = vmatprep.subr.mxu0 0.0
    %506 = vmatpush1.msra.mxu0 0.0
    %507 = vmatprep.subr.mxu0 0.0
    %508 = vmatpush1.msra.mxu0 0.0
    %509 = vmatprep.subr.mxu0 0.0
    %510 = vmatpush1.msra.mxu0 0.0
    %511 = vmatprep.subr.mxu0 0.0
    %512 = vmatpush1.msra.mxu0 0.0
    %513 = vmatprep.subr.mxu0 0.0
    %514 = vmatpush1.msra.mxu0 0.0
    %515 = vmatprep.subr.mxu0 0.0
    %516 = vmatpush1.msra.mxu0 0.0
    %517 = vmatprep.subr.mxu0 0.0
    %518 = vmatpush1.msra.mxu0 0.0
    %519 = vmatprep.subr.mxu0 0.0
    %520 = vmatpush1.msra.mxu0 0.0
    %521 = vmatprep.subr.mxu0 0.0
    %522 = vmatpush1.msra.mxu0 0.0
    %523 = vmatprep.subr.mxu0 0.0
    %524 = vmatpush1.msra.mxu0 0.0
    %525 = vmatprep.subr.mxu0 0.0
    %526 = vmatpush1.msra.mxu0 0.0
    %527 = vmatprep.subr.mxu0 0.0
    %528 = vmatpush1.msra.mxu0 0.0
    %529 = vmatprep.subr.mxu0 0.0
    %530 = vmatpush1.msra.mxu0 0.0
    %531 = vmatprep.subr.mxu0 0.0
    %532 = vmatpush1.msra.mxu0 0.0
    %533 = vmatprep.subr.mxu0 0.0
    %534 = vmatpush1.msra.mxu0 0.0
    %535 = vmatprep.subr.mxu0 0.0
    %536 = vmatpush1.msra.mxu0 0.0
    %537 = vmatprep.subr.mxu0 0.0
    %538 = vmatpush1.msra.mxu0 0.0
    %539 = vmatprep.subr.mxu0 0.0
    %540 = vmatpush1.msra.mxu0 0.0
    %541 = vmatprep.subr.mxu0 0.0
    %542 = vmatpush1.msra.mxu0 0.0
    %543 = vmatprep.subr.mxu0 0.0
    %544 = vmatpush1.msra.mxu0 0.0
    %545 = vmatprep.subr.mxu0 0.0
    %546 = vmatpush1.msra.mxu0 0.0
    %547 = vmatprep.subr.mxu0 0.0
    %548 = vmatpush1.msra.mxu0 0.0
    %549 = vmatprep.mubr.f32.mxu0 0.0
    %550 = vmatmul.mubr.f32.gmra.mrb[0].mxu0 %v483
    %v551 = vpop.f32.mrb[0].mxu0
    %v552 = vadd.f32 0.0, %v551
    %v553 = vpop.f32.mrb[0].mxu0
    %554 = vdwg.mxu0
    %v556 = vrot.slane %v552, 4
    %v558 = vadd.f32 %v249, %v556
    %v559 = vxor.u32 %v558, 2147483648
    %v560 = vmul.f32 %v559, 1.442695
    %v561 = vpow.pop %v560
    %v562 = vadd.f32 %v561, 1.0
    %v563 = vrcp.pop %v562
    %v564 = vmul.f32 1.0, %v563
    %v565 = vtanh.pop %v558
    %v567 = vrot.slane %v467, 6
    %v569 = vmul.f32 %v564, %v567
    %571 = vrot.lane.b32.xlu0 %v565, 64
    %v572 = vpop.permute.xlu0 %571
    %v574 = vmul.f32 %v564, %v572
    %576 = vrot.lane.b32.xlu0 %v574, 32
    %v577 = vpop.permute.xlu0 %576
    %v579 = vadd.f32 %v569, %v577
    %v580 = vtanh.pop %v579
    %582 = vrot.lane.b32.xlu0 %v580, 64
    %v583 = vpop.permute.xlu0 %582
    %v585 = vmul.f32 %v564, %v583
    %587 = vrot.lane.b32.xlu0 %v585, 32
    %v588 = vpop.permute.xlu0 %587
    %vm590 = vcmask 259076
    %591 = vst.msk [vmem:[#allocation2] sm:$0x30] %vm590, %v588
    %v592 = vrot.slane %v585, 4
    %593 = vrot.lane.b32.xlu0 %v592, 32
    %v594 = vpop.permute.xlu0 %593
    %v595 = vsel %vm169, %v594, 0
    %597 = vmatprep.subr.mxu0 0.0
    %598 = vmatpush1.msra.mxu0 %v158
    %599 = vmatprep.subr.mxu0 0.0
    %600 = vmatpush1.msra.mxu0 %v159
    %601 = vmatprep.subr.mxu0 0.0
    %602 = vmatpush1.msra.mxu0 %v160
    %603 = vmatprep.subr.mxu0 0.0
    %604 = vmatpush1.msra.mxu0 %v161
    %605 = vmatprep.subr.mxu0 0.0
    %606 = vmatpush1.msra.mxu0 0.0
    %607 = vmatprep.subr.mxu0 0.0
    %608 = vmatpush1.msra.mxu0 0.0
    %609 = vmatprep.subr.mxu0 0.0
    %610 = vmatpush1.msra.mxu0 0.0
    %611 = vmatprep.subr.mxu0 0.0
    %612 = vmatpush1.msra.mxu0 0.0
    %613 = vmatprep.subr.mxu0 0.0
    %614 = vmatpush1.msra.mxu0 0.0
    %615 = vmatprep.subr.mxu0 0.0
    %616 = vmatpush1.msra.mxu0 0.0
    %617 = vmatprep.subr.mxu0 0.0
    %618 = vmatpush1.msra.mxu0 0.0
    %619 = vmatprep.subr.mxu0 0.0
    %620 = vmatpush1.msra.mxu0 0.0
    %621 = vmatprep.subr.mxu0 0.0
    %622 = vmatpush1.msra.mxu0 0.0
    %623 = vmatprep.subr.mxu0 0.0
    %624 = vmatpush1.msra.mxu0 0.0
    %625 = vmatprep.subr.mxu0 0.0
    %626 = vmatpush1.msra.mxu0 0.0
    %627 = vmatprep.subr.mxu0 0.0
    %628 = vmatpush1.msra.mxu0 0.0
    %629 = vmatprep.subr.mxu0 0.0
    %630 = vmatpush1.msra.mxu0 0.0
    %631 = vmatprep.subr.mxu0 0.0
    %632 = vmatpush1.msra.mxu0 0.0
    %633 = vmatprep.subr.mxu0 0.0
    %634 = vmatpush1.msra.mxu0 0.0
    %635 = vmatprep.subr.mxu0 0.0
    %636 = vmatpush1.msra.mxu0 0.0
    %637 = vmatprep.subr.mxu0 0.0
    %638 = vmatpush1.msra.mxu0 0.0
    %639 = vmatprep.subr.mxu0 0.0
    %640 = vmatpush1.msra.mxu0 0.0
    %641 = vmatprep.subr.mxu0 0.0
    %642 = vmatpush1.msra.mxu0 0.0
    %643 = vmatprep.subr.mxu0 0.0
    %644 = vmatpush1.msra.mxu0 0.0
    %645 = vmatprep.subr.mxu0 0.0
    %646 = vmatpush1.msra.mxu0 0.0
    %647 = vmatprep.subr.mxu0 0.0
    %648 = vmatpush1.msra.mxu0 0.0
    %649 = vmatprep.subr.mxu0 0.0
    %650 = vmatpush1.msra.mxu0 0.0
    %651 = vmatprep.subr.mxu0 0.0
    %652 = vmatpush1.msra.mxu0 0.0
    %653 = vmatprep.subr.mxu0 0.0
    %654 = vmatpush1.msra.mxu0 0.0
    %655 = vmatprep.subr.mxu0 0.0
    %656 = vmatpush1.msra.mxu0 0.0
    %657 = vmatprep.subr.mxu0 0.0
    %658 = vmatpush1.msra.mxu0 0.0
    %659 = vmatprep.subr.mxu0 0.0
    %660 = vmatpush1.msra.mxu0 0.0
    %661 = vmatprep.mubr.f32.mxu0 0.0
    %662 = vmatmul.mubr.f32.gmra.mrb[0].mxu0 %v595
    %v663 = vpop.f32.mrb[0].mxu0
    %v664 = vadd.f32 0.0, %v663
    %v665 = vpop.f32.mrb[0].mxu0
    %666 = vdwg.mxu0
    %v668 = vrot.slane %v664, 2
    %v670 = vadd.f32 %v249, %v668
    %v671 = vxor.u32 %v670, 2147483648
    %v672 = vmul.f32 %v671, 1.442695
    %v673 = vpow.pop %v672
    %v674 = vadd.f32 %v673, 1.0
    %v675 = vrcp.pop %v674
    %v676 = vmul.f32 1.0, %v675
    %v677 = vtanh.pop %v670
    %v679 = vrot.slane %v579, 6
    %v681 = vmul.f32 %v676, %v679
    %683 = vrot.lane.b32.xlu0 %v677, 64
    %v684 = vpop.permute.xlu0 %683
    %v686 = vmul.f32 %v676, %v684
    %688 = vrot.lane.b32.xlu0 %v686, 32
    %v689 = vpop.permute.xlu0 %688
    %v691 = vadd.f32 %v681, %v689
    %v692 = vtanh.pop %v691
    %694 = vrot.lane.b32.xlu0 %v692, 64
    %v695 = vpop.permute.xlu0 %694
    %v697 = vmul.f32 %v676, %v695
    %699 = vrot.lane.b32.xlu0 %v697, 32
    %v700 = vpop.permute.xlu0 %699
    %vm702 = vcmask 261126
    %703 = vst.msk [vmem:[#allocation2] sm:$0xc0] %vm702, %v700
    %v704 = vrot.slane %v697, 6
    %705 = vrot.lane.b32.xlu0 %v704, 32
    %v706 = vpop.permute.xlu0 %705
    %v707 = vsel %vm169, %v706, 0
    %709 = vmatprep.subr.mxu0 0.0
    %710 = vmatpush1.msra.mxu0 %v158
    %711 = vmatprep.subr.mxu0 0.0
    %712 = vmatpush1.msra.mxu0 %v159
    %713 = vmatprep.subr.mxu0 0.0
    %714 = vmatpush1.msra.mxu0 %v160
    %715 = vmatprep.subr.mxu0 0.0
    %716 = vmatpush1.msra.mxu0 %v161
    %717 = vmatprep.subr.mxu0 0.0
    %718 = vmatpush1.msra.mxu0 0.0
    %719 = vmatprep.subr.mxu0 0.0
    %720 = vmatpush1.msra.mxu0 0.0
    %721 = vmatprep.subr.mxu0 0.0
    %722 = vmatpush1.msra.mxu0 0.0
    %723 = vmatprep.subr.mxu0 0.0
    %724 = vmatpush1.msra.mxu0 0.0
    %725 = vmatprep.subr.mxu0 0.0
    %726 = vmatpush1.msra.mxu0 0.0
    %727 = vmatprep.subr.mxu0 0.0
    %728 = vmatpush1.msra.mxu0 0.0
    %729 = vmatprep.subr.mxu0 0.0
    %730 = vmatpush1.msra.mxu0 0.0
    %731 = vmatprep.subr.mxu0 0.0
    %732 = vmatpush1.msra.mxu0 0.0
    %733 = vmatprep.subr.mxu0 0.0
    %734 = vmatpush1.msra.mxu0 0.0
    %735 = vmatprep.subr.mxu0 0.0
    %736 = vmatpush1.msra.mxu0 0.0
    %737 = vmatprep.subr.mxu0 0.0
    %738 = vmatpush1.msra.mxu0 0.0
    %739 = vmatprep.subr.mxu0 0.0
    %740 = vmatpush1.msra.mxu0 0.0
    %741 = vmatprep.subr.mxu0 0.0
    %742 = vmatpush1.msra.mxu0 0.0
    %743 = vmatprep.subr.mxu0 0.0
    %744 = vmatpush1.msra.mxu0 0.0
    %745 = vmatprep.subr.mxu0 0.0
    %746 = vmatpush1.msra.mxu0 0.0
    %747 = vmatprep.subr.mxu0 0.0
    %748 = vmatpush1.msra.mxu0 0.0
    %749 = vmatprep.subr.mxu0 0.0
    %750 = vmatpush1.msra.mxu0 0.0
    %751 = vmatprep.subr.mxu0 0.0
    %752 = vmatpush1.msra.mxu0 0.0
    %753 = vmatprep.subr.mxu0 0.0
    %754 = vmatpush1.msra.mxu0 0.0
    %755 = vmatprep.subr.mxu0 0.0
    %756 = vmatpush1.msra.mxu0 0.0
    %757 = vmatprep.subr.mxu0 0.0
    %758 = vmatpush1.msra.mxu0 0.0
    %759 = vmatprep.subr.mxu0 0.0
    %760 = vmatpush1.msra.mxu0 0.0
    %761 = vmatprep.subr.mxu0 0.0
    %762 = vmatpush1.msra.mxu0 0.0
    %763 = vmatprep.subr.mxu0 0.0
    %764 = vmatpush1.msra.mxu0 0.0
    %765 = vmatprep.subr.mxu0 0.0
    %766 = vmatpush1.msra.mxu0 0.0
    %767 = vmatprep.subr.mxu0 0.0
    %768 = vmatpush1.msra.mxu0 0.0
    %769 = vmatprep.subr.mxu0 0.0
    %770 = vmatpush1.msra.mxu0 0.0
    %771 = vmatprep.subr.mxu0 0.0
    %772 = vmatpush1.msra.mxu0 0.0
    %773 = vmatprep.mubr.f32.mxu0 0.0
    %774 = vmatmul.mubr.f32.gmra.mrb[0].mxu0 %v707
    %v775 = vpop.f32.mrb[0].mxu0
    %v776 = vadd.f32 0.0, %v775
    %v777 = vpop.f32.mrb[0].mxu0
    %778 = vdwg.mxu0
    %v779 = vadd.f32 %v254, %v776
    %v780 = vxor.u32 %v779, 2147483648
    %v781 = vmul.f32 %v780, 1.442695
    %v782 = vpow.pop %v781
    %v783 = vadd.f32 %v782, 1.0
    %v784 = vrcp.pop %v783
    %v785 = vmul.f32 1.0, %v784
    %v786 = vtanh.pop %v779
    %v788 = vrot.slane %v691, 6
    %v790 = vmul.f32 %v785, %v788
    %792 = vrot.lane.b32.xlu0 %v786, 64
    %v793 = vpop.permute.xlu0 %792
    %v795 = vmul.f32 %v785, %v793
    %797 = vrot.lane.b32.xlu0 %v795, 32
    %v798 = vpop.permute.xlu0 %797
    %v800 = vadd.f32 %v790, %v798
    %v801 = vtanh.pop %v800
    %803 = vrot.lane.b32.xlu0 %v801, 64
    %v804 = vpop.permute.xlu0 %803
    %v806 = vmul.f32 %v785, %v804
    %808 = vrot.lane.b32.xlu0 %v806, 32
    %v809 = vpop.permute.xlu0 %808
    %811 = vst.msk [vmem:[#allocation2 + $0x8] sm:$0x3] %vm369, %v809
    %v812 = vsel %vm169, %v809, 0
    %814 = vmatprep.subr.mxu0 0.0
    %815 = vmatpush1.msra.mxu0 %v158
    %816 = vmatprep.subr.mxu0 0.0
    %817 = vmatpush1.msra.mxu0 %v159
    %818 = vmatprep.subr.mxu0 0.0
    %819 = vmatpush1.msra.mxu0 %v160
    %820 = vmatprep.subr.mxu0 0.0
    %821 = vmatpush1.msra.mxu0 %v161
    %822 = vmatprep.subr.mxu0 0.0
    %823 = vmatpush1.msra.mxu0 0.0
    %824 = vmatprep.subr.mxu0 0.0
    %825 = vmatpush1.msra.mxu0 0.0
    %826 = vmatprep.subr.mxu0 0.0
    %827 = vmatpush1.msra.mxu0 0.0
    %828 = vmatprep.subr.mxu0 0.0
    %829 = vmatpush1.msra.mxu0 0.0
    %830 = vmatprep.subr.mxu0 0.0
    %831 = vmatpush1.msra.mxu0 0.0
    %832 = vmatprep.subr.mxu0 0.0
    %833 = vmatpush1.msra.mxu0 0.0
    %834 = vmatprep.subr.mxu0 0.0
    %835 = vmatpush1.msra.mxu0 0.0
    %836 = vmatprep.subr.mxu0 0.0
    %837 = vmatpush1.msra.mxu0 0.0
    %838 = vmatprep.subr.mxu0 0.0
    %839 = vmatpush1.msra.mxu0 0.0
    %840 = vmatprep.subr.mxu0 0.0
    %841 = vmatpush1.msra.mxu0 0.0
    %842 = vmatprep.subr.mxu0 0.0
    %843 = vmatpush1.msra.mxu0 0.0
    %844 = vmatprep.subr.mxu0 0.0
    %845 = vmatpush1.msra.mxu0 0.0
    %846 = vmatprep.subr.mxu0 0.0
    %847 = vmatpush1.msra.mxu0 0.0
    %848 = vmatprep.subr.mxu0 0.0
    %849 = vmatpush1.msra.mxu0 0.0
    %850 = vmatprep.subr.mxu0 0.0
    %851 = vmatpush1.msra.mxu0 0.0
    %852 = vmatprep.subr.mxu0 0.0
    %853 = vmatpush1.msra.mxu0 0.0
    %854 = vmatprep.subr.mxu0 0.0
    %855 = vmatpush1.msra.mxu0 0.0
    %856 = vmatprep.subr.mxu0 0.0
    %857 = vmatpush1.msra.mxu0 0.0
    %858 = vmatprep.subr.mxu0 0.0
    %859 = vmatpush1.msra.mxu0 0.0
    %860 = vmatprep.subr.mxu0 0.0
    %861 = vmatpush1.msra.mxu0 0.0
    %862 = vmatprep.subr.mxu0 0.0
    %863 = vmatpush1.msra.mxu0 0.0
    %864 = vmatprep.subr.mxu0 0.0
    %865 = vmatpush1.msra.mxu0 0.0
    %866 = vmatprep.subr.mxu0 0.0
    %867 = vmatpush1.msra.mxu0 0.0
    %868 = vmatprep.subr.mxu0 0.0
    %869 = vmatpush1.msra.mxu0 0.0
    %870 = vmatprep.subr.mxu0 0.0
    %871 = vmatpush1.msra.mxu0 0.0
    %872 = vmatprep.subr.mxu0 0.0
    %873 = vmatpush1.msra.mxu0 0.0
    %874 = vmatprep.subr.mxu0 0.0
    %875 = vmatpush1.msra.mxu0 0.0
    %876 = vmatprep.subr.mxu0 0.0
    %877 = vmatpush1.msra.mxu0 0.0
    %878 = vmatprep.mubr.f32.mxu0 0.0
    %879 = vmatmul.mubr.f32.gmra.mrb[0].mxu0 %v812
    %v880 = vpop.f32.mrb[0].mxu0
    %v881 = vadd.f32 0.0, %v880
    %v882 = vpop.f32.mrb[0].mxu0
    %883 = vdwg.mxu0
    %v885 = vrot.slane %v881, 6
    %v887 = vadd.f32 %v254, %v885
    %v888 = vxor.u32 %v887, 2147483648
    %v889 = vmul.f32 %v888, 1.442695
    %v890 = vpow.pop %v889
    %v891 = vadd.f32 %v890, 1.0
    %v892 = vrcp.pop %v891
    %v893 = vmul.f32 1.0, %v892
    %v894 = vtanh.pop %v887
    %v896 = vrot.slane %v800, 6
    %v898 = vmul.f32 %v893, %v896
    %900 = vrot.lane.b32.xlu0 %v894, 64
    %v901 = vpop.permute.xlu0 %900
    %v903 = vmul.f32 %v893, %v901
    %905 = vrot.lane.b32.xlu0 %v903, 32
    %v906 = vpop.permute.xlu0 %905
    %v908 = vadd.f32 %v898, %v906
    %v909 = vtanh.pop %v908
    %911 = vrot.lane.b32.xlu0 %v909, 64
    %v912 = vpop.permute.xlu0 %911
    %v914 = vmul.f32 %v893, %v912
    %916 = vrot.lane.b32.xlu0 %v914, 32
    %v917 = vpop.permute.xlu0 %916
    %919 = vst.msk [vmem:[#allocation2 + $0x8] sm:$0xc] %vm478, %v917
    %v920 = vrot.slane %v914, 2
    %921 = vrot.lane.b32.xlu0 %v920, 32
    %v922 = vpop.permute.xlu0 %921
    %v923 = vsel %vm169, %v922, 0
    %925 = vmatprep.subr.mxu0 0.0
    %926 = vmatpush1.msra.mxu0 %v158
    %927 = vmatprep.subr.mxu0 0.0
    %928 = vmatpush1.msra.mxu0 %v159
    %929 = vmatprep.subr.mxu0 0.0
    %930 = vmatpush1.msra.mxu0 %v160
    %931 = vmatprep.subr.mxu0 0.0
    %932 = vmatpush1.msra.mxu0 %v161
    %933 = vmatprep.subr.mxu0 0.0
    %934 = vmatpush1.msra.mxu0 0.0
    %935 = vmatprep.subr.mxu0 0.0
    %936 = vmatpush1.msra.mxu0 0.0
    %937 = vmatprep.subr.mxu0 0.0
    %938 = vmatpush1.msra.mxu0 0.0
    %939 = vmatprep.subr.mxu0 0.0
    %940 = vmatpush1.msra.mxu0 0.0
    %941 = vmatprep.subr.mxu0 0.0
    %942 = vmatpush1.msra.mxu0 0.0
    %943 = vmatprep.subr.mxu0 0.0
    %944 = vmatpush1.msra.mxu0 0.0
    %945 = vmatprep.subr.mxu0 0.0
    %946 = vmatpush1.msra.mxu0 0.0
    %947 = vmatprep.subr.mxu0 0.0
    %948 = vmatpush1.msra.mxu0 0.0
    %949 = vmatprep.subr.mxu0 0.0
    %950 = vmatpush1.msra.mxu0 0.0
    %951 = vmatprep.subr.mxu0 0.0
    %952 = vmatpush1.msra.mxu0 0.0
    %953 = vmatprep.subr.mxu0 0.0
    %954 = vmatpush1.msra.mxu0 0.0
    %955 = vmatprep.subr.mxu0 0.0
    %956 = vmatpush1.msra.mxu0 0.0
    %957 = vmatprep.subr.mxu0 0.0
    %958 = vmatpush1.msra.mxu0 0.0
    %959 = vmatprep.subr.mxu0 0.0
    %960 = vmatpush1.msra.mxu0 0.0
    %961 = vmatprep.subr.mxu0 0.0
    %962 = vmatpush1.msra.mxu0 0.0
    %963 = vmatprep.subr.mxu0 0.0
    %964 = vmatpush1.msra.mxu0 0.0
    %965 = vmatprep.subr.mxu0 0.0
    %966 = vmatpush1.msra.mxu0 0.0
    %967 = vmatprep.subr.mxu0 0.0
    %968 = vmatpush1.msra.mxu0 0.0
    %969 = vmatprep.subr.mxu0 0.0
    %970 = vmatpush1.msra.mxu0 0.0
    %971 = vmatprep.subr.mxu0 0.0
    %972 = vmatpush1.msra.mxu0 0.0
    %973 = vmatprep.subr.mxu0 0.0
    %974 = vmatpush1.msra.mxu0 0.0
    %975 = vmatprep.subr.mxu0 0.0
    %976 = vmatpush1.msra.mxu0 0.0
    %977 = vmatprep.subr.mxu0 0.0
    %978 = vmatpush1.msra.mxu0 0.0
    %979 = vmatprep.subr.mxu0 0.0
    %980 = vmatpush1.msra.mxu0 0.0
    %981 = vmatprep.subr.mxu0 0.0
    %982 = vmatpush1.msra.mxu0 0.0
    %983 = vmatprep.subr.mxu0 0.0
    %984 = vmatpush1.msra.mxu0 0.0
    %985 = vmatprep.subr.mxu0 0.0
    %986 = vmatpush1.msra.mxu0 0.0
    %987 = vmatprep.subr.mxu0 0.0
    %988 = vmatpush1.msra.mxu0 0.0
    %989 = vmatprep.mubr.f32.mxu0 0.0
    %990 = vmatmul.mubr.f32.gmra.mrb[0].mxu0 %v923
    %v991 = vpop.f32.mrb[0].mxu0
    %v992 = vadd.f32 0.0, %v991
    %v993 = vpop.f32.mrb[0].mxu0
    %994 = vdwg.mxu0
    %v996 = vrot.slane %v992, 4
    %v998 = vadd.f32 %v254, %v996
    %v999 = vxor.u32 %v998, 2147483648
    %v1000 = vmul.f32 %v999, 1.442695
    %v1001 = vpow.pop %v1000
    %v1002 = vadd.f32 %v1001, 1.0
    %v1003 = vrcp.pop %v1002
    %v1004 = vmul.f32 1.0, %v1003
    %v1005 = vtanh.pop %v998
    %v1007 = vrot.slane %v908, 6
    %v1009 = vmul.f32 %v1004, %v1007
    %1011 = vrot.lane.b32.xlu0 %v1005, 64
    %v1012 = vpop.permute.xlu0 %1011
    %v1014 = vmul.f32 %v1004, %v1012
    %1016 = vrot.lane.b32.xlu0 %v1014, 32
    %v1017 = vpop.permute.xlu0 %1016
    %v1019 = vadd.f32 %v1009, %v1017
    %v1020 = vtanh.pop %v1019
    %1022 = vrot.lane.b32.xlu0 %v1020, 64
    %v1023 = vpop.permute.xlu0 %1022
    %v1025 = vmul.f32 %v1004, %v1023
    %1027 = vrot.lane.b32.xlu0 %v1025, 32
    %v1028 = vpop.permute.xlu0 %1027
    %1030 = vst.msk [vmem:[#allocation2 + $0x8] sm:$0x30] %vm590, %v1028
    %v1031 = vrot.slane %v1025, 4
    %1032 = vrot.lane.b32.xlu0 %v1031, 32
    %v1033 = vpop.permute.xlu0 %1032
    %v1034 = vsel %vm169, %v1033, 0
    %1036 = vmatprep.subr.mxu0 0.0
    %1037 = vmatpush1.msra.mxu0 %v158
    %1038 = vmatprep.subr.mxu0 0.0
    %1039 = vmatpush1.msra.mxu0 %v159
    %1040 = vmatprep.subr.mxu0 0.0
    %1041 = vmatpush1.msra.mxu0 %v160
    %1042 = vmatprep.subr.mxu0 0.0
    %1043 = vmatpush1.msra.mxu0 %v161
    %1044 = vmatprep.subr.mxu0 0.0
    %1045 = vmatpush1.msra.mxu0 0.0
    %1046 = vmatprep.subr.mxu0 0.0
    %1047 = vmatpush1.msra.mxu0 0.0
    %1048 = vmatprep.subr.mxu0 0.0
    %1049 = vmatpush1.msra.mxu0 0.0
    %1050 = vmatprep.subr.mxu0 0.0
    %1051 = vmatpush1.msra.mxu0 0.0
    %1052 = vmatprep.subr.mxu0 0.0
    %1053 = vmatpush1.msra.mxu0 0.0
    %1054 = vmatprep.subr.mxu0 0.0
    %1055 = vmatpush1.msra.mxu0 0.0
    %1056 = vmatprep.subr.mxu0 0.0
    %1057 = vmatpush1.msra.mxu0 0.0
    %1058 = vmatprep.subr.mxu0 0.0
    %1059 = vmatpush1.msra.mxu0 0.0
    %1060 = vmatprep.subr.mxu0 0.0
    %1061 = vmatpush1.msra.mxu0 0.0
    %1062 = vmatprep.subr.mxu0 0.0
    %1063 = vmatpush1.msra.mxu0 0.0
    %1064 = vmatprep.subr.mxu0 0.0
    %1065 = vmatpush1.msra.mxu0 0.0
    %1066 = vmatprep.subr.mxu0 0.0
    %1067 = vmatpush1.msra.mxu0 0.0
    %1068 = vmatprep.subr.mxu0 0.0
    %1069 = vmatpush1.msra.mxu0 0.0
    %1070 = vmatprep.subr.mxu0 0.0
    %1071 = vmatpush1.msra.mxu0 0.0
    %1072 = vmatprep.subr.mxu0 0.0
    %1073 = vmatpush1.msra.mxu0 0.0
    %1074 = vmatprep.subr.mxu0 0.0
    %1075 = vmatpush1.msra.mxu0 0.0
    %1076 = vmatprep.subr.mxu0 0.0
    %1077 = vmatpush1.msra.mxu0 0.0
    %1078 = vmatprep.subr.mxu0 0.0
    %1079 = vmatpush1.msra.mxu0 0.0
    %1080 = vmatprep.subr.mxu0 0.0
    %1081 = vmatpush1.msra.mxu0 0.0
    %1082 = vmatprep.subr.mxu0 0.0
    %1083 = vmatpush1.msra.mxu0 0.0
    %1084 = vmatprep.subr.mxu0 0.0
    %1085 = vmatpush1.msra.mxu0 0.0
    %1086 = vmatprep.subr.mxu0 0.0
    %1087 = vmatpush1.msra.mxu0 0.0
    %1088 = vmatprep.subr.mxu0 0.0
    %1089 = vmatpush1.msra.mxu0 0.0
    %1090 = vmatprep.subr.mxu0 0.0
    %1091 = vmatpush1.msra.mxu0 0.0
    %1092 = vmatprep.subr.mxu0 0.0
    %1093 = vmatpush1.msra.mxu0 0.0
    %1094 = vmatprep.subr.mxu0 0.0
    %1095 = vmatpush1.msra.mxu0 0.0
    %1096 = vmatprep.subr.mxu0 0.0
    %1097 = vmatpush1.msra.mxu0 0.0
    %1098 = vmatprep.subr.mxu0 0.0
    %1099 = vmatpush1.msra.mxu0 0.0
    %1100 = vmatprep.mubr.f32.mxu0 0.0
    %1101 = vmatmul.mubr.f32.gmra.mrb[0].mxu0 %v1034
    %v1102 = vpop.f32.mrb[0].mxu0
    %v1103 = vadd.f32 0.0, %v1102
    %v1104 = vpop.f32.mrb[0].mxu0
    %1105 = vdwg.mxu0
    %v1107 = vrot.slane %v1103, 2
    %v1109 = vadd.f32 %v254, %v1107
    %v1110 = vxor.u32 %v1109, 2147483648
    %v1111 = vmul.f32 %v1110, 1.442695
    %v1112 = vpow.pop %v1111
    %v1113 = vadd.f32 %v1112, 1.0
    %v1114 = vrcp.pop %v1113
    %v1115 = vmul.f32 1.0, %v1114
    %v1116 = vtanh.pop %v1109
    %v1118 = vrot.slane %v1019, 6
    %v1120 = vmul.f32 %v1115, %v1118
    %1122 = vrot.lane.b32.xlu0 %v1116, 64
    %v1123 = vpop.permute.xlu0 %1122
    %v1125 = vmul.f32 %v1115, %v1123
    %1127 = vrot.lane.b32.xlu0 %v1125, 32
    %v1128 = vpop.permute.xlu0 %1127
    %v1130 = vadd.f32 %v1120, %v1128
    %v1131 = vtanh.pop %v1130
    %1133 = vrot.lane.b32.xlu0 %v1131, 64
    %v1134 = vpop.permute.xlu0 %1133
    %v1136 = vmul.f32 %v1115, %v1134
    %1138 = vrot.lane.b32.xlu0 %v1136, 32
    %v1139 = vpop.permute.xlu0 %1138
    %1141 = vst.msk [vmem:[#allocation2 + $0x8] sm:$0xc0] %vm702, %v1139
    %v1142 = vrot.slane %v1136, 6
    %1143 = vrot.lane.b32.xlu0 %v1142, 32
    %v1144 = vpop.permute.xlu0 %1143
    %v1145 = vsel %vm169, %v1144, 0
    %1147 = vmatprep.subr.mxu0 0.0
    %1148 = vmatpush1.msra.mxu0 %v158
    %1149 = vmatprep.subr.mxu0 0.0
    %1150 = vmatpush1.msra.mxu0 %v159
    %1151 = vmatprep.subr.mxu0 0.0
    %1152 = vmatpush1.msra.mxu0 %v160
    %1153 = vmatprep.subr.mxu0 0.0
    %1154 = vmatpush1.msra.mxu0 %v161
    %1155 = vmatprep.subr.mxu0 0.0
    %1156 = vmatpush1.msra.mxu0 0.0
    %1157 = vmatprep.subr.mxu0 0.0
    %1158 = vmatpush1.msra.mxu0 0.0
    %1159 = vmatprep.subr.mxu0 0.0
    %1160 = vmatpush1.msra.mxu0 0.0
    %1161 = vmatprep.subr.mxu0 0.0
    %1162 = vmatpush1.msra.mxu0 0.0
    %1163 = vmatprep.subr.mxu0 0.0
    %1164 = vmatpush1.msra.mxu0 0.0
    %1165 = vmatprep.subr.mxu0 0.0
    %1166 = vmatpush1.msra.mxu0 0.0
    %1167 = vmatprep.subr.mxu0 0.0
    %1168 = vmatpush1.msra.mxu0 0.0
    %1169 = vmatprep.subr.mxu0 0.0
    %1170 = vmatpush1.msra.mxu0 0.0
    %1171 = vmatprep.subr.mxu0 0.0
    %1172 = vmatpush1.msra.mxu0 0.0
    %1173 = vmatprep.subr.mxu0 0.0
    %1174 = vmatpush1.msra.mxu0 0.0
    %1175 = vmatprep.subr.mxu0 0.0
    %1176 = vmatpush1.msra.mxu0 0.0
    %1177 = vmatprep.subr.mxu0 0.0
    %1178 = vmatpush1.msra.mxu0 0.0
    %1179 = vmatprep.subr.mxu0 0.0
    %1180 = vmatpush1.msra.mxu0 0.0
    %1181 = vmatprep.subr.mxu0 0.0
    %1182 = vmatpush1.msra.mxu0 0.0
    %1183 = vmatprep.subr.mxu0 0.0
    %1184 = vmatpush1.msra.mxu0 0.0
    %1185 = vmatprep.subr.mxu0 0.0
    %1186 = vmatpush1.msra.mxu0 0.0
    %1187 = vmatprep.subr.mxu0 0.0
    %1188 = vmatpush1.msra.mxu0 0.0
    %1189 = vmatprep.subr.mxu0 0.0
    %1190 = vmatpush1.msra.mxu0 0.0
    %1191 = vmatprep.subr.mxu0 0.0
    %1192 = vmatpush1.msra.mxu0 0.0
    %1193 = vmatprep.subr.mxu0 0.0
    %1194 = vmatpush1.msra.mxu0 0.0
    %1195 = vmatprep.subr.mxu0 0.0
    %1196 = vmatpush1.msra.mxu0 0.0
    %1197 = vmatprep.subr.mxu0 0.0
    %1198 = vmatpush1.msra.mxu0 0.0
    %1199 = vmatprep.subr.mxu0 0.0
    %1200 = vmatpush1.msra.mxu0 0.0
    %1201 = vmatprep.subr.mxu0 0.0
    %1202 = vmatpush1.msra.mxu0 0.0
    %1203 = vmatprep.subr.mxu0 0.0
    %1204 = vmatpush1.msra.mxu0 0.0
    %1205 = vmatprep.subr.mxu0 0.0
    %1206 = vmatpush1.msra.mxu0 0.0
    %1207 = vmatprep.subr.mxu0 0.0
    %1208 = vmatpush1.msra.mxu0 0.0
    %1209 = vmatprep.subr.mxu0 0.0
    %1210 = vmatpush1.msra.mxu0 0.0
    %1211 = vmatprep.mubr.f32.mxu0 0.0
    %1212 = vmatmul.mubr.f32.gmra.mrb[0].mxu0 %v1145
    %v1213 = vpop.f32.mrb[0].mxu0
    %v1214 = vadd.f32 0.0, %v1213
    %v1215 = vpop.f32.mrb[0].mxu0
    %1216 = vdwg.mxu0
    %v1217 = vadd.f32 %v259, %v1214
    %v1218 = vxor.u32 %v1217, 2147483648
    %v1219 = vmul.f32 %v1218, 1.442695
    %v1220 = vpow.pop %v1219
    %v1221 = vadd.f32 %v1220, 1.0
    %v1222 = vrcp.pop %v1221
    %v1223 = vmul.f32 1.0, %v1222
    %v1224 = vtanh.pop %v1217
    %v1226 = vrot.slane %v1130, 6
    %v1228 = vmul.f32 %v1223, %v1226
    %1230 = vrot.lane.b32.xlu0 %v1224, 64
    %v1231 = vpop.permute.xlu0 %1230
    %v1233 = vmul.f32 %v1223, %v1231
    %1235 = vrot.lane.b32.xlu0 %v1233, 32
    %v1236 = vpop.permute.xlu0 %1235
    %v1238 = vadd.f32 %v1228, %v1236
    %v1239 = vtanh.pop %v1238
    %1241 = vrot.lane.b32.xlu0 %v1239, 64
    %v1242 = vpop.permute.xlu0 %1241
    %v1244 = vmul.f32 %v1223, %v1242
    %1246 = vrot.lane.b32.xlu0 %v1244, 32
    %v1247 = vpop.permute.xlu0 %1246
    %1249 = vst.msk [vmem:[#allocation2 + $0x10] sm:$0x3] %vm369, %v1247
    %v1250 = vsel %vm169, %v1247, 0
    %1252 = vmatprep.subr.mxu0 0.0
    %1253 = vmatpush1.msra.mxu0 %v158
    %1254 = vmatprep.subr.mxu0 0.0
    %1255 = vmatpush1.msra.mxu0 %v159
    %1256 = vmatprep.subr.mxu0 0.0
    %1257 = vmatpush1.msra.mxu0 %v160
    %1258 = vmatprep.subr.mxu0 0.0
    %1259 = vmatpush1.msra.mxu0 %v161
    %1260 = vmatprep.subr.mxu0 0.0
    %1261 = vmatpush1.msra.mxu0 0.0
    %1262 = vmatprep.subr.mxu0 0.0
    %1263 = vmatpush1.msra.mxu0 0.0
    %1264 = vmatprep.subr.mxu0 0.0
    %1265 = vmatpush1.msra.mxu0 0.0
    %1266 = vmatprep.subr.mxu0 0.0
    %1267 = vmatpush1.msra.mxu0 0.0
    %1268 = vmatprep.subr.mxu0 0.0
    %1269 = vmatpush1.msra.mxu0 0.0
    %1270 = vmatprep.subr.mxu0 0.0
    %1271 = vmatpush1.msra.mxu0 0.0
    %1272 = vmatprep.subr.mxu0 0.0
    %1273 = vmatpush1.msra.mxu0 0.0
    %1274 = vmatprep.subr.mxu0 0.0
    %1275 = vmatpush1.msra.mxu0 0.0
    %1276 = vmatprep.subr.mxu0 0.0
    %1277 = vmatpush1.msra.mxu0 0.0
    %1278 = vmatprep.subr.mxu0 0.0
    %1279 = vmatpush1.msra.mxu0 0.0
    %1280 = vmatprep.subr.mxu0 0.0
    %1281 = vmatpush1.msra.mxu0 0.0
    %1282 = vmatprep.subr.mxu0 0.0
    %1283 = vmatpush1.msra.mxu0 0.0
    %1284 = vmatprep.subr.mxu0 0.0
    %1285 = vmatpush1.msra.mxu0 0.0
    %1286 = vmatprep.subr.mxu0 0.0
    %1287 = vmatpush1.msra.mxu0 0.0
    %1288 = vmatprep.subr.mxu0 0.0
    %1289 = vmatpush1.msra.mxu0 0.0
    %1290 = vmatprep.subr.mxu0 0.0
    %1291 = vmatpush1.msra.mxu0 0.0
    %1292 = vmatprep.subr.mxu0 0.0
    %1293 = vmatpush1.msra.mxu0 0.0
    %1294 = vmatprep.subr.mxu0 0.0
    %1295 = vmatpush1.msra.mxu0 0.0
    %1296 = vmatprep.subr.mxu0 0.0
    %1297 = vmatpush1.msra.mxu0 0.0
    %1298 = vmatprep.subr.mxu0 0.0
    %1299 = vmatpush1.msra.mxu0 0.0
    %1300 = vmatprep.subr.mxu0 0.0
    %1301 = vmatpush1.msra.mxu0 0.0
    %1302 = vmatprep.subr.mxu0 0.0
    %1303 = vmatpush1.msra.mxu0 0.0
    %1304 = vmatprep.subr.mxu0 0.0
    %1305 = vmatpush1.msra.mxu0 0.0
    %1306 = vmatprep.subr.mxu0 0.0
    %1307 = vmatpush1.msra.mxu0 0.0
    %1308 = vmatprep.subr.mxu0 0.0
    %1309 = vmatpush1.msra.mxu0 0.0
    %1310 = vmatprep.subr.mxu0 0.0
    %1311 = vmatpush1.msra.mxu0 0.0
    %1312 = vmatprep.subr.mxu0 0.0
    %1313 = vmatpush1.msra.mxu0 0.0
    %1314 = vmatprep.subr.mxu0 0.0
    %1315 = vmatpush1.msra.mxu0 0.0
    %1316 = vmatprep.mubr.f32.mxu0 0.0
    %1317 = vmatmul.mubr.f32.gmra.mrb[0].mxu0 %v1250
    %v1318 = vpop.f32.mrb[0].mxu0
    %v1319 = vadd.f32 0.0, %v1318
    %v1320 = vpop.f32.mrb[0].mxu0
    %1321 = vdwg.mxu0
    %v1323 = vrot.slane %v1319, 6
    %v1325 = vadd.f32 %v259, %v1323
    %v1326 = vxor.u32 %v1325, 2147483648
    %v1327 = vmul.f32 %v1326, 1.442695
    %v1328 = vpow.pop %v1327
    %v1329 = vadd.f32 %v1328, 1.0
    %v1330 = vrcp.pop %v1329
    %v1331 = vmul.f32 1.0, %v1330
    %v1332 = vtanh.pop %v1325
    %v1334 = vrot.slane %v1238, 6
    %v1336 = vmul.f32 %v1331, %v1334
    %1338 = vrot.lane.b32.xlu0 %v1332, 64
    %v1339 = vpop.permute.xlu0 %1338
    %v1341 = vmul.f32 %v1331, %v1339
    %1343 = vrot.lane.b32.xlu0 %v1341, 32
    %v1344 = vpop.permute.xlu0 %1343
    %v1346 = vadd.f32 %v1336, %v1344
    %v1347 = vtanh.pop %v1346
    %1349 = vrot.lane.b32.xlu0 %v1347, 64
    %v1350 = vpop.permute.xlu0 %1349
    %v1352 = vmul.f32 %v1331, %v1350
    %1354 = vrot.lane.b32.xlu0 %v1352, 32
    %v1355 = vpop.permute.xlu0 %1354
    %1357 = vst.msk [vmem:[#allocation2 + $0x10] sm:$0xc] %vm478, %v1355
    %v1358 = vrot.slane %v1352, 2
    %1359 = vrot.lane.b32.xlu0 %v1358, 32
    %v1360 = vpop.permute.xlu0 %1359
    %v1361 = vsel %vm169, %v1360, 0
    %1363 = vmatprep.subr.mxu0 0.0
    %1364 = vmatpush1.msra.mxu0 %v158
    %1365 = vmatprep.subr.mxu0 0.0
    %1366 = vmatpush1.msra.mxu0 %v159
    %1367 = vmatprep.subr.mxu0 0.0
    %1368 = vmatpush1.msra.mxu0 %v160
    %1369 = vmatprep.subr.mxu0 0.0
    %1370 = vmatpush1.msra.mxu0 %v161
    %1371 = vmatprep.subr.mxu0 0.0
    %1372 = vmatpush1.msra.mxu0 0.0
    %1373 = vmatprep.subr.mxu0 0.0
    %1374 = vmatpush1.msra.mxu0 0.0
    %1375 = vmatprep.subr.mxu0 0.0
    %1376 = vmatpush1.msra.mxu0 0.0
    %1377 = vmatprep.subr.mxu0 0.0
    %1378 = vmatpush1.msra.mxu0 0.0
    %1379 = vmatprep.subr.mxu0 0.0
    %1380 = vmatpush1.msra.mxu0 0.0
    %1381 = vmatprep.subr.mxu0 0.0
    %1382 = vmatpush1.msra.mxu0 0.0
    %1383 = vmatprep.subr.mxu0 0.0
    %1384 = vmatpush1.msra.mxu0 0.0
    %1385 = vmatprep.subr.mxu0 0.0
    %1386 = vmatpush1.msra.mxu0 0.0
    %1387 = vmatprep.subr.mxu0 0.0
    %1388 = vmatpush1.msra.mxu0 0.0
    %1389 = vmatprep.subr.mxu0 0.0
    %1390 = vmatpush1.msra.mxu0 0.0
    %1391 = vmatprep.subr.mxu0 0.0
    %1392 = vmatpush1.msra.mxu0 0.0
    %1393 = vmatprep.subr.mxu0 0.0
    %1394 = vmatpush1.msra.mxu0 0.0
    %1395 = vmatprep.subr.mxu0 0.0
    %1396 = vmatpush1.msra.mxu0 0.0
    %1397 = vmatprep.subr.mxu0 0.0
    %1398 = vmatpush1.msra.mxu0 0.0
    %1399 = vmatprep.subr.mxu0 0.0
    %1400 = vmatpush1.msra.mxu0 0.0
    %1401 = vmatprep.subr.mxu0 0.0
    %1402 = vmatpush1.msra.mxu0 0.0
    %1403 = vmatprep.subr.mxu0 0.0
    %1404 = vmatpush1.msra.mxu0 0.0
    %1405 = vmatprep.subr.mxu0 0.0
    %1406 = vmatpush1.msra.mxu0 0.0
    %1407 = vmatprep.subr.mxu0 0.0
    %1408 = vmatpush1.msra.mxu0 0.0
    %1409 = vmatprep.subr.mxu0 0.0
    %1410 = vmatpush1.msra.mxu0 0.0
    %1411 = vmatprep.subr.mxu0 0.0
    %1412 = vmatpush1.msra.mxu0 0.0
    %1413 = vmatprep.subr.mxu0 0.0
    %1414 = vmatpush1.msra.mxu0 0.0
    %1415 = vmatprep.subr.mxu0 0.0
    %1416 = vmatpush1.msra.mxu0 0.0
    %1417 = vmatprep.subr.mxu0 0.0
    %1418 = vmatpush1.msra.mxu0 0.0
    %1419 = vmatprep.subr.mxu0 0.0
    %1420 = vmatpush1.msra.mxu0 0.0
    %1421 = vmatprep.subr.mxu0 0.0
    %1422 = vmatpush1.msra.mxu0 0.0
    %1423 = vmatprep.subr.mxu0 0.0
    %1424 = vmatpush1.msra.mxu0 0.0
    %1425 = vmatprep.subr.mxu0 0.0
    %1426 = vmatpush1.msra.mxu0 0.0
    %1427 = vmatprep.mubr.f32.mxu0 0.0
    %1428 = vmatmul.mubr.f32.gmra.mrb[0].mxu0 %v1361
    %v1429 = vpop.f32.mrb[0].mxu0
    %v1430 = vadd.f32 0.0, %v1429
    %v1431 = vpop.f32.mrb[0].mxu0
    %1432 = vdwg.mxu0
    %v1434 = vrot.slane %v1430, 4
    %v1436 = vadd.f32 %v259, %v1434
    %v1437 = vxor.u32 %v1436, 2147483648
    %v1438 = vmul.f32 %v1437, 1.442695
    %v1439 = vpow.pop %v1438
    %v1440 = vadd.f32 %v1439, 1.0
    %v1441 = vrcp.pop %v1440
    %v1442 = vmul.f32 1.0, %v1441
    %v1443 = vtanh.pop %v1436
    %v1445 = vrot.slane %v1346, 6
    %v1447 = vmul.f32 %v1442, %v1445
    %1449 = vrot.lane.b32.xlu0 %v1443, 64
    %v1450 = vpop.permute.xlu0 %1449
    %v1452 = vmul.f32 %v1442, %v1450
    %1454 = vrot.lane.b32.xlu0 %v1452, 32
    %v1455 = vpop.permute.xlu0 %1454
    %v1457 = vadd.f32 %v1447, %v1455
    %v1458 = vtanh.pop %v1457
    %1460 = vrot.lane.b32.xlu0 %v1458, 64
    %v1461 = vpop.permute.xlu0 %1460
    %v1463 = vmul.f32 %v1442, %v1461
    %1465 = vrot.lane.b32.xlu0 %v1463, 32
    %v1466 = vpop.permute.xlu0 %1465
    %1468 = vst.msk [vmem:[#allocation2 + $0x10] sm:$0x30] %vm590, %v1466
    %v1469 = vrot.slane %v1463, 4
    %1470 = vrot.lane.b32.xlu0 %v1469, 32
    %v1471 = vpop.permute.xlu0 %1470
    %v1472 = vsel %vm169, %v1471, 0
    %1474 = vmatprep.subr.mxu0 0.0
    %1475 = vmatpush1.msra.mxu0 %v158
    %1476 = vmatprep.subr.mxu0 0.0
    %1477 = vmatpush1.msra.mxu0 %v159
    %1478 = vmatprep.subr.mxu0 0.0
    %1479 = vmatpush1.msra.mxu0 %v160
    %1480 = vmatprep.subr.mxu0 0.0
    %1481 = vmatpush1.msra.mxu0 %v161
    %1482 = vmatprep.subr.mxu0 0.0
    %1483 = vmatpush1.msra.mxu0 0.0
    %1484 = vmatprep.subr.mxu0 0.0
    %1485 = vmatpush1.msra.mxu0 0.0
    %1486 = vmatprep.subr.mxu0 0.0
    %1487 = vmatpush1.msra.mxu0 0.0
    %1488 = vmatprep.subr.mxu0 0.0
    %1489 = vmatpush1.msra.mxu0 0.0
    %1490 = vmatprep.subr.mxu0 0.0
    %1491 = vmatpush1.msra.mxu0 0.0
    %1492 = vmatprep.subr.mxu0 0.0
    %1493 = vmatpush1.msra.mxu0 0.0
    %1494 = vmatprep.subr.mxu0 0.0
    %1495 = vmatpush1.msra.mxu0 0.0
    %1496 = vmatprep.subr.mxu0 0.0
    %1497 = vmatpush1.msra.mxu0 0.0
    %1498 = vmatprep.subr.mxu0 0.0
    %1499 = vmatpush1.msra.mxu0 0.0
    %1500 = vmatprep.subr.mxu0 0.0
    %1501 = vmatpush1.msra.mxu0 0.0
    %1502 = vmatprep.subr.mxu0 0.0
    %1503 = vmatpush1.msra.mxu0 0.0
    %1504 = vmatprep.subr.mxu0 0.0
    %1505 = vmatpush1.msra.mxu0 0.0
    %1506 = vmatprep.subr.mxu0 0.0
    %1507 = vmatpush1.msra.mxu0 0.0
    %1508 = vmatprep.subr.mxu0 0.0
    %1509 = vmatpush1.msra.mxu0 0.0
    %1510 = vmatprep.subr.mxu0 0.0
    %1511 = vmatpush1.msra.mxu0 0.0
    %1512 = vmatprep.subr.mxu0 0.0
    %1513 = vmatpush1.msra.mxu0 0.0
    %1514 = vmatprep.subr.mxu0 0.0
    %1515 = vmatpush1.msra.mxu0 0.0
    %1516 = vmatprep.subr.mxu0 0.0
    %1517 = vmatpush1.msra.mxu0 0.0
    %1518 = vmatprep.subr.mxu0 0.0
    %1519 = vmatpush1.msra.mxu0 0.0
    %1520 = vmatprep.subr.mxu0 0.0
    %1521 = vmatpush1.msra.mxu0 0.0
    %1522 = vmatprep.subr.mxu0 0.0
    %1523 = vmatpush1.msra.mxu0 0.0
    %1524 = vmatprep.subr.mxu0 0.0
    %1525 = vmatpush1.msra.mxu0 0.0
    %1526 = vmatprep.subr.mxu0 0.0
    %1527 = vmatpush1.msra.mxu0 0.0
    %1528 = vmatprep.subr.mxu0 0.0
    %1529 = vmatpush1.msra.mxu0 0.0
    %1530 = vmatprep.subr.mxu0 0.0
    %1531 = vmatpush1.msra.mxu0 0.0
    %1532 = vmatprep.subr.mxu0 0.0
    %1533 = vmatpush1.msra.mxu0 0.0
    %1534 = vmatprep.subr.mxu0 0.0
    %1535 = vmatpush1.msra.mxu0 0.0
    %1536 = vmatprep.subr.mxu0 0.0
    %1537 = vmatpush1.msra.mxu0 0.0
    %1538 = vmatprep.mubr.f32.mxu0 0.0
    %1539 = vmatmul.mubr.f32.gmra.mrb[0].mxu0 %v1472
    %v1540 = vpop.f32.mrb[0].mxu0
    %v1541 = vadd.f32 0.0, %v1540
    %v1542 = vpop.f32.mrb[0].mxu0
    %1543 = vdwg.mxu0
    %v1545 = vrot.slane %v1541, 2
    %v1547 = vadd.f32 %v259, %v1545
    %v1548 = vxor.u32 %v1547, 2147483648
    %v1549 = vmul.f32 %v1548, 1.442695
    %v1550 = vpow.pop %v1549
    %v1551 = vadd.f32 %v1550, 1.0
    %v1552 = vrcp.pop %v1551
    %v1553 = vmul.f32 1.0, %v1552
    %v1554 = vtanh.pop %v1547
    %v1556 = vrot.slane %v1457, 6
    %v1558 = vmul.f32 %v1553, %v1556
    %1560 = vrot.lane.b32.xlu0 %v1554, 64
    %v1561 = vpop.permute.xlu0 %1560
    %v1563 = vmul.f32 %v1553, %v1561
    %1565 = vrot.lane.b32.xlu0 %v1563, 32
    %v1566 = vpop.permute.xlu0 %1565
    %v1568 = vadd.f32 %v1558, %v1566
    %v1569 = vtanh.pop %v1568
    %1571 = vrot.lane.b32.xlu0 %v1569, 64
    %v1572 = vpop.permute.xlu0 %1571
    %v1574 = vmul.f32 %v1553, %v1572
    %1576 = vrot.lane.b32.xlu0 %v1574, 32
    %v1577 = vpop.permute.xlu0 %1576
    %1579 = vst.msk [vmem:[#allocation2 + $0x10] sm:$0xc0] %vm702, %v1577
    %v1580 = vrot.slane %v1574, 6
    %1581 = vrot.lane.b32.xlu0 %v1580, 32
    %v1582 = vpop.permute.xlu0 %1581
    %v1583 = vsel %vm169, %v1582, 0
    %1585 = vmatprep.subr.mxu0 0.0
    %1586 = vmatpush1.msra.mxu0 %v158
    %1587 = vmatprep.subr.mxu0 0.0
    %1588 = vmatpush1.msra.mxu0 %v159
    %1589 = vmatprep.subr.mxu0 0.0
    %1590 = vmatpush1.msra.mxu0 %v160
    %1591 = vmatprep.subr.mxu0 0.0
    %1592 = vmatpush1.msra.mxu0 %v161
    %1593 = vmatprep.subr.mxu0 0.0
    %1594 = vmatpush1.msra.mxu0 0.0
    %1595 = vmatprep.subr.mxu0 0.0
    %1596 = vmatpush1.msra.mxu0 0.0
    %1597 = vmatprep.subr.mxu0 0.0
    %1598 = vmatpush1.msra.mxu0 0.0
    %1599 = vmatprep.subr.mxu0 0.0
    %1600 = vmatpush1.msra.mxu0 0.0
    %1601 = vmatprep.subr.mxu0 0.0
    %1602 = vmatpush1.msra.mxu0 0.0
    %1603 = vmatprep.subr.mxu0 0.0
    %1604 = vmatpush1.msra.mxu0 0.0
    %1605 = vmatprep.subr.mxu0 0.0
    %1606 = vmatpush1.msra.mxu0 0.0
    %1607 = vmatprep.subr.mxu0 0.0
    %1608 = vmatpush1.msra.mxu0 0.0
    %1609 = vmatprep.subr.mxu0 0.0
    %1610 = vmatpush1.msra.mxu0 0.0
    %1611 = vmatprep.subr.mxu0 0.0
    %1612 = vmatpush1.msra.mxu0 0.0
    %1613 = vmatprep.subr.mxu0 0.0
    %1614 = vmatpush1.msra.mxu0 0.0
    %1615 = vmatprep.subr.mxu0 0.0
    %1616 = vmatpush1.msra.mxu0 0.0
    %1617 = vmatprep.subr.mxu0 0.0
    %1618 = vmatpush1.msra.mxu0 0.0
    %1619 = vmatprep.subr.mxu0 0.0
    %1620 = vmatpush1.msra.mxu0 0.0
    %1621 = vmatprep.subr.mxu0 0.0
    %1622 = vmatpush1.msra.mxu0 0.0
    %1623 = vmatprep.subr.mxu0 0.0
    %1624 = vmatpush1.msra.mxu0 0.0
    %1625 = vmatprep.subr.mxu0 0.0
    %1626 = vmatpush1.msra.mxu0 0.0
    %1627 = vmatprep.subr.mxu0 0.0
    %1628 = vmatpush1.msra.mxu0 0.0
    %1629 = vmatprep.subr.mxu0 0.0
    %1630 = vmatpush1.msra.mxu0 0.0
    %1631 = vmatprep.subr.mxu0 0.0
    %1632 = vmatpush1.msra.mxu0 0.0
    %1633 = vmatprep.subr.mxu0 0.0
    %1634 = vmatpush1.msra.mxu0 0.0
    %1635 = vmatprep.subr.mxu0 0.0
    %1636 = vmatpush1.msra.mxu0 0.0
    %1637 = vmatprep.subr.mxu0 0.0
    %1638 = vmatpush1.msra.mxu0 0.0
    %1639 = vmatprep.subr.mxu0 0.0
    %1640 = vmatpush1.msra.mxu0 0.0
    %1641 = vmatprep.subr.mxu0 0.0
    %1642 = vmatpush1.msra.mxu0 0.0
    %1643 = vmatprep.subr.mxu0 0.0
    %1644 = vmatpush1.msra.mxu0 0.0
    %1645 = vmatprep.subr.mxu0 0.0
    %1646 = vmatpush1.msra.mxu0 0.0
    %1647 = vmatprep.subr.mxu0 0.0
    %1648 = vmatpush1.msra.mxu0 0.0
    %1649 = vmatprep.mubr.f32.mxu0 0.0
    %1650 = vmatmul.mubr.f32.gmra.mrb[0].mxu0 %v1583
    %v1651 = vpop.f32.mrb[0].mxu0
    %v1652 = vadd.f32 0.0, %v1651
    %v1653 = vpop.f32.mrb[0].mxu0
    %1654 = vdwg.mxu0
    %v1655 = vadd.f32 %v264, %v1652
    %v1656 = vxor.u32 %v1655, 2147483648
    %v1657 = vmul.f32 %v1656, 1.442695
    %v1658 = vpow.pop %v1657
    %v1659 = vadd.f32 %v1658, 1.0
    %v1660 = vrcp.pop %v1659
    %v1661 = vmul.f32 1.0, %v1660
    %v1662 = vtanh.pop %v1655
    %v1664 = vrot.slane %v1568, 6
    %v1666 = vmul.f32 %v1661, %v1664
    %1668 = vrot.lane.b32.xlu0 %v1662, 64
    %v1669 = vpop.permute.xlu0 %1668
    %v1671 = vmul.f32 %v1661, %v1669
    %1673 = vrot.lane.b32.xlu0 %v1671, 32
    %v1674 = vpop.permute.xlu0 %1673
    %v1676 = vadd.f32 %v1666, %v1674
    %v1677 = vtanh.pop %v1676
    %1679 = vrot.lane.b32.xlu0 %v1677, 64
    %v1680 = vpop.permute.xlu0 %1679
    %v1682 = vmul.f32 %v1661, %v1680
    %1684 = vrot.lane.b32.xlu0 %v1682, 32
    %v1685 = vpop.permute.xlu0 %1684
    %1687 = vst.msk [vmem:[#allocation2 + $0x18] sm:$0x3] %vm369, %v1685
    %v1688 = vsel %vm169, %v1685, 0
    %1690 = vmatprep.subr.mxu0 0.0
    %1691 = vmatpush1.msra.mxu0 %v158
    %1692 = vmatprep.subr.mxu0 0.0
    %1693 = vmatpush1.msra.mxu0 %v159
    %1694 = vmatprep.subr.mxu0 0.0
    %1695 = vmatpush1.msra.mxu0 %v160
    %1696 = vmatprep.subr.mxu0 0.0
    %1697 = vmatpush1.msra.mxu0 %v161
    %1698 = vmatprep.subr.mxu0 0.0
    %1699 = vmatpush1.msra.mxu0 0.0
    %1700 = vmatprep.subr.mxu0 0.0
    %1701 = vmatpush1.msra.mxu0 0.0
    %1702 = vmatprep.subr.mxu0 0.0
    %1703 = vmatpush1.msra.mxu0 0.0
    %1704 = vmatprep.subr.mxu0 0.0
    %1705 = vmatpush1.msra.mxu0 0.0
    %1706 = vmatprep.subr.mxu0 0.0
    %1707 = vmatpush1.msra.mxu0 0.0
    %1708 = vmatprep.subr.mxu0 0.0
    %1709 = vmatpush1.msra.mxu0 0.0
    %1710 = vmatprep.subr.mxu0 0.0
    %1711 = vmatpush1.msra.mxu0 0.0
    %1712 = vmatprep.subr.mxu0 0.0
    %1713 = vmatpush1.msra.mxu0 0.0
    %1714 = vmatprep.subr.mxu0 0.0
    %1715 = vmatpush1.msra.mxu0 0.0
    %1716 = vmatprep.subr.mxu0 0.0
    %1717 = vmatpush1.msra.mxu0 0.0
    %1718 = vmatprep.subr.mxu0 0.0
    %1719 = vmatpush1.msra.mxu0 0.0
    %1720 = vmatprep.subr.mxu0 0.0
    %1721 = vmatpush1.msra.mxu0 0.0
    %1722 = vmatprep.subr.mxu0 0.0
    %1723 = vmatpush1.msra.mxu0 0.0
    %1724 = vmatprep.subr.mxu0 0.0
    %1725 = vmatpush1.msra.mxu0 0.0
    %1726 = vmatprep.subr.mxu0 0.0
    %1727 = vmatpush1.msra.mxu0 0.0
    %1728 = vmatprep.subr.mxu0 0.0
    %1729 = vmatpush1.msra.mxu0 0.0
    %1730 = vmatprep.subr.mxu0 0.0
    %1731 = vmatpush1.msra.mxu0 0.0
    %1732 = vmatprep.subr.mxu0 0.0
    %1733 = vmatpush1.msra.mxu0 0.0
    %1734 = vmatprep.subr.mxu0 0.0
    %1735 = vmatpush1.msra.mxu0 0.0
    %1736 = vmatprep.subr.mxu0 0.0
    %1737 = vmatpush1.msra.mxu0 0.0
    %1738 = vmatprep.subr.mxu0 0.0
    %1739 = vmatpush1.msra.mxu0 0.0
    %1740 = vmatprep.subr.mxu0 0.0
    %1741 = vmatpush1.msra.mxu0 0.0
    %1742 = vmatprep.subr.mxu0 0.0
    %1743 = vmatpush1.msra.mxu0 0.0
    %1744 = vmatprep.subr.mxu0 0.0
    %1745 = vmatpush1.msra.mxu0 0.0
    %1746 = vmatprep.subr.mxu0 0.0
    %1747 = vmatpush1.msra.mxu0 0.0
    %1748 = vmatprep.subr.mxu0 0.0
    %1749 = vmatpush1.msra.mxu0 0.0
    %1750 = vmatprep.subr.mxu0 0.0
    %1751 = vmatpush1.msra.mxu0 0.0
    %1752 = vmatprep.subr.mxu0 0.0
    %1753 = vmatpush1.msra.mxu0 0.0
    %1754 = vmatprep.mubr.f32.mxu0 0.0
    %1755 = vmatmul.mubr.f32.gmra.mrb[0].mxu0 %v1688
    %v1756 = vpop.f32.mrb[0].mxu0
    %v1757 = vadd.f32 0.0, %v1756
    %v1758 = vpop.f32.mrb[0].mxu0
    %1759 = vdwg.mxu0
    %v1761 = vrot.slane %v1757, 6
    %v1763 = vadd.f32 %v264, %v1761
    %v1764 = vxor.u32 %v1763, 2147483648
    %v1765 = vmul.f32 %v1764, 1.442695
    %v1766 = vpow.pop %v1765
    %v1767 = vadd.f32 %v1766, 1.0
    %v1768 = vrcp.pop %v1767
    %v1769 = vmul.f32 1.0, %v1768
    %v1770 = vtanh.pop %v1763
    %v1772 = vrot.slane %v1676, 6
    %v1774 = vmul.f32 %v1769, %v1772
    %1776 = vrot.lane.b32.xlu0 %v1770, 64
    %v1777 = vpop.permute.xlu0 %1776
    %v1779 = vmul.f32 %v1769, %v1777
    %1781 = vrot.lane.b32.xlu0 %v1779, 32
    %v1782 = vpop.permute.xlu0 %1781
    %v1784 = vadd.f32 %v1774, %v1782
    %v1785 = vtanh.pop %v1784
    %1787 = vrot.lane.b32.xlu0 %v1785, 64
    %v1788 = vpop.permute.xlu0 %1787
    %v1790 = vmul.f32 %v1769, %v1788
    %1792 = vrot.lane.b32.xlu0 %v1790, 32
    %v1793 = vpop.permute.xlu0 %1792
    %1795 = vst.msk [vmem:[#allocation2 + $0x18] sm:$0xc] %vm478, %v1793
    %v1796 = vld [vmem:[#allocation2] sm:$0xff]
    %v1797 = vld [vmem:[#allocation2 + $0x8] sm:$0xff]
    %v1798 = vld [vmem:[#allocation2 + $0x10] sm:$0xff]
    %v1799 = vld [vmem:[#allocation2 + $0x18] sm:$0xf]
    %v1800 = vld [vmem:[%s6] sm:$0xff]
    %v1801 = vld [vmem:[%s6 + $0x8] sm:$0xff]
    %v1802 = vld [vmem:[%s6 + $0x10] sm:$0xff]
    %v1803 = vld [vmem:[%s6 + $0x18] sm:$0xff]
    %v1804 = vld [vmem:[%s7] sm:$0xff]
    %v1805 = vld [vmem:[%s7 + $0x8] sm:$0xff]
    %v1806 = vld [vmem:[%s7 + $0x10] sm:$0xff]
    %v1807 = vld [vmem:[%s7 + $0x18] sm:$0xff]
    %v1808 = vld [vmem:[%s8] sm:$0x1]
    %v1810 = vlaneseq
    %v1811 = vshrl.u32 %v1810, 7
    %v1812 = vsub.s32 0, %v1811
    %v1813 = vrot.slane %v1808, %v1812
    %v1816 = vsel %vm169, %v1796, 0
    %v1819 = vsel %vm169, %v1797, 0
    %v1822 = vsel %vm169, %v1798, 0
    %v1825 = vsel %vm169, %v1799, 0
    %1827 = vmatprep.subr.mxu0 0.0
    %1828 = vmatpush1.msra.mxu0 %v1800
    %1829 = vmatprep.subr.mxu0 0.0
    %1830 = vmatpush1.msra.mxu0 %v1801
    %1831 = vmatprep.subr.mxu0 0.0
    %1832 = vmatpush1.msra.mxu0 %v1802
    %1833 = vmatprep.subr.mxu0 0.0
    %1834 = vmatpush1.msra.mxu0 %v1803
    %1835 = vmatprep.subr.mxu0 0.0
    %1836 = vmatpush1.msra.mxu0 0.0
    %1837 = vmatprep.subr.mxu0 0.0
    %1838 = vmatpush1.msra.mxu0 0.0
    %1839 = vmatprep.subr.mxu0 0.0
    %1840 = vmatpush1.msra.mxu0 0.0
    %1841 = vmatprep.subr.mxu0 0.0
    %1842 = vmatpush1.msra.mxu0 0.0
    %1843 = vmatprep.subr.mxu0 0.0
    %1844 = vmatpush1.msra.mxu0 0.0
    %1845 = vmatprep.subr.mxu0 0.0
    %1846 = vmatpush1.msra.mxu0 0.0
    %1847 = vmatprep.subr.mxu0 0.0
    %1848 = vmatpush1.msra.mxu0 0.0
    %1849 = vmatprep.subr.mxu0 0.0
    %1850 = vmatpush1.msra.mxu0 0.0
    %1851 = vmatprep.subr.mxu0 0.0
    %1852 = vmatpush1.msra.mxu0 0.0
    %1853 = vmatprep.subr.mxu0 0.0
    %1854 = vmatpush1.msra.mxu0 0.0
    %1855 = vmatprep.subr.mxu0 0.0
    %1856 = vmatpush1.msra.mxu0 0.0
    %1857 = vmatprep.subr.mxu0 0.0
    %1858 = vmatpush1.msra.mxu0 0.0
    %1859 = vmatprep.subr.mxu0 0.0
    %1860 = vmatpush1.msra.mxu0 0.0
    %1861 = vmatprep.subr.mxu0 0.0
    %1862 = vmatpush1.msra.mxu0 0.0
    %1863 = vmatprep.subr.mxu0 0.0
    %1864 = vmatpush1.msra.mxu0 0.0
    %1865 = vmatprep.subr.mxu0 0.0
    %1866 = vmatpush1.msra.mxu0 0.0
    %1867 = vmatprep.subr.mxu0 0.0
    %1868 = vmatpush1.msra.mxu0 0.0
    %1869 = vmatprep.subr.mxu0 0.0
    %1870 = vmatpush1.msra.mxu0 0.0
    %1871 = vmatprep.subr.mxu0 0.0
    %1872 = vmatpush1.msra.mxu0 0.0
    %1873 = vmatprep.subr.mxu0 0.0
    %1874 = vmatpush1.msra.mxu0 0.0
    %1875 = vmatprep.subr.mxu0 0.0
    %1876 = vmatpush1.msra.mxu0 0.0
    %1877 = vmatprep.subr.mxu0 0.0
    %1878 = vmatpush1.msra.mxu0 0.0
    %1879 = vmatprep.subr.mxu0 0.0
    %1880 = vmatpush1.msra.mxu0 0.0
    %1881 = vmatprep.subr.mxu0 0.0
    %1882 = vmatpush1.msra.mxu0 0.0
    %1883 = vmatprep.subr.mxu0 0.0
    %1884 = vmatpush1.msra.mxu0 0.0
    %1885 = vmatprep.subr.mxu0 0.0
    %1886 = vmatpush1.msra.mxu0 0.0
    %1887 = vmatprep.subr.mxu0 0.0
    %1888 = vmatpush1.msra.mxu0 0.0
    %1889 = vmatprep.subr.mxu0 0.0
    %1890 = vmatpush1.msra.mxu0 0.0
    %1891 = vmatprep.mubr.f32.mxu0 0.0
    %1892 = vmatmul.mubr.f32.gmra.mrb[0].mxu0 %v1816
    %v1893 = vpop.f32.mrb[0].mxu0
    %v1894 = vadd.f32 %v1813, %v1893
    %v1895 = vpop.f32.mrb[0].mxu0
    %1896 = vmatprep.mubr.f32.mxu0 0.0
    %1897 = vmatmul.mubr.f32.gmra.mrb[0].mxu0 %v1819
    %v1898 = vpop.f32.mrb[0].mxu0
    %v1899 = vadd.f32 %v1813, %v1898
    %v1900 = vpop.f32.mrb[0].mxu0
    %1901 = vmatprep.mubr.f32.mxu0 0.0
    %1902 = vmatmul.mubr.f32.gmra.mrb[0].mxu0 %v1822
    %v1903 = vpop.f32.mrb[0].mxu0
    %v1904 = vadd.f32 %v1813, %v1903
    %v1905 = vpop.f32.mrb[0].mxu0
    %1906 = vmatprep.mubr.f32.mxu0 0.0
    %1907 = vmatmul.mubr.f32.gmra.mrb[0].mxu0 %v1825
    %v1908 = vpop.f32.mrb[0].mxu0
    %v1909 = vadd.f32 %v1813, %v1908
    %v1910 = vpop.f32.mrb[0].mxu0
    %1911 = vdwg.mxu0
    %1912 = vmatprep.subr.mxu0 0.0
    %1913 = vmatpush1.msra.mxu0 %v1804
    %1914 = vmatprep.subr.mxu0 0.0
    %1915 = vmatpush1.msra.mxu0 %v1805
    %1916 = vmatprep.subr.mxu0 0.0
    %1917 = vmatpush1.msra.mxu0 %v1806
    %1918 = vmatprep.subr.mxu0 0.0
    %1919 = vmatpush1.msra.mxu0 %v1807
    %1920 = vmatprep.subr.mxu0 0.0
    %1921 = vmatpush1.msra.mxu0 0.0
    %1922 = vmatprep.subr.mxu0 0.0
    %1923 = vmatpush1.msra.mxu0 0.0
    %1924 = vmatprep.subr.mxu0 0.0
    %1925 = vmatpush1.msra.mxu0 0.0
    %1926 = vmatprep.subr.mxu0 0.0
    %1927 = vmatpush1.msra.mxu0 0.0
    %1928 = vmatprep.subr.mxu0 0.0
    %1929 = vmatpush1.msra.mxu0 0.0
    %1930 = vmatprep.subr.mxu0 0.0
    %1931 = vmatpush1.msra.mxu0 0.0
    %1932 = vmatprep.subr.mxu0 0.0
    %1933 = vmatpush1.msra.mxu0 0.0
    %1934 = vmatprep.subr.mxu0 0.0
    %1935 = vmatpush1.msra.mxu0 0.0
    %1936 = vmatprep.subr.mxu0 0.0
    %1937 = vmatpush1.msra.mxu0 0.0
    %1938 = vmatprep.subr.mxu0 0.0
    %1939 = vmatpush1.msra.mxu0 0.0
    %1940 = vmatprep.subr.mxu0 0.0
    %1941 = vmatpush1.msra.mxu0 0.0
    %1942 = vmatprep.subr.mxu0 0.0
    %1943 = vmatpush1.msra.mxu0 0.0
    %1944 = vmatprep.subr.mxu0 0.0
    %1945 = vmatpush1.msra.mxu0 0.0
    %1946 = vmatprep.subr.mxu0 0.0
    %1947 = vmatpush1.msra.mxu0 0.0
    %1948 = vmatprep.subr.mxu0 0.0
    %1949 = vmatpush1.msra.mxu0 0.0
    %1950 = vmatprep.subr.mxu0 0.0
    %1951 = vmatpush1.msra.mxu0 0.0
    %1952 = vmatprep.subr.mxu0 0.0
    %1953 = vmatpush1.msra.mxu0 0.0
    %1954 = vmatprep.subr.mxu0 0.0
    %1955 = vmatpush1.msra.mxu0 0.0
    %1956 = vmatprep.subr.mxu0 0.0
    %1957 = vmatpush1.msra.mxu0 0.0
    %1958 = vmatprep.subr.mxu0 0.0
    %1959 = vmatpush1.msra.mxu0 0.0
    %1960 = vmatprep.subr.mxu0 0.0
    %1961 = vmatpush1.msra.mxu0 0.0
    %1962 = vmatprep.subr.mxu0 0.0
    %1963 = vmatpush1.msra.mxu0 0.0
    %1964 = vmatprep.subr.mxu0 0.0
    %1965 = vmatpush1.msra.mxu0 0.0
    %1966 = vmatprep.subr.mxu0 0.0
    %1967 = vmatpush1.msra.mxu0 0.0
    %1968 = vmatprep.subr.mxu0 0.0
    %1969 = vmatpush1.msra.mxu0 0.0
    %1970 = vmatprep.subr.mxu0 0.0
    %1971 = vmatpush1.msra.mxu0 0.0
    %1972 = vmatprep.subr.mxu0 0.0
    %1973 = vmatpush1.msra.mxu0 0.0
    %1974 = vmatprep.subr.mxu0 0.0
    %1975 = vmatpush1.msra.mxu0 0.0
    %1976 = vmatprep.mubr.f32.mxu0 0.0
    %1977 = vmatmul.mubr.f32.gmra.mrb[0].mxu0 %v268
    %v1978 = vpop.f32.mrb[0].mxu0
    %v1979 = vadd.f32 0.0, %v1978
    %v1980 = vpop.f32.mrb[0].mxu0
    %1981 = vdwg.mxu0
    %v1982 = vadd.f32 %v1894, %v1979
    %v1983 = vxor.u32 %v1982, 2147483648
    %v1984 = vmul.f32 %v1983, 1.442695
    %v1985 = vpow.pop %v1984
    %v1986 = vadd.f32 %v1985, 1.0
    %v1987 = vrcp.pop %v1986
    %v1988 = vmul.f32 1.0, %v1987
    %v1989 = vtanh.pop %v1982
    %v1990 = vmul.f32 %v1988, 0.0
    %1992 = vrot.lane.b32.xlu0 %v1989, 64
    %v1993 = vpop.permute.xlu0 %1992
    %v1995 = vmul.f32 %v1988, %v1993
    %1997 = vrot.lane.b32.xlu0 %v1995, 32
    %v1998 = vpop.permute.xlu0 %1997
    %v2000 = vadd.f32 %v1990, %v1998
    %v2001 = vtanh.pop %v2000
    %2003 = vrot.lane.b32.xlu0 %v2001, 64
    %v2004 = vpop.permute.xlu0 %2003
    %v2006 = vmul.f32 %v1988, %v2004
    %2008 = vrot.lane.b32.xlu0 %v2006, 32
    %v2009 = vpop.permute.xlu0 %2008
    %v2010 = vsel %vm169, %v2009, 0
    %2012 = vmatprep.subr.mxu0 0.0
    %2013 = vmatpush1.msra.mxu0 %v1804
    %2014 = vmatprep.subr.mxu0 0.0
    %2015 = vmatpush1.msra.mxu0 %v1805
    %2016 = vmatprep.subr.mxu0 0.0
    %2017 = vmatpush1.msra.mxu0 %v1806
    %2018 = vmatprep.subr.mxu0 0.0
    %2019 = vmatpush1.msra.mxu0 %v1807
    %2020 = vmatprep.subr.mxu0 0.0
    %2021 = vmatpush1.msra.mxu0 0.0
    %2022 = vmatprep.subr.mxu0 0.0
    %2023 = vmatpush1.msra.mxu0 0.0
    %2024 = vmatprep.subr.mxu0 0.0
    %2025 = vmatpush1.msra.mxu0 0.0
    %2026 = vmatprep.subr.mxu0 0.0
    %2027 = vmatpush1.msra.mxu0 0.0
    %2028 = vmatprep.subr.mxu0 0.0
    %2029 = vmatpush1.msra.mxu0 0.0
    %2030 = vmatprep.subr.mxu0 0.0
    %2031 = vmatpush1.msra.mxu0 0.0
    %2032 = vmatprep.subr.mxu0 0.0
    %2033 = vmatpush1.msra.mxu0 0.0
    %2034 = vmatprep.subr.mxu0 0.0
    %2035 = vmatpush1.msra.mxu0 0.0
    %2036 = vmatprep.subr.mxu0 0.0
    %2037 = vmatpush1.msra.mxu0 0.0
    %2038 = vmatprep.subr.mxu0 0.0
    %2039 = vmatpush1.msra.mxu0 0.0
    %2040 = vmatprep.subr.mxu0 0.0
    %2041 = vmatpush1.msra.mxu0 0.0
    %2042 = vmatprep.subr.mxu0 0.0
    %2043 = vmatpush1.msra.mxu0 0.0
    %2044 = vmatprep.subr.mxu0 0.0
    %2045 = vmatpush1.msra.mxu0 0.0
    %2046 = vmatprep.subr.mxu0 0.0
    %2047 = vmatpush1.msra.mxu0 0.0
    %2048 = vmatprep.subr.mxu0 0.0
    %2049 = vmatpush1.msra.mxu0 0.0
    %2050 = vmatprep.subr.mxu0 0.0
    %2051 = vmatpush1.msra.mxu0 0.0
    %2052 = vmatprep.subr.mxu0 0.0
    %2053 = vmatpush1.msra.mxu0 0.0
    %2054 = vmatprep.subr.mxu0 0.0
    %2055 = vmatpush1.msra.mxu0 0.0
    %2056 = vmatprep.subr.mxu0 0.0
    %2057 = vmatpush1.msra.mxu0 0.0
    %2058 = vmatprep.subr.mxu0 0.0
    %2059 = vmatpush1.msra.mxu0 0.0
    %2060 = vmatprep.subr.mxu0 0.0
    %2061 = vmatpush1.msra.mxu0 0.0
    %2062 = vmatprep.subr.mxu0 0.0
    %2063 = vmatpush1.msra.mxu0 0.0
    %2064 = vmatprep.subr.mxu0 0.0
    %2065 = vmatpush1.msra.mxu0 0.0
    %2066 = vmatprep.subr.mxu0 0.0
    %2067 = vmatpush1.msra.mxu0 0.0
    %2068 = vmatprep.subr.mxu0 0.0
    %2069 = vmatpush1.msra.mxu0 0.0
    %2070 = vmatprep.subr.mxu0 0.0
    %2071 = vmatpush1.msra.mxu0 0.0
    %2072 = vmatprep.subr.mxu0 0.0
    %2073 = vmatpush1.msra.mxu0 0.0
    %2074 = vmatprep.subr.mxu0 0.0
    %2075 = vmatpush1.msra.mxu0 0.0
    %2076 = vmatprep.mubr.f32.mxu0 0.0
    %2077 = vmatmul.mubr.f32.gmra.mrb[0].mxu0 %v2010
    %v2078 = vpop.f32.mrb[0].mxu0
    %v2079 = vadd.f32 0.0, %v2078
    %v2080 = vpop.f32.mrb[0].mxu0
    %2081 = vdwg.mxu0
    %v2083 = vrot.slane %v2079, 6
    %v2085 = vadd.f32 %v1894, %v2083
    %v2086 = vxor.u32 %v2085, 2147483648
    %v2087 = vmul.f32 %v2086, 1.442695
    %v2088 = vpow.pop %v2087
    %v2089 = vadd.f32 %v2088, 1.0
    %v2090 = vrcp.pop %v2089
    %v2091 = vmul.f32 1.0, %v2090
    %v2092 = vtanh.pop %v2085
    %v2094 = vrot.slane %v2000, 6
    %v2096 = vmul.f32 %v2091, %v2094
    %2098 = vrot.lane.b32.xlu0 %v2092, 64
    %v2099 = vpop.permute.xlu0 %2098
    %v2101 = vmul.f32 %v2091, %v2099
    %2103 = vrot.lane.b32.xlu0 %v2101, 32
    %v2104 = vpop.permute.xlu0 %2103
    %v2106 = vadd.f32 %v2096, %v2104
    %v2107 = vtanh.pop %v2106
    %2109 = vrot.lane.b32.xlu0 %v2107, 64
    %v2110 = vpop.permute.xlu0 %2109
    %v2112 = vmul.f32 %v2091, %v2110
    %v2114 = vrot.slane %v2112, 2
    %2115 = vrot.lane.b32.xlu0 %v2114, 32
    %v2116 = vpop.permute.xlu0 %2115
    %v2117 = vsel %vm169, %v2116, 0
    %2119 = vmatprep.subr.mxu0 0.0
    %2120 = vmatpush1.msra.mxu0 %v1804
    %2121 = vmatprep.subr.mxu0 0.0
    %2122 = vmatpush1.msra.mxu0 %v1805
    %2123 = vmatprep.subr.mxu0 0.0
    %2124 = vmatpush1.msra.mxu0 %v1806
    %2125 = vmatprep.subr.mxu0 0.0
    %2126 = vmatpush1.msra.mxu0 %v1807
    %2127 = vmatprep.subr.mxu0 0.0
    %2128 = vmatpush1.msra.mxu0 0.0
    %2129 = vmatprep.subr.mxu0 0.0
    %2130 = vmatpush1.msra.mxu0 0.0
    %2131 = vmatprep.subr.mxu0 0.0
    %2132 = vmatpush1.msra.mxu0 0.0
    %2133 = vmatprep.subr.mxu0 0.0
    %2134 = vmatpush1.msra.mxu0 0.0
    %2135 = vmatprep.subr.mxu0 0.0
    %2136 = vmatpush1.msra.mxu0 0.0
    %2137 = vmatprep.subr.mxu0 0.0
    %2138 = vmatpush1.msra.mxu0 0.0
    %2139 = vmatprep.subr.mxu0 0.0
    %2140 = vmatpush1.msra.mxu0 0.0
    %2141 = vmatprep.subr.mxu0 0.0
    %2142 = vmatpush1.msra.mxu0 0.0
    %2143 = vmatprep.subr.mxu0 0.0
    %2144 = vmatpush1.msra.mxu0 0.0
    %2145 = vmatprep.subr.mxu0 0.0
    %2146 = vmatpush1.msra.mxu0 0.0
    %2147 = vmatprep.subr.mxu0 0.0
    %2148 = vmatpush1.msra.mxu0 0.0
    %2149 = vmatprep.subr.mxu0 0.0
    %2150 = vmatpush1.msra.mxu0 0.0
    %2151 = vmatprep.subr.mxu0 0.0
    %2152 = vmatpush1.msra.mxu0 0.0
    %2153 = vmatprep.subr.mxu0 0.0
    %2154 = vmatpush1.msra.mxu0 0.0
    %2155 = vmatprep.subr.mxu0 0.0
    %2156 = vmatpush1.msra.mxu0 0.0
    %2157 = vmatprep.subr.mxu0 0.0
    %2158 = vmatpush1.msra.mxu0 0.0
    %2159 = vmatprep.subr.mxu0 0.0
    %2160 = vmatpush1.msra.mxu0 0.0
    %2161 = vmatprep.subr.mxu0 0.0
    %2162 = vmatpush1.msra.mxu0 0.0
    %2163 = vmatprep.subr.mxu0 0.0
    %2164 = vmatpush1.msra.mxu0 0.0
    %2165 = vmatprep.subr.mxu0 0.0
    %2166 = vmatpush1.msra.mxu0 0.0
    %2167 = vmatprep.subr.mxu0 0.0
    %2168 = vmatpush1.msra.mxu0 0.0
    %2169 = vmatprep.subr.mxu0 0.0
    %2170 = vmatpush1.msra.mxu0 0.0
    %2171 = vmatprep.subr.mxu0 0.0
    %2172 = vmatpush1.msra.mxu0 0.0
    %2173 = vmatprep.subr.mxu0 0.0
    %2174 = vmatpush1.msra.mxu0 0.0
    %2175 = vmatprep.subr.mxu0 0.0
    %2176 = vmatpush1.msra.mxu0 0.0
    %2177 = vmatprep.subr.mxu0 0.0
    %2178 = vmatpush1.msra.mxu0 0.0
    %2179 = vmatprep.subr.mxu0 0.0
    %2180 = vmatpush1.msra.mxu0 0.0
    %2181 = vmatprep.subr.mxu0 0.0
    %2182 = vmatpush1.msra.mxu0 0.0
    %2183 = vmatprep.mubr.f32.mxu0 0.0
    %2184 = vmatmul.mubr.f32.gmra.mrb[0].mxu0 %v2117
    %v2185 = vpop.f32.mrb[0].mxu0
    %v2186 = vadd.f32 0.0, %v2185
    %v2187 = vpop.f32.mrb[0].mxu0
    %2188 = vdwg.mxu0
    %v2190 = vrot.slane %v2186, 4
    %v2192 = vadd.f32 %v1894, %v2190
    %v2193 = vxor.u32 %v2192, 2147483648
    %v2194 = vmul.f32 %v2193, 1.442695
    %v2195 = vpow.pop %v2194
    %v2196 = vadd.f32 %v2195, 1.0
    %v2197 = vrcp.pop %v2196
    %v2198 = vmul.f32 1.0, %v2197
    %v2199 = vtanh.pop %v2192
    %v2201 = vrot.slane %v2106, 6
    %v2203 = vmul.f32 %v2198, %v2201
    %2205 = vrot.lane.b32.xlu0 %v2199, 64
    %v2206 = vpop.permute.xlu0 %2205
    %v2208 = vmul.f32 %v2198, %v2206
    %2210 = vrot.lane.b32.xlu0 %v2208, 32
    %v2211 = vpop.permute.xlu0 %2210
    %v2213 = vadd.f32 %v2203, %v2211
    %v2214 = vtanh.pop %v2213
    %2216 = vrot.lane.b32.xlu0 %v2214, 64
    %v2217 = vpop.permute.xlu0 %2216
    %v2219 = vmul.f32 %v2198, %v2217
    %v2221 = vrot.slane %v2219, 4
    %2222 = vrot.lane.b32.xlu0 %v2221, 32
    %v2223 = vpop.permute.xlu0 %2222
    %v2224 = vsel %vm169, %v2223, 0
    %2226 = vmatprep.subr.mxu0 0.0
    %2227 = vmatpush1.msra.mxu0 %v1804
    %2228 = vmatprep.subr.mxu0 0.0
    %2229 = vmatpush1.msra.mxu0 %v1805
    %2230 = vmatprep.subr.mxu0 0.0
    %2231 = vmatpush1.msra.mxu0 %v1806
    %2232 = vmatprep.subr.mxu0 0.0
    %2233 = vmatpush1.msra.mxu0 %v1807
    %2234 = vmatprep.subr.mxu0 0.0
    %2235 = vmatpush1.msra.mxu0 0.0
    %2236 = vmatprep.subr.mxu0 0.0
    %2237 = vmatpush1.msra.mxu0 0.0
    %2238 = vmatprep.subr.mxu0 0.0
    %2239 = vmatpush1.msra.mxu0 0.0
    %2240 = vmatprep.subr.mxu0 0.0
    %2241 = vmatpush1.msra.mxu0 0.0
    %2242 = vmatprep.subr.mxu0 0.0
    %2243 = vmatpush1.msra.mxu0 0.0
    %2244 = vmatprep.subr.mxu0 0.0
    %2245 = vmatpush1.msra.mxu0 0.0
    %2246 = vmatprep.subr.mxu0 0.0
    %2247 = vmatpush1.msra.mxu0 0.0
    %2248 = vmatprep.subr.mxu0 0.0
    %2249 = vmatpush1.msra.mxu0 0.0
    %2250 = vmatprep.subr.mxu0 0.0
    %2251 = vmatpush1.msra.mxu0 0.0
    %2252 = vmatprep.subr.mxu0 0.0
    %2253 = vmatpush1.msra.mxu0 0.0
    %2254 = vmatprep.subr.mxu0 0.0
    %2255 = vmatpush1.msra.mxu0 0.0
    %2256 = vmatprep.subr.mxu0 0.0
    %2257 = vmatpush1.msra.mxu0 0.0
    %2258 = vmatprep.subr.mxu0 0.0
    %2259 = vmatpush1.msra.mxu0 0.0
    %2260 = vmatprep.subr.mxu0 0.0
    %2261 = vmatpush1.msra.mxu0 0.0
    %2262 = vmatprep.subr.mxu0 0.0
    %2263 = vmatpush1.msra.mxu0 0.0
    %2264 = vmatprep.subr.mxu0 0.0
    %2265 = vmatpush1.msra.mxu0 0.0
    %2266 = vmatprep.subr.mxu0 0.0
    %2267 = vmatpush1.msra.mxu0 0.0
    %2268 = vmatprep.subr.mxu0 0.0
    %2269 = vmatpush1.msra.mxu0 0.0
    %2270 = vmatprep.subr.mxu0 0.0
    %2271 = vmatpush1.msra.mxu0 0.0
    %2272 = vmatprep.subr.mxu0 0.0
    %2273 = vmatpush1.msra.mxu0 0.0
    %2274 = vmatprep.subr.mxu0 0.0
    %2275 = vmatpush1.msra.mxu0 0.0
    %2276 = vmatprep.subr.mxu0 0.0
    %2277 = vmatpush1.msra.mxu0 0.0
    %2278 = vmatprep.subr.mxu0 0.0
    %2279 = vmatpush1.msra.mxu0 0.0
    %2280 = vmatprep.subr.mxu0 0.0
    %2281 = vmatpush1.msra.mxu0 0.0
    %2282 = vmatprep.subr.mxu0 0.0
    %2283 = vmatpush1.msra.mxu0 0.0
    %2284 = vmatprep.subr.mxu0 0.0
    %2285 = vmatpush1.msra.mxu0 0.0
    %2286 = vmatprep.subr.mxu0 0.0
    %2287 = vmatpush1.msra.mxu0 0.0
    %2288 = vmatprep.subr.mxu0 0.0
    %2289 = vmatpush1.msra.mxu0 0.0
    %2290 = vmatprep.mubr.f32.mxu0 0.0
    %2291 = vmatmul.mubr.f32.gmra.mrb[0].mxu0 %v2224
    %v2292 = vpop.f32.mrb[0].mxu0
    %v2293 = vadd.f32 0.0, %v2292
    %v2294 = vpop.f32.mrb[0].mxu0
    %2295 = vdwg.mxu0
    %v2297 = vrot.slane %v2293, 2
    %v2299 = vadd.f32 %v1894, %v2297
    %v2300 = vxor.u32 %v2299, 2147483648
    %v2301 = vmul.f32 %v2300, 1.442695
    %v2302 = vpow.pop %v2301
    %v2303 = vadd.f32 %v2302, 1.0
    %v2304 = vrcp.pop %v2303
    %v2305 = vmul.f32 1.0, %v2304
    %v2306 = vtanh.pop %v2299
    %v2308 = vrot.slane %v2213, 6
    %v2310 = vmul.f32 %v2305, %v2308
    %2312 = vrot.lane.b32.xlu0 %v2306, 64
    %v2313 = vpop.permute.xlu0 %2312
    %v2315 = vmul.f32 %v2305, %v2313
    %2317 = vrot.lane.b32.xlu0 %v2315, 32
    %v2318 = vpop.permute.xlu0 %2317
    %v2320 = vadd.f32 %v2310, %v2318
    %v2321 = vtanh.pop %v2320
    %2323 = vrot.lane.b32.xlu0 %v2321, 64
    %v2324 = vpop.permute.xlu0 %2323
    %v2326 = vmul.f32 %v2305, %v2324
    %v2328 = vrot.slane %v2326, 6
    %2329 = vrot.lane.b32.xlu0 %v2328, 32
    %v2330 = vpop.permute.xlu0 %2329
    %v2331 = vsel %vm169, %v2330, 0
    %2333 = vmatprep.subr.mxu0 0.0
    %2334 = vmatpush1.msra.mxu0 %v1804
    %2335 = vmatprep.subr.mxu0 0.0
    %2336 = vmatpush1.msra.mxu0 %v1805
    %2337 = vmatprep.subr.mxu0 0.0
    %2338 = vmatpush1.msra.mxu0 %v1806
    %2339 = vmatprep.subr.mxu0 0.0
    %2340 = vmatpush1.msra.mxu0 %v1807
    %2341 = vmatprep.subr.mxu0 0.0
    %2342 = vmatpush1.msra.mxu0 0.0
    %2343 = vmatprep.subr.mxu0 0.0
    %2344 = vmatpush1.msra.mxu0 0.0
    %2345 = vmatprep.subr.mxu0 0.0
    %2346 = vmatpush1.msra.mxu0 0.0
    %2347 = vmatprep.subr.mxu0 0.0
    %2348 = vmatpush1.msra.mxu0 0.0
    %2349 = vmatprep.subr.mxu0 0.0
    %2350 = vmatpush1.msra.mxu0 0.0
    %2351 = vmatprep.subr.mxu0 0.0
    %2352 = vmatpush1.msra.mxu0 0.0
    %2353 = vmatprep.subr.mxu0 0.0
    %2354 = vmatpush1.msra.mxu0 0.0
    %2355 = vmatprep.subr.mxu0 0.0
    %2356 = vmatpush1.msra.mxu0 0.0
    %2357 = vmatprep.subr.mxu0 0.0
    %2358 = vmatpush1.msra.mxu0 0.0
    %2359 = vmatprep.subr.mxu0 0.0
    %2360 = vmatpush1.msra.mxu0 0.0
    %2361 = vmatprep.subr.mxu0 0.0
    %2362 = vmatpush1.msra.mxu0 0.0
    %2363 = vmatprep.subr.mxu0 0.0
    %2364 = vmatpush1.msra.mxu0 0.0
    %2365 = vmatprep.subr.mxu0 0.0
    %2366 = vmatpush1.msra.mxu0 0.0
    %2367 = vmatprep.subr.mxu0 0.0
    %2368 = vmatpush1.msra.mxu0 0.0
    %2369 = vmatprep.subr.mxu0 0.0
    %2370 = vmatpush1.msra.mxu0 0.0
    %2371 = vmatprep.subr.mxu0 0.0
    %2372 = vmatpush1.msra.mxu0 0.0
    %2373 = vmatprep.subr.mxu0 0.0
    %2374 = vmatpush1.msra.mxu0 0.0
    %2375 = vmatprep.subr.mxu0 0.0
    %2376 = vmatpush1.msra.mxu0 0.0
    %2377 = vmatprep.subr.mxu0 0.0
    %2378 = vmatpush1.msra.mxu0 0.0
    %2379 = vmatprep.subr.mxu0 0.0
    %2380 = vmatpush1.msra.mxu0 0.0
    %2381 = vmatprep.subr.mxu0 0.0
    %2382 = vmatpush1.msra.mxu0 0.0
    %2383 = vmatprep.subr.mxu0 0.0
    %2384 = vmatpush1.msra.mxu0 0.0
    %2385 = vmatprep.subr.mxu0 0.0
    %2386 = vmatpush1.msra.mxu0 0.0
    %2387 = vmatprep.subr.mxu0 0.0
    %2388 = vmatpush1.msra.mxu0 0.0
    %2389 = vmatprep.subr.mxu0 0.0
    %2390 = vmatpush1.msra.mxu0 0.0
    %2391 = vmatprep.subr.mxu0 0.0
    %2392 = vmatpush1.msra.mxu0 0.0
    %2393 = vmatprep.subr.mxu0 0.0
    %2394 = vmatpush1.msra.mxu0 0.0
    %2395 = vmatprep.subr.mxu0 0.0
    %2396 = vmatpush1.msra.mxu0 0.0
    %2397 = vmatprep.mubr.f32.mxu0 0.0
    %2398 = vmatmul.mubr.f32.gmra.mrb[0].mxu0 %v2331
    %v2399 = vpop.f32.mrb[0].mxu0
    %v2400 = vadd.f32 0.0, %v2399
    %v2401 = vpop.f32.mrb[0].mxu0
    %2402 = vdwg.mxu0
    %v2403 = vadd.f32 %v1899, %v2400
    %v2404 = vxor.u32 %v2403, 2147483648
    %v2405 = vmul.f32 %v2404, 1.442695
    %v2406 = vpow.pop %v2405
    %v2407 = vadd.f32 %v2406, 1.0
    %v2408 = vrcp.pop %v2407
    %v2409 = vmul.f32 1.0, %v2408
    %v2410 = vtanh.pop %v2403
    %v2412 = vrot.slane %v2320, 6
    %v2414 = vmul.f32 %v2409, %v2412
    %2416 = vrot.lane.b32.xlu0 %v2410, 64
    %v2417 = vpop.permute.xlu0 %2416
    %v2419 = vmul.f32 %v2409, %v2417
    %2421 = vrot.lane.b32.xlu0 %v2419, 32
    %v2422 = vpop.permute.xlu0 %2421
    %v2424 = vadd.f32 %v2414, %v2422
    %v2425 = vtanh.pop %v2424
    %2427 = vrot.lane.b32.xlu0 %v2425, 64
    %v2428 = vpop.permute.xlu0 %2427
    %v2430 = vmul.f32 %v2409, %v2428
    %2432 = vrot.lane.b32.xlu0 %v2430, 32
    %v2433 = vpop.permute.xlu0 %2432
    %v2434 = vsel %vm169, %v2433, 0
    %2436 = vmatprep.subr.mxu0 0.0
    %2437 = vmatpush1.msra.mxu0 %v1804
    %2438 = vmatprep.subr.mxu0 0.0
    %2439 = vmatpush1.msra.mxu0 %v1805
    %2440 = vmatprep.subr.mxu0 0.0
    %2441 = vmatpush1.msra.mxu0 %v1806
    %2442 = vmatprep.subr.mxu0 0.0
    %2443 = vmatpush1.msra.mxu0 %v1807
    %2444 = vmatprep.subr.mxu0 0.0
    %2445 = vmatpush1.msra.mxu0 0.0
    %2446 = vmatprep.subr.mxu0 0.0
    %2447 = vmatpush1.msra.mxu0 0.0
    %2448 = vmatprep.subr.mxu0 0.0
    %2449 = vmatpush1.msra.mxu0 0.0
    %2450 = vmatprep.subr.mxu0 0.0
    %2451 = vmatpush1.msra.mxu0 0.0
    %2452 = vmatprep.subr.mxu0 0.0
    %2453 = vmatpush1.msra.mxu0 0.0
    %2454 = vmatprep.subr.mxu0 0.0
    %2455 = vmatpush1.msra.mxu0 0.0
    %2456 = vmatprep.subr.mxu0 0.0
    %2457 = vmatpush1.msra.mxu0 0.0
    %2458 = vmatprep.subr.mxu0 0.0
    %2459 = vmatpush1.msra.mxu0 0.0
    %2460 = vmatprep.subr.mxu0 0.0
    %2461 = vmatpush1.msra.mxu0 0.0
    %2462 = vmatprep.subr.mxu0 0.0
    %2463 = vmatpush1.msra.mxu0 0.0
    %2464 = vmatprep.subr.mxu0 0.0
    %2465 = vmatpush1.msra.mxu0 0.0
    %2466 = vmatprep.subr.mxu0 0.0
    %2467 = vmatpush1.msra.mxu0 0.0
    %2468 = vmatprep.subr.mxu0 0.0
    %2469 = vmatpush1.msra.mxu0 0.0
    %2470 = vmatprep.subr.mxu0 0.0
    %2471 = vmatpush1.msra.mxu0 0.0
    %2472 = vmatprep.subr.mxu0 0.0
    %2473 = vmatpush1.msra.mxu0 0.0
    %2474 = vmatprep.subr.mxu0 0.0
    %2475 = vmatpush1.msra.mxu0 0.0
    %2476 = vmatprep.subr.mxu0 0.0
    %2477 = vmatpush1.msra.mxu0 0.0
    %2478 = vmatprep.subr.mxu0 0.0
    %2479 = vmatpush1.msra.mxu0 0.0
    %2480 = vmatprep.subr.mxu0 0.0
    %2481 = vmatpush1.msra.mxu0 0.0
    %2482 = vmatprep.subr.mxu0 0.0
    %2483 = vmatpush1.msra.mxu0 0.0
    %2484 = vmatprep.subr.mxu0 0.0
    %2485 = vmatpush1.msra.mxu0 0.0
    %2486 = vmatprep.subr.mxu0 0.0
    %2487 = vmatpush1.msra.mxu0 0.0
    %2488 = vmatprep.subr.mxu0 0.0
    %2489 = vmatpush1.msra.mxu0 0.0
    %2490 = vmatprep.subr.mxu0 0.0
    %2491 = vmatpush1.msra.mxu0 0.0
    %2492 = vmatprep.subr.mxu0 0.0
    %2493 = vmatpush1.msra.mxu0 0.0
    %2494 = vmatprep.subr.mxu0 0.0
    %2495 = vmatpush1.msra.mxu0 0.0
    %2496 = vmatprep.subr.mxu0 0.0
    %2497 = vmatpush1.msra.mxu0 0.0
    %2498 = vmatprep.subr.mxu0 0.0
    %2499 = vmatpush1.msra.mxu0 0.0
    %2500 = vmatprep.mubr.f32.mxu0 0.0
    %2501 = vmatmul.mubr.f32.gmra.mrb[0].mxu0 %v2434
    %v2502 = vpop.f32.mrb[0].mxu0
    %v2503 = vadd.f32 0.0, %v2502
    %v2504 = vpop.f32.mrb[0].mxu0
    %2505 = vdwg.mxu0
    %v2507 = vrot.slane %v2503, 6
    %v2509 = vadd.f32 %v1899, %v2507
    %v2510 = vxor.u32 %v2509, 2147483648
    %v2511 = vmul.f32 %v2510, 1.442695
    %v2512 = vpow.pop %v2511
    %v2513 = vadd.f32 %v2512, 1.0
    %v2514 = vrcp.pop %v2513
    %v2515 = vmul.f32 1.0, %v2514
    %v2516 = vtanh.pop %v2509
    %v2518 = vrot.slane %v2424, 6
    %v2520 = vmul.f32 %v2515, %v2518
    %2522 = vrot.lane.b32.xlu0 %v2516, 64
    %v2523 = vpop.permute.xlu0 %2522
    %v2525 = vmul.f32 %v2515, %v2523
    %2527 = vrot.lane.b32.xlu0 %v2525, 32
    %v2528 = vpop.permute.xlu0 %2527
    %v2530 = vadd.f32 %v2520, %v2528
    %v2531 = vtanh.pop %v2530
    %2533 = vrot.lane.b32.xlu0 %v2531, 64
    %v2534 = vpop.permute.xlu0 %2533
    %v2536 = vmul.f32 %v2515, %v2534
    %v2538 = vrot.slane %v2536, 2
    %2539 = vrot.lane.b32.xlu0 %v2538, 32
    %v2540 = vpop.permute.xlu0 %2539
    %v2541 = vsel %vm169, %v2540, 0
    %2543 = vmatprep.subr.mxu0 0.0
    %2544 = vmatpush1.msra.mxu0 %v1804
    %2545 = vmatprep.subr.mxu0 0.0
    %2546 = vmatpush1.msra.mxu0 %v1805
    %2547 = vmatprep.subr.mxu0 0.0
    %2548 = vmatpush1.msra.mxu0 %v1806
    %2549 = vmatprep.subr.mxu0 0.0
    %2550 = vmatpush1.msra.mxu0 %v1807
    %2551 = vmatprep.subr.mxu0 0.0
    %2552 = vmatpush1.msra.mxu0 0.0
    %2553 = vmatprep.subr.mxu0 0.0
    %2554 = vmatpush1.msra.mxu0 0.0
    %2555 = vmatprep.subr.mxu0 0.0
    %2556 = vmatpush1.msra.mxu0 0.0
    %2557 = vmatprep.subr.mxu0 0.0
    %2558 = vmatpush1.msra.mxu0 0.0
    %2559 = vmatprep.subr.mxu0 0.0
    %2560 = vmatpush1.msra.mxu0 0.0
    %2561 = vmatprep.subr.mxu0 0.0
    %2562 = vmatpush1.msra.mxu0 0.0
    %2563 = vmatprep.subr.mxu0 0.0
    %2564 = vmatpush1.msra.mxu0 0.0
    %2565 = vmatprep.subr.mxu0 0.0
    %2566 = vmatpush1.msra.mxu0 0.0
    %2567 = vmatprep.subr.mxu0 0.0
    %2568 = vmatpush1.msra.mxu0 0.0
    %2569 = vmatprep.subr.mxu0 0.0
    %2570 = vmatpush1.msra.mxu0 0.0
    %2571 = vmatprep.subr.mxu0 0.0
    %2572 = vmatpush1.msra.mxu0 0.0
    %2573 = vmatprep.subr.mxu0 0.0
    %2574 = vmatpush1.msra.mxu0 0.0
    %2575 = vmatprep.subr.mxu0 0.0
    %2576 = vmatpush1.msra.mxu0 0.0
    %2577 = vmatprep.subr.mxu0 0.0
    %2578 = vmatpush1.msra.mxu0 0.0
    %2579 = vmatprep.subr.mxu0 0.0
    %2580 = vmatpush1.msra.mxu0 0.0
    %2581 = vmatprep.subr.mxu0 0.0
    %2582 = vmatpush1.msra.mxu0 0.0
    %2583 = vmatprep.subr.mxu0 0.0
    %2584 = vmatpush1.msra.mxu0 0.0
    %2585 = vmatprep.subr.mxu0 0.0
    %2586 = vmatpush1.msra.mxu0 0.0
    %2587 = vmatprep.subr.mxu0 0.0
    %2588 = vmatpush1.msra.mxu0 0.0
    %2589 = vmatprep.subr.mxu0 0.0
    %2590 = vmatpush1.msra.mxu0 0.0
    %2591 = vmatprep.subr.mxu0 0.0
    %2592 = vmatpush1.msra.mxu0 0.0
    %2593 = vmatprep.subr.mxu0 0.0
    %2594 = vmatpush1.msra.mxu0 0.0
    %2595 = vmatprep.subr.mxu0 0.0
    %2596 = vmatpush1.msra.mxu0 0.0
    %2597 = vmatprep.subr.mxu0 0.0
    %2598 = vmatpush1.msra.mxu0 0.0
    %2599 = vmatprep.subr.mxu0 0.0
    %2600 = vmatpush1.msra.mxu0 0.0
    %2601 = vmatprep.subr.mxu0 0.0
    %2602 = vmatpush1.msra.mxu0 0.0
    %2603 = vmatprep.subr.mxu0 0.0
    %2604 = vmatpush1.msra.mxu0 0.0
    %2605 = vmatprep.subr.mxu0 0.0
    %2606 = vmatpush1.msra.mxu0 0.0
    %2607 = vmatprep.mubr.f32.mxu0 0.0
    %2608 = vmatmul.mubr.f32.gmra.mrb[0].mxu0 %v2541
    %v2609 = vpop.f32.mrb[0].mxu0
    %v2610 = vadd.f32 0.0, %v2609
    %v2611 = vpop.f32.mrb[0].mxu0
    %2612 = vdwg.mxu0
    %v2614 = vrot.slane %v2610, 4
    %v2616 = vadd.f32 %v1899, %v2614
    %v2617 = vxor.u32 %v2616, 2147483648
    %v2618 = vmul.f32 %v2617, 1.442695
    %v2619 = vpow.pop %v2618
    %v2620 = vadd.f32 %v2619, 1.0
    %v2621 = vrcp.pop %v2620
    %v2622 = vmul.f32 1.0, %v2621
    %v2623 = vtanh.pop %v2616
    %v2625 = vrot.slane %v2530, 6
    %v2627 = vmul.f32 %v2622, %v2625
    %2629 = vrot.lane.b32.xlu0 %v2623, 64
    %v2630 = vpop.permute.xlu0 %2629
    %v2632 = vmul.f32 %v2622, %v2630
    %2634 = vrot.lane.b32.xlu0 %v2632, 32
    %v2635 = vpop.permute.xlu0 %2634
    %v2637 = vadd.f32 %v2627, %v2635
    %v2638 = vtanh.pop %v2637
    %2640 = vrot.lane.b32.xlu0 %v2638, 64
    %v2641 = vpop.permute.xlu0 %2640
    %v2643 = vmul.f32 %v2622, %v2641
    %v2645 = vrot.slane %v2643, 4
    %2646 = vrot.lane.b32.xlu0 %v2645, 32
    %v2647 = vpop.permute.xlu0 %2646
    %v2648 = vsel %vm169, %v2647, 0
    %2650 = vmatprep.subr.mxu0 0.0
    %2651 = vmatpush1.msra.mxu0 %v1804
    %2652 = vmatprep.subr.mxu0 0.0
    %2653 = vmatpush1.msra.mxu0 %v1805
    %2654 = vmatprep.subr.mxu0 0.0
    %2655 = vmatpush1.msra.mxu0 %v1806
    %2656 = vmatprep.subr.mxu0 0.0
    %2657 = vmatpush1.msra.mxu0 %v1807
    %2658 = vmatprep.subr.mxu0 0.0
    %2659 = vmatpush1.msra.mxu0 0.0
    %2660 = vmatprep.subr.mxu0 0.0
    %2661 = vmatpush1.msra.mxu0 0.0
    %2662 = vmatprep.subr.mxu0 0.0
    %2663 = vmatpush1.msra.mxu0 0.0
    %2664 = vmatprep.subr.mxu0 0.0
    %2665 = vmatpush1.msra.mxu0 0.0
    %2666 = vmatprep.subr.mxu0 0.0
    %2667 = vmatpush1.msra.mxu0 0.0
    %2668 = vmatprep.subr.mxu0 0.0
    %2669 = vmatpush1.msra.mxu0 0.0
    %2670 = vmatprep.subr.mxu0 0.0
    %2671 = vmatpush1.msra.mxu0 0.0
    %2672 = vmatprep.subr.mxu0 0.0
    %2673 = vmatpush1.msra.mxu0 0.0
    %2674 = vmatprep.subr.mxu0 0.0
    %2675 = vmatpush1.msra.mxu0 0.0
    %2676 = vmatprep.subr.mxu0 0.0
    %2677 = vmatpush1.msra.mxu0 0.0
    %2678 = vmatprep.subr.mxu0 0.0
    %2679 = vmatpush1.msra.mxu0 0.0
    %2680 = vmatprep.subr.mxu0 0.0
    %2681 = vmatpush1.msra.mxu0 0.0
    %2682 = vmatprep.subr.mxu0 0.0
    %2683 = vmatpush1.msra.mxu0 0.0
    %2684 = vmatprep.subr.mxu0 0.0
    %2685 = vmatpush1.msra.mxu0 0.0
    %2686 = vmatprep.subr.mxu0 0.0
    %2687 = vmatpush1.msra.mxu0 0.0
    %2688 = vmatprep.subr.mxu0 0.0
    %2689 = vmatpush1.msra.mxu0 0.0
    %2690 = vmatprep.subr.mxu0 0.0
    %2691 = vmatpush1.msra.mxu0 0.0
    %2692 = vmatprep.subr.mxu0 0.0
    %2693 = vmatpush1.msra.mxu0 0.0
    %2694 = vmatprep.subr.mxu0 0.0
    %2695 = vmatpush1.msra.mxu0 0.0
    %2696 = vmatprep.subr.mxu0 0.0
    %2697 = vmatpush1.msra.mxu0 0.0
    %2698 = vmatprep.subr.mxu0 0.0
    %2699 = vmatpush1.msra.mxu0 0.0
    %2700 = vmatprep.subr.mxu0 0.0
    %2701 = vmatpush1.msra.mxu0 0.0
    %2702 = vmatprep.subr.mxu0 0.0
    %2703 = vmatpush1.msra.mxu0 0.0
    %2704 = vmatprep.subr.mxu0 0.0
    %2705 = vmatpush1.msra.mxu0 0.0
    %2706 = vmatprep.subr.mxu0 0.0
    %2707 = vmatpush1.msra.mxu0 0.0
    %2708 = vmatprep.subr.mxu0 0.0
    %2709 = vmatpush1.msra.mxu0 0.0
    %2710 = vmatprep.subr.mxu0 0.0
    %2711 = vmatpush1.msra.mxu0 0.0
    %2712 = vmatprep.subr.mxu0 0.0
    %2713 = vmatpush1.msra.mxu0 0.0
    %2714 = vmatprep.mubr.f32.mxu0 0.0
    %2715 = vmatmul.mubr.f32.gmra.mrb[0].mxu0 %v2648
    %v2716 = vpop.f32.mrb[0].mxu0
    %v2717 = vadd.f32 0.0, %v2716
    %v2718 = vpop.f32.mrb[0].mxu0
    %2719 = vdwg.mxu0
    %v2721 = vrot.slane %v2717, 2
    %v2723 = vadd.f32 %v1899, %v2721
    %v2724 = vxor.u32 %v2723, 2147483648
    %v2725 = vmul.f32 %v2724, 1.442695
    %v2726 = vpow.pop %v2725
    %v2727 = vadd.f32 %v2726, 1.0
    %v2728 = vrcp.pop %v2727
    %v2729 = vmul.f32 1.0, %v2728
    %v2730 = vtanh.pop %v2723
    %v2732 = vrot.slane %v2637, 6
    %v2734 = vmul.f32 %v2729, %v2732
    %2736 = vrot.lane.b32.xlu0 %v2730, 64
    %v2737 = vpop.permute.xlu0 %2736
    %v2739 = vmul.f32 %v2729, %v2737
    %2741 = vrot.lane.b32.xlu0 %v2739, 32
    %v2742 = vpop.permute.xlu0 %2741
    %v2744 = vadd.f32 %v2734, %v2742
    %v2745 = vtanh.pop %v2744
    %2747 = vrot.lane.b32.xlu0 %v2745, 64
    %v2748 = vpop.permute.xlu0 %2747
    %v2750 = vmul.f32 %v2729, %v2748
    %v2752 = vrot.slane %v2750, 6
    %2753 = vrot.lane.b32.xlu0 %v2752, 32
    %v2754 = vpop.permute.xlu0 %2753
    %v2755 = vsel %vm169, %v2754, 0
    %2757 = vmatprep.subr.mxu0 0.0
    %2758 = vmatpush1.msra.mxu0 %v1804
    %2759 = vmatprep.subr.mxu0 0.0
    %2760 = vmatpush1.msra.mxu0 %v1805
    %2761 = vmatprep.subr.mxu0 0.0
    %2762 = vmatpush1.msra.mxu0 %v1806
    %2763 = vmatprep.subr.mxu0 0.0
    %2764 = vmatpush1.msra.mxu0 %v1807
    %2765 = vmatprep.subr.mxu0 0.0
    %2766 = vmatpush1.msra.mxu0 0.0
    %2767 = vmatprep.subr.mxu0 0.0
    %2768 = vmatpush1.msra.mxu0 0.0
    %2769 = vmatprep.subr.mxu0 0.0
    %2770 = vmatpush1.msra.mxu0 0.0
    %2771 = vmatprep.subr.mxu0 0.0
    %2772 = vmatpush1.msra.mxu0 0.0
    %2773 = vmatprep.subr.mxu0 0.0
    %2774 = vmatpush1.msra.mxu0 0.0
    %2775 = vmatprep.subr.mxu0 0.0
    %2776 = vmatpush1.msra.mxu0 0.0
    %2777 = vmatprep.subr.mxu0 0.0
    %2778 = vmatpush1.msra.mxu0 0.0
    %2779 = vmatprep.subr.mxu0 0.0
    %2780 = vmatpush1.msra.mxu0 0.0
    %2781 = vmatprep.subr.mxu0 0.0
    %2782 = vmatpush1.msra.mxu0 0.0
    %2783 = vmatprep.subr.mxu0 0.0
    %2784 = vmatpush1.msra.mxu0 0.0
    %2785 = vmatprep.subr.mxu0 0.0
    %2786 = vmatpush1.msra.mxu0 0.0
    %2787 = vmatprep.subr.mxu0 0.0
    %2788 = vmatpush1.msra.mxu0 0.0
    %2789 = vmatprep.subr.mxu0 0.0
    %2790 = vmatpush1.msra.mxu0 0.0
    %2791 = vmatprep.subr.mxu0 0.0
    %2792 = vmatpush1.msra.mxu0 0.0
    %2793 = vmatprep.subr.mxu0 0.0
    %2794 = vmatpush1.msra.mxu0 0.0
    %2795 = vmatprep.subr.mxu0 0.0
    %2796 = vmatpush1.msra.mxu0 0.0
    %2797 = vmatprep.subr.mxu0 0.0
    %2798 = vmatpush1.msra.mxu0 0.0
    %2799 = vmatprep.subr.mxu0 0.0
    %2800 = vmatpush1.msra.mxu0 0.0
    %2801 = vmatprep.subr.mxu0 0.0
    %2802 = vmatpush1.msra.mxu0 0.0
    %2803 = vmatprep.subr.mxu0 0.0
    %2804 = vmatpush1.msra.mxu0 0.0
    %2805 = vmatprep.subr.mxu0 0.0
    %2806 = vmatpush1.msra.mxu0 0.0
    %2807 = vmatprep.subr.mxu0 0.0
    %2808 = vmatpush1.msra.mxu0 0.0
    %2809 = vmatprep.subr.mxu0 0.0
    %2810 = vmatpush1.msra.mxu0 0.0
    %2811 = vmatprep.subr.mxu0 0.0
    %2812 = vmatpush1.msra.mxu0 0.0
    %2813 = vmatprep.subr.mxu0 0.0
    %2814 = vmatpush1.msra.mxu0 0.0
    %2815 = vmatprep.subr.mxu0 0.0
    %2816 = vmatpush1.msra.mxu0 0.0
    %2817 = vmatprep.subr.mxu0 0.0
    %2818 = vmatpush1.msra.mxu0 0.0
    %2819 = vmatprep.subr.mxu0 0.0
    %2820 = vmatpush1.msra.mxu0 0.0
    %2821 = vmatprep.mubr.f32.mxu0 0.0
    %2822 = vmatmul.mubr.f32.gmra.mrb[0].mxu0 %v2755
    %v2823 = vpop.f32.mrb[0].mxu0
    %v2824 = vadd.f32 0.0, %v2823
    %v2825 = vpop.f32.mrb[0].mxu0
    %2826 = vdwg.mxu0
    %v2827 = vadd.f32 %v1904, %v2824
    %v2828 = vxor.u32 %v2827, 2147483648
    %v2829 = vmul.f32 %v2828, 1.442695
    %v2830 = vpow.pop %v2829
    %v2831 = vadd.f32 %v2830, 1.0
    %v2832 = vrcp.pop %v2831
    %v2833 = vmul.f32 1.0, %v2832
    %v2834 = vtanh.pop %v2827
    %v2836 = vrot.slane %v2744, 6
    %v2838 = vmul.f32 %v2833, %v2836
    %2840 = vrot.lane.b32.xlu0 %v2834, 64
    %v2841 = vpop.permute.xlu0 %2840
    %v2843 = vmul.f32 %v2833, %v2841
    %2845 = vrot.lane.b32.xlu0 %v2843, 32
    %v2846 = vpop.permute.xlu0 %2845
    %v2848 = vadd.f32 %v2838, %v2846
    %v2849 = vtanh.pop %v2848
    %2851 = vrot.lane.b32.xlu0 %v2849, 64
    %v2852 = vpop.permute.xlu0 %2851
    %v2854 = vmul.f32 %v2833, %v2852
    %2856 = vrot.lane.b32.xlu0 %v2854, 32
    %v2857 = vpop.permute.xlu0 %2856
    %v2858 = vsel %vm169, %v2857, 0
    %2860 = vmatprep.subr.mxu0 0.0
    %2861 = vmatpush1.msra.mxu0 %v1804
    %2862 = vmatprep.subr.mxu0 0.0
    %2863 = vmatpush1.msra.mxu0 %v1805
    %2864 = vmatprep.subr.mxu0 0.0
    %2865 = vmatpush1.msra.mxu0 %v1806
    %2866 = vmatprep.subr.mxu0 0.0
    %2867 = vmatpush1.msra.mxu0 %v1807
    %2868 = vmatprep.subr.mxu0 0.0
    %2869 = vmatpush1.msra.mxu0 0.0
    %2870 = vmatprep.subr.mxu0 0.0
    %2871 = vmatpush1.msra.mxu0 0.0
    %2872 = vmatprep.subr.mxu0 0.0
    %2873 = vmatpush1.msra.mxu0 0.0
    %2874 = vmatprep.subr.mxu0 0.0
    %2875 = vmatpush1.msra.mxu0 0.0
    %2876 = vmatprep.subr.mxu0 0.0
    %2877 = vmatpush1.msra.mxu0 0.0
    %2878 = vmatprep.subr.mxu0 0.0
    %2879 = vmatpush1.msra.mxu0 0.0
    %2880 = vmatprep.subr.mxu0 0.0
    %2881 = vmatpush1.msra.mxu0 0.0
    %2882 = vmatprep.subr.mxu0 0.0
    %2883 = vmatpush1.msra.mxu0 0.0
    %2884 = vmatprep.subr.mxu0 0.0
    %2885 = vmatpush1.msra.mxu0 0.0
    %2886 = vmatprep.subr.mxu0 0.0
    %2887 = vmatpush1.msra.mxu0 0.0
    %2888 = vmatprep.subr.mxu0 0.0
    %2889 = vmatpush1.msra.mxu0 0.0
    %2890 = vmatprep.subr.mxu0 0.0
    %2891 = vmatpush1.msra.mxu0 0.0
    %2892 = vmatprep.subr.mxu0 0.0
    %2893 = vmatpush1.msra.mxu0 0.0
    %2894 = vmatprep.subr.mxu0 0.0
    %2895 = vmatpush1.msra.mxu0 0.0
    %2896 = vmatprep.subr.mxu0 0.0
    %2897 = vmatpush1.msra.mxu0 0.0
    %2898 = vmatprep.subr.mxu0 0.0
    %2899 = vmatpush1.msra.mxu0 0.0
    %2900 = vmatprep.subr.mxu0 0.0
    %2901 = vmatpush1.msra.mxu0 0.0
    %2902 = vmatprep.subr.mxu0 0.0
    %2903 = vmatpush1.msra.mxu0 0.0
    %2904 = vmatprep.subr.mxu0 0.0
    %2905 = vmatpush1.msra.mxu0 0.0
    %2906 = vmatprep.subr.mxu0 0.0
    %2907 = vmatpush1.msra.mxu0 0.0
    %2908 = vmatprep.subr.mxu0 0.0
    %2909 = vmatpush1.msra.mxu0 0.0
    %2910 = vmatprep.subr.mxu0 0.0
    %2911 = vmatpush1.msra.mxu0 0.0
    %2912 = vmatprep.subr.mxu0 0.0
    %2913 = vmatpush1.msra.mxu0 0.0
    %2914 = vmatprep.subr.mxu0 0.0
    %2915 = vmatpush1.msra.mxu0 0.0
    %2916 = vmatprep.subr.mxu0 0.0
    %2917 = vmatpush1.msra.mxu0 0.0
    %2918 = vmatprep.subr.mxu0 0.0
    %2919 = vmatpush1.msra.mxu0 0.0
    %2920 = vmatprep.subr.mxu0 0.0
    %2921 = vmatpush1.msra.mxu0 0.0
    %2922 = vmatprep.subr.mxu0 0.0
    %2923 = vmatpush1.msra.mxu0 0.0
    %2924 = vmatprep.mubr.f32.mxu0 0.0
    %2925 = vmatmul.mubr.f32.gmra.mrb[0].mxu0 %v2858
    %v2926 = vpop.f32.mrb[0].mxu0
    %v2927 = vadd.f32 0.0, %v2926
    %v2928 = vpop.f32.mrb[0].mxu0
    %2929 = vdwg.mxu0
    %v2931 = vrot.slane %v2927, 6
    %v2933 = vadd.f32 %v1904, %v2931
    %v2934 = vxor.u32 %v2933, 2147483648
    %v2935 = vmul.f32 %v2934, 1.442695
    %v2936 = vpow.pop %v2935
    %v2937 = vadd.f32 %v2936, 1.0
    %v2938 = vrcp.pop %v2937
    %v2939 = vmul.f32 1.0, %v2938
    %v2940 = vtanh.pop %v2933
    %v2942 = vrot.slane %v2848, 6
    %v2944 = vmul.f32 %v2939, %v2942
    %2946 = vrot.lane.b32.xlu0 %v2940, 64
    %v2947 = vpop.permute.xlu0 %2946
    %v2949 = vmul.f32 %v2939, %v2947
    %2951 = vrot.lane.b32.xlu0 %v2949, 32
    %v2952 = vpop.permute.xlu0 %2951
    %v2954 = vadd.f32 %v2944, %v2952
    %v2955 = vtanh.pop %v2954
    %2957 = vrot.lane.b32.xlu0 %v2955, 64
    %v2958 = vpop.permute.xlu0 %2957
    %v2960 = vmul.f32 %v2939, %v2958
    %v2962 = vrot.slane %v2960, 2
    %2963 = vrot.lane.b32.xlu0 %v2962, 32
    %v2964 = vpop.permute.xlu0 %2963
    %v2965 = vsel %vm169, %v2964, 0
    %2967 = vmatprep.subr.mxu0 0.0
    %2968 = vmatpush1.msra.mxu0 %v1804
    %2969 = vmatprep.subr.mxu0 0.0
    %2970 = vmatpush1.msra.mxu0 %v1805
    %2971 = vmatprep.subr.mxu0 0.0
    %2972 = vmatpush1.msra.mxu0 %v1806
    %2973 = vmatprep.subr.mxu0 0.0
    %2974 = vmatpush1.msra.mxu0 %v1807
    %2975 = vmatprep.subr.mxu0 0.0
    %2976 = vmatpush1.msra.mxu0 0.0
    %2977 = vmatprep.subr.mxu0 0.0
    %2978 = vmatpush1.msra.mxu0 0.0
    %2979 = vmatprep.subr.mxu0 0.0
    %2980 = vmatpush1.msra.mxu0 0.0
    %2981 = vmatprep.subr.mxu0 0.0
    %2982 = vmatpush1.msra.mxu0 0.0
    %2983 = vmatprep.subr.mxu0 0.0
    %2984 = vmatpush1.msra.mxu0 0.0
    %2985 = vmatprep.subr.mxu0 0.0
    %2986 = vmatpush1.msra.mxu0 0.0
    %2987 = vmatprep.subr.mxu0 0.0
    %2988 = vmatpush1.msra.mxu0 0.0
    %2989 = vmatprep.subr.mxu0 0.0
    %2990 = vmatpush1.msra.mxu0 0.0
    %2991 = vmatprep.subr.mxu0 0.0
    %2992 = vmatpush1.msra.mxu0 0.0
    %2993 = vmatprep.subr.mxu0 0.0
    %2994 = vmatpush1.msra.mxu0 0.0
    %2995 = vmatprep.subr.mxu0 0.0
    %2996 = vmatpush1.msra.mxu0 0.0
    %2997 = vmatprep.subr.mxu0 0.0
    %2998 = vmatpush1.msra.mxu0 0.0
    %2999 = vmatprep.subr.mxu0 0.0
    %3000 = vmatpush1.msra.mxu0 0.0
    %3001 = vmatprep.subr.mxu0 0.0
    %3002 = vmatpush1.msra.mxu0 0.0
    %3003 = vmatprep.subr.mxu0 0.0
    %3004 = vmatpush1.msra.mxu0 0.0
    %3005 = vmatprep.subr.mxu0 0.0
    %3006 = vmatpush1.msra.mxu0 0.0
    %3007 = vmatprep.subr.mxu0 0.0
    %3008 = vmatpush1.msra.mxu0 0.0
    %3009 = vmatprep.subr.mxu0 0.0
    %3010 = vmatpush1.msra.mxu0 0.0
    %3011 = vmatprep.subr.mxu0 0.0
    %3012 = vmatpush1.msra.mxu0 0.0
    %3013 = vmatprep.subr.mxu0 0.0
    %3014 = vmatpush1.msra.mxu0 0.0
    %3015 = vmatprep.subr.mxu0 0.0
    %3016 = vmatpush1.msra.mxu0 0.0
    %3017 = vmatprep.subr.mxu0 0.0
    %3018 = vmatpush1.msra.mxu0 0.0
    %3019 = vmatprep.subr.mxu0 0.0
    %3020 = vmatpush1.msra.mxu0 0.0
    %3021 = vmatprep.subr.mxu0 0.0
    %3022 = vmatpush1.msra.mxu0 0.0
    %3023 = vmatprep.subr.mxu0 0.0
    %3024 = vmatpush1.msra.mxu0 0.0
    %3025 = vmatprep.subr.mxu0 0.0
    %3026 = vmatpush1.msra.mxu0 0.0
    %3027 = vmatprep.subr.mxu0 0.0
    %3028 = vmatpush1.msra.mxu0 0.0
    %3029 = vmatprep.subr.mxu0 0.0
    %3030 = vmatpush1.msra.mxu0 0.0
    %3031 = vmatprep.mubr.f32.mxu0 0.0
    %3032 = vmatmul.mubr.f32.gmra.mrb[0].mxu0 %v2965
    %v3033 = vpop.f32.mrb[0].mxu0
    %v3034 = vadd.f32 0.0, %v3033
    %v3035 = vpop.f32.mrb[0].mxu0
    %3036 = vdwg.mxu0
    %v3038 = vrot.slane %v3034, 4
    %v3040 = vadd.f32 %v1904, %v3038
    %v3041 = vxor.u32 %v3040, 2147483648
    %v3042 = vmul.f32 %v3041, 1.442695
    %v3043 = vpow.pop %v3042
    %v3044 = vadd.f32 %v3043, 1.0
    %v3045 = vrcp.pop %v3044
    %v3046 = vmul.f32 1.0, %v3045
    %v3047 = vtanh.pop %v3040
    %v3049 = vrot.slane %v2954, 6
    %v3051 = vmul.f32 %v3046, %v3049
    %3053 = vrot.lane.b32.xlu0 %v3047, 64
    %v3054 = vpop.permute.xlu0 %3053
    %v3056 = vmul.f32 %v3046, %v3054
    %3058 = vrot.lane.b32.xlu0 %v3056, 32
    %v3059 = vpop.permute.xlu0 %3058
    %v3061 = vadd.f32 %v3051, %v3059
    %v3062 = vtanh.pop %v3061
    %3064 = vrot.lane.b32.xlu0 %v3062, 64
    %v3065 = vpop.permute.xlu0 %3064
    %v3067 = vmul.f32 %v3046, %v3065
    %v3069 = vrot.slane %v3067, 4
    %3070 = vrot.lane.b32.xlu0 %v3069, 32
    %v3071 = vpop.permute.xlu0 %3070
    %v3072 = vsel %vm169, %v3071, 0
    %3074 = vmatprep.subr.mxu0 0.0
    %3075 = vmatpush1.msra.mxu0 %v1804
    %3076 = vmatprep.subr.mxu0 0.0
    %3077 = vmatpush1.msra.mxu0 %v1805
    %3078 = vmatprep.subr.mxu0 0.0
    %3079 = vmatpush1.msra.mxu0 %v1806
    %3080 = vmatprep.subr.mxu0 0.0
    %3081 = vmatpush1.msra.mxu0 %v1807
    %3082 = vmatprep.subr.mxu0 0.0
    %3083 = vmatpush1.msra.mxu0 0.0
    %3084 = vmatprep.subr.mxu0 0.0
    %3085 = vmatpush1.msra.mxu0 0.0
    %3086 = vmatprep.subr.mxu0 0.0
    %3087 = vmatpush1.msra.mxu0 0.0
    %3088 = vmatprep.subr.mxu0 0.0
    %3089 = vmatpush1.msra.mxu0 0.0
    %3090 = vmatprep.subr.mxu0 0.0
    %3091 = vmatpush1.msra.mxu0 0.0
    %3092 = vmatprep.subr.mxu0 0.0
    %3093 = vmatpush1.msra.mxu0 0.0
    %3094 = vmatprep.subr.mxu0 0.0
    %3095 = vmatpush1.msra.mxu0 0.0
    %3096 = vmatprep.subr.mxu0 0.0
    %3097 = vmatpush1.msra.mxu0 0.0
    %3098 = vmatprep.subr.mxu0 0.0
    %3099 = vmatpush1.msra.mxu0 0.0
    %3100 = vmatprep.subr.mxu0 0.0
    %3101 = vmatpush1.msra.mxu0 0.0
    %3102 = vmatprep.subr.mxu0 0.0
    %3103 = vmatpush1.msra.mxu0 0.0
    %3104 = vmatprep.subr.mxu0 0.0
    %3105 = vmatpush1.msra.mxu0 0.0
    %3106 = vmatprep.subr.mxu0 0.0
    %3107 = vmatpush1.msra.mxu0 0.0
    %3108 = vmatprep.subr.mxu0 0.0
    %3109 = vmatpush1.msra.mxu0 0.0
    %3110 = vmatprep.subr.mxu0 0.0
    %3111 = vmatpush1.msra.mxu0 0.0
    %3112 = vmatprep.subr.mxu0 0.0
    %3113 = vmatpush1.msra.mxu0 0.0
    %3114 = vmatprep.subr.mxu0 0.0
    %3115 = vmatpush1.msra.mxu0 0.0
    %3116 = vmatprep.subr.mxu0 0.0
    %3117 = vmatpush1.msra.mxu0 0.0
    %3118 = vmatprep.subr.mxu0 0.0
    %3119 = vmatpush1.msra.mxu0 0.0
    %3120 = vmatprep.subr.mxu0 0.0
    %3121 = vmatpush1.msra.mxu0 0.0
    %3122 = vmatprep.subr.mxu0 0.0
    %3123 = vmatpush1.msra.mxu0 0.0
    %3124 = vmatprep.subr.mxu0 0.0
    %3125 = vmatpush1.msra.mxu0 0.0
    %3126 = vmatprep.subr.mxu0 0.0
    %3127 = vmatpush1.msra.mxu0 0.0
    %3128 = vmatprep.subr.mxu0 0.0
    %3129 = vmatpush1.msra.mxu0 0.0
    %3130 = vmatprep.subr.mxu0 0.0
    %3131 = vmatpush1.msra.mxu0 0.0
    %3132 = vmatprep.subr.mxu0 0.0
    %3133 = vmatpush1.msra.mxu0 0.0
    %3134 = vmatprep.subr.mxu0 0.0
    %3135 = vmatpush1.msra.mxu0 0.0
    %3136 = vmatprep.subr.mxu0 0.0
    %3137 = vmatpush1.msra.mxu0 0.0
    %3138 = vmatprep.mubr.f32.mxu0 0.0
    %3139 = vmatmul.mubr.f32.gmra.mrb[0].mxu0 %v3072
    %v3140 = vpop.f32.mrb[0].mxu0
    %v3141 = vadd.f32 0.0, %v3140
    %v3142 = vpop.f32.mrb[0].mxu0
    %3143 = vdwg.mxu0
    %v3145 = vrot.slane %v3141, 2
    %v3147 = vadd.f32 %v1904, %v3145
    %v3148 = vxor.u32 %v3147, 2147483648
    %v3149 = vmul.f32 %v3148, 1.442695
    %v3150 = vpow.pop %v3149
    %v3151 = vadd.f32 %v3150, 1.0
    %v3152 = vrcp.pop %v3151
    %v3153 = vmul.f32 1.0, %v3152
    %v3154 = vtanh.pop %v3147
    %v3156 = vrot.slane %v3061, 6
    %v3158 = vmul.f32 %v3153, %v3156
    %3160 = vrot.lane.b32.xlu0 %v3154, 64
    %v3161 = vpop.permute.xlu0 %3160
    %v3163 = vmul.f32 %v3153, %v3161
    %3165 = vrot.lane.b32.xlu0 %v3163, 32
    %v3166 = vpop.permute.xlu0 %3165
    %v3168 = vadd.f32 %v3158, %v3166
    %v3169 = vtanh.pop %v3168
    %3171 = vrot.lane.b32.xlu0 %v3169, 64
    %v3172 = vpop.permute.xlu0 %3171
    %v3174 = vmul.f32 %v3153, %v3172
    %v3176 = vrot.slane %v3174, 6
    %3177 = vrot.lane.b32.xlu0 %v3176, 32
    %v3178 = vpop.permute.xlu0 %3177
    %v3179 = vsel %vm169, %v3178, 0
    %3181 = vmatprep.subr.mxu0 0.0
    %3182 = vmatpush1.msra.mxu0 %v1804
    %3183 = vmatprep.subr.mxu0 0.0
    %3184 = vmatpush1.msra.mxu0 %v1805
    %3185 = vmatprep.subr.mxu0 0.0
    %3186 = vmatpush1.msra.mxu0 %v1806
    %3187 = vmatprep.subr.mxu0 0.0
    %3188 = vmatpush1.msra.mxu0 %v1807
    %3189 = vmatprep.subr.mxu0 0.0
    %3190 = vmatpush1.msra.mxu0 0.0
    %3191 = vmatprep.subr.mxu0 0.0
    %3192 = vmatpush1.msra.mxu0 0.0
    %3193 = vmatprep.subr.mxu0 0.0
    %3194 = vmatpush1.msra.mxu0 0.0
    %3195 = vmatprep.subr.mxu0 0.0
    %3196 = vmatpush1.msra.mxu0 0.0
    %3197 = vmatprep.subr.mxu0 0.0
    %3198 = vmatpush1.msra.mxu0 0.0
    %3199 = vmatprep.subr.mxu0 0.0
    %3200 = vmatpush1.msra.mxu0 0.0
    %3201 = vmatprep.subr.mxu0 0.0
    %3202 = vmatpush1.msra.mxu0 0.0
    %3203 = vmatprep.subr.mxu0 0.0
    %3204 = vmatpush1.msra.mxu0 0.0
    %3205 = vmatprep.subr.mxu0 0.0
    %3206 = vmatpush1.msra.mxu0 0.0
    %3207 = vmatprep.subr.mxu0 0.0
    %3208 = vmatpush1.msra.mxu0 0.0
    %3209 = vmatprep.subr.mxu0 0.0
    %3210 = vmatpush1.msra.mxu0 0.0
    %3211 = vmatprep.subr.mxu0 0.0
    %3212 = vmatpush1.msra.mxu0 0.0
    %3213 = vmatprep.subr.mxu0 0.0
    %3214 = vmatpush1.msra.mxu0 0.0
    %3215 = vmatprep.subr.mxu0 0.0
    %3216 = vmatpush1.msra.mxu0 0.0
    %3217 = vmatprep.subr.mxu0 0.0
    %3218 = vmatpush1.msra.mxu0 0.0
    %3219 = vmatprep.subr.mxu0 0.0
    %3220 = vmatpush1.msra.mxu0 0.0
    %3221 = vmatprep.subr.mxu0 0.0
    %3222 = vmatpush1.msra.mxu0 0.0
    %3223 = vmatprep.subr.mxu0 0.0
    %3224 = vmatpush1.msra.mxu0 0.0
    %3225 = vmatprep.subr.mxu0 0.0
    %3226 = vmatpush1.msra.mxu0 0.0
    %3227 = vmatprep.subr.mxu0 0.0
    %3228 = vmatpush1.msra.mxu0 0.0
    %3229 = vmatprep.subr.mxu0 0.0
    %3230 = vmatpush1.msra.mxu0 0.0
    %3231 = vmatprep.subr.mxu0 0.0
    %3232 = vmatpush1.msra.mxu0 0.0
    %3233 = vmatprep.subr.mxu0 0.0
    %3234 = vmatpush1.msra.mxu0 0.0
    %3235 = vmatprep.subr.mxu0 0.0
    %3236 = vmatpush1.msra.mxu0 0.0
    %3237 = vmatprep.subr.mxu0 0.0
    %3238 = vmatpush1.msra.mxu0 0.0
    %3239 = vmatprep.subr.mxu0 0.0
    %3240 = vmatpush1.msra.mxu0 0.0
    %3241 = vmatprep.subr.mxu0 0.0
    %3242 = vmatpush1.msra.mxu0 0.0
    %3243 = vmatprep.subr.mxu0 0.0
    %3244 = vmatpush1.msra.mxu0 0.0
    %3245 = vmatprep.mubr.f32.mxu0 0.0
    %3246 = vmatmul.mubr.f32.gmra.mrb[0].mxu0 %v3179
    %v3247 = vpop.f32.mrb[0].mxu0
    %v3248 = vadd.f32 0.0, %v3247
    %v3249 = vpop.f32.mrb[0].mxu0
    %3250 = vdwg.mxu0
    %v3251 = vadd.f32 %v1909, %v3248
    %v3252 = vxor.u32 %v3251, 2147483648
    %v3253 = vmul.f32 %v3252, 1.442695
    %v3254 = vpow.pop %v3253
    %v3255 = vadd.f32 %v3254, 1.0
    %v3256 = vrcp.pop %v3255
    %v3257 = vmul.f32 1.0, %v3256
    %v3258 = vtanh.pop %v3251
    %v3260 = vrot.slane %v3168, 6
    %v3262 = vmul.f32 %v3257, %v3260
    %3264 = vrot.lane.b32.xlu0 %v3258, 64
    %v3265 = vpop.permute.xlu0 %3264
    %v3267 = vmul.f32 %v3257, %v3265
    %3269 = vrot.lane.b32.xlu0 %v3267, 32
    %v3270 = vpop.permute.xlu0 %3269
    %v3272 = vadd.f32 %v3262, %v3270
    %v3273 = vtanh.pop %v3272
    %3275 = vrot.lane.b32.xlu0 %v3273, 64
    %v3276 = vpop.permute.xlu0 %3275
    %v3278 = vmul.f32 %v3257, %v3276
    %3280 = vrot.lane.b32.xlu0 %v3278, 32
    %v3281 = vpop.permute.xlu0 %3280
    %v3282 = vsel %vm169, %v3281, 0
    %3284 = vmatprep.subr.mxu0 0.0
    %3285 = vmatpush1.msra.mxu0 %v1804
    %3286 = vmatprep.subr.mxu0 0.0
    %3287 = vmatpush1.msra.mxu0 %v1805
    %3288 = vmatprep.subr.mxu0 0.0
    %3289 = vmatpush1.msra.mxu0 %v1806
    %3290 = vmatprep.subr.mxu0 0.0
    %3291 = vmatpush1.msra.mxu0 %v1807
    %3292 = vmatprep.subr.mxu0 0.0
    %3293 = vmatpush1.msra.mxu0 0.0
    %3294 = vmatprep.subr.mxu0 0.0
    %3295 = vmatpush1.msra.mxu0 0.0
    %3296 = vmatprep.subr.mxu0 0.0
    %3297 = vmatpush1.msra.mxu0 0.0
    %3298 = vmatprep.subr.mxu0 0.0
    %3299 = vmatpush1.msra.mxu0 0.0
    %3300 = vmatprep.subr.mxu0 0.0
    %3301 = vmatpush1.msra.mxu0 0.0
    %3302 = vmatprep.subr.mxu0 0.0
    %3303 = vmatpush1.msra.mxu0 0.0
    %3304 = vmatprep.subr.mxu0 0.0
    %3305 = vmatpush1.msra.mxu0 0.0
    %3306 = vmatprep.subr.mxu0 0.0
    %3307 = vmatpush1.msra.mxu0 0.0
    %3308 = vmatprep.subr.mxu0 0.0
    %3309 = vmatpush1.msra.mxu0 0.0
    %3310 = vmatprep.subr.mxu0 0.0
    %3311 = vmatpush1.msra.mxu0 0.0
    %3312 = vmatprep.subr.mxu0 0.0
    %3313 = vmatpush1.msra.mxu0 0.0
    %3314 = vmatprep.subr.mxu0 0.0
    %3315 = vmatpush1.msra.mxu0 0.0
    %3316 = vmatprep.subr.mxu0 0.0
    %3317 = vmatpush1.msra.mxu0 0.0
    %3318 = vmatprep.subr.mxu0 0.0
    %3319 = vmatpush1.msra.mxu0 0.0
    %3320 = vmatprep.subr.mxu0 0.0
    %3321 = vmatpush1.msra.mxu0 0.0
    %3322 = vmatprep.subr.mxu0 0.0
    %3323 = vmatpush1.msra.mxu0 0.0
    %3324 = vmatprep.subr.mxu0 0.0
    %3325 = vmatpush1.msra.mxu0 0.0
    %3326 = vmatprep.subr.mxu0 0.0
    %3327 = vmatpush1.msra.mxu0 0.0
    %3328 = vmatprep.subr.mxu0 0.0
    %3329 = vmatpush1.msra.mxu0 0.0
    %3330 = vmatprep.subr.mxu0 0.0
    %3331 = vmatpush1.msra.mxu0 0.0
    %3332 = vmatprep.subr.mxu0 0.0
    %3333 = vmatpush1.msra.mxu0 0.0
    %3334 = vmatprep.subr.mxu0 0.0
    %3335 = vmatpush1.msra.mxu0 0.0
    %3336 = vmatprep.subr.mxu0 0.0
    %3337 = vmatpush1.msra.mxu0 0.0
    %3338 = vmatprep.subr.mxu0 0.0
    %3339 = vmatpush1.msra.mxu0 0.0
    %3340 = vmatprep.subr.mxu0 0.0
    %3341 = vmatpush1.msra.mxu0 0.0
    %3342 = vmatprep.subr.mxu0 0.0
    %3343 = vmatpush1.msra.mxu0 0.0
    %3344 = vmatprep.subr.mxu0 0.0
    %3345 = vmatpush1.msra.mxu0 0.0
    %3346 = vmatprep.subr.mxu0 0.0
    %3347 = vmatpush1.msra.mxu0 0.0
    %3348 = vmatprep.mubr.f32.mxu0 0.0
    %3349 = vmatmul.mubr.f32.gmra.mrb[0].mxu0 %v3282
    %v3350 = vpop.f32.mrb[0].mxu0
    %v3351 = vadd.f32 0.0, %v3350
    %v3352 = vpop.f32.mrb[0].mxu0
    %3353 = vdwg.mxu0
    %v3355 = vrot.slane %v3351, 6
    %v3357 = vadd.f32 %v1909, %v3355
    %v3358 = vxor.u32 %v3357, 2147483648
    %v3359 = vmul.f32 %v3358, 1.442695
    %v3360 = vpow.pop %v3359
    %v3361 = vadd.f32 %v3360, 1.0
    %v3362 = vrcp.pop %v3361
    %v3363 = vmul.f32 1.0, %v3362
    %v3364 = vtanh.pop %v3357
    %v3366 = vrot.slane %v3272, 6
    %v3368 = vmul.f32 %v3363, %v3366
    %3370 = vrot.lane.b32.xlu0 %v3364, 64
    %v3371 = vpop.permute.xlu0 %3370
    %v3373 = vmul.f32 %v3363, %v3371
    %3375 = vrot.lane.b32.xlu0 %v3373, 32
    %v3376 = vpop.permute.xlu0 %3375
    %v3378 = vadd.f32 %v3368, %v3376
    %v3379 = vtanh.pop %v3378
    %3381 = vrot.lane.b32.xlu0 %v3379, 64
    %v3382 = vpop.permute.xlu0 %3381
    %v3384 = vmul.f32 %v3363, %v3382
    %v3385 = vld [vmem:[%s9] sm:$0xff]
    %v3386 = vld [vmem:[%s9 + $0x8] sm:$0xff]
    %v3387 = vld [vmem:[%s9 + $0x10] sm:$0xff]
    %v3388 = vld [vmem:[%s9 + $0x18] sm:$0xff]
    %v3389 = vld [vmem:[%s10] sm:$0x1]
    %v3391 = vlaneseq
    %v3392 = vshrl.u32 %v3391, 7
    %v3393 = vsub.s32 0, %v3392
    %v3394 = vrot.slane %v3389, %v3393
    %v3397 = vrot.slane %v3384, 2
    %3398 = vrot.lane.b32.xlu0 %v3397, 32
    %v3399 = vpop.permute.xlu0 %3398
    %v3400 = vsel %vm169, %v3399, 0
    %3402 = vmatprep.subr.mxu0 0.0
    %3403 = vmatpush1.msra.mxu0 %v3385
    %3404 = vmatprep.subr.mxu0 0.0
    %3405 = vmatpush1.msra.mxu0 %v3386
    %3406 = vmatprep.subr.mxu0 0.0
    %3407 = vmatpush1.msra.mxu0 %v3387
    %3408 = vmatprep.subr.mxu0 0.0
    %3409 = vmatpush1.msra.mxu0 %v3388
    %3410 = vmatprep.subr.mxu0 0.0
    %3411 = vmatpush1.msra.mxu0 0.0
    %3412 = vmatprep.subr.mxu0 0.0
    %3413 = vmatpush1.msra.mxu0 0.0
    %3414 = vmatprep.subr.mxu0 0.0
    %3415 = vmatpush1.msra.mxu0 0.0
    %3416 = vmatprep.subr.mxu0 0.0
    %3417 = vmatpush1.msra.mxu0 0.0
    %3418 = vmatprep.subr.mxu0 0.0
    %3419 = vmatpush1.msra.mxu0 0.0
    %3420 = vmatprep.subr.mxu0 0.0
    %3421 = vmatpush1.msra.mxu0 0.0
    %3422 = vmatprep.subr.mxu0 0.0
    %3423 = vmatpush1.msra.mxu0 0.0
    %3424 = vmatprep.subr.mxu0 0.0
    %3425 = vmatpush1.msra.mxu0 0.0
    %3426 = vmatprep.subr.mxu0 0.0
    %3427 = vmatpush1.msra.mxu0 0.0
    %3428 = vmatprep.subr.mxu0 0.0
    %3429 = vmatpush1.msra.mxu0 0.0
    %3430 = vmatprep.subr.mxu0 0.0
    %3431 = vmatpush1.msra.mxu0 0.0
    %3432 = vmatprep.subr.mxu0 0.0
    %3433 = vmatpush1.msra.mxu0 0.0
    %3434 = vmatprep.subr.mxu0 0.0
    %3435 = vmatpush1.msra.mxu0 0.0
    %3436 = vmatprep.subr.mxu0 0.0
    %3437 = vmatpush1.msra.mxu0 0.0
    %3438 = vmatprep.subr.mxu0 0.0
    %3439 = vmatpush1.msra.mxu0 0.0
    %3440 = vmatprep.subr.mxu0 0.0
    %3441 = vmatpush1.msra.mxu0 0.0
    %3442 = vmatprep.subr.mxu0 0.0
    %3443 = vmatpush1.msra.mxu0 0.0
    %3444 = vmatprep.subr.mxu0 0.0
    %3445 = vmatpush1.msra.mxu0 0.0
    %3446 = vmatprep.subr.mxu0 0.0
    %3447 = vmatpush1.msra.mxu0 0.0
    %3448 = vmatprep.subr.mxu0 0.0
    %3449 = vmatpush1.msra.mxu0 0.0
    %3450 = vmatprep.subr.mxu0 0.0
    %3451 = vmatpush1.msra.mxu0 0.0
    %3452 = vmatprep.subr.mxu0 0.0
    %3453 = vmatpush1.msra.mxu0 0.0
    %3454 = vmatprep.subr.mxu0 0.0
    %3455 = vmatpush1.msra.mxu0 0.0
    %3456 = vmatprep.subr.mxu0 0.0
    %3457 = vmatpush1.msra.mxu0 0.0
    %3458 = vmatprep.subr.mxu0 0.0
    %3459 = vmatpush1.msra.mxu0 0.0
    %3460 = vmatprep.subr.mxu0 0.0
    %3461 = vmatpush1.msra.mxu0 0.0
    %3462 = vmatprep.subr.mxu0 0.0
    %3463 = vmatpush1.msra.mxu0 0.0
    %3464 = vmatprep.subr.mxu0 0.0
    %3465 = vmatpush1.msra.mxu0 0.0
    %3466 = vmatprep.mubr.f32.mxu0 0.0
    %3467 = vmatmul.mubr.f32.gmra.mrb[0].mxu0 %v3400
    %v3468 = vpop.f32.mrb[0].mxu0
    %v3469 = vadd.f32 %v3394, %v3468
    %v3470 = vpop.f32.mrb[0].mxu0
    %3471 = vdwg.mxu0
    %vm3472 = vcmask 33792
    %3473 = vst.msk [vmem:[#allocation3] sm:$0x3] %vm3472, %v3469
    // Predicated region
    $region46: #{cnn_lstm_forward.1} parent=1 // pred_check
      _
    $region47: #{cnn_lstm_forward.1} parent=1 // pred_check_branch
      %3475 = sbr.rel (0) target = $region49
    $region48: #{cnn_lstm_forward.1} parent=1 // pred_region
      %s3477 = ssub.s32 32, 32
      %3478 = vsyncadd [#allocation4], %s3477
      %s3480 = sshll.u32 [#allocation3], 4
      %s3481 = int_to_ptr.vmem [resolvable:$true] %s3480
      %3483 = dma.vmem_to_hbm [thread:$0]  %s3481, 32, %s11, [#allocation4]
    $region49: #{cnn_lstm_forward.1} parent=1 // pred_fallthru
      _
    // Predicated region
    $region50: #{cnn_lstm_forward.1} parent=1 // pred_check
      _
    $region51: #{cnn_lstm_forward.1} parent=1 // pred_check_branch
      %3485 = sbr.rel (0) target = $region53
    $region52: #{cnn_lstm_forward.1} parent=1 // pred_region
      %3486 = dma.done [#allocation4], 32
    $region53: #{cnn_lstm_forward.1} parent=1 // pred_fallthru
      _
    %3487 = vsyncpa [#allocation4], 1

</llo_original>
